<compile_context>
chip_gen: v7x
topology: tpu7x:2x2x1
jax: 0.10.0
libtpu: 0.0.40
codegen_flags: <defaults>
</compile_context>

<pallas_src>
import numpy as np

import jax
import jax.numpy as jnp
from jax.experimental import pallas as pl
from jax.experimental.pallas import tpu as pltpu

BITS = 4
QMAX = float(2 ** BITS - 1)          # 15.0
NUM_LEVELS = 2 ** BITS - 1           # 15 quantization levels
SIG_SCALE = 5.0                      # ResNet(sig_scale=5)
ALPHA = 0.1                          # GhostSuppressor alpha
BIG = 1.0e30                         # finite stand-in for +/-inf pool padding


def _round_up(n, m):
    return (n + m - 1) // m * m


def _gauss_1d(size=5, sigma=3.0):
    # GaussianSmoothing(3, 5, 3): effective kernel = outer(g, g) / sum, i.e.
    # separable 1-D factors g / g.sum() (the size-1 temporal factor cancels).
    coords = np.arange(size, dtype=np.float32)
    mean = (size - 1) / 2.0
    g = np.exp(-(((coords - mean) / sigma) ** 2) / 2.0).astype(np.float32)
    return (g / g.sum()).astype(np.float32)


_G1D = _gauss_1d()

_BF16_TANH = None


def _use_bf16_tanh():
    """bf16 tanh path for the quantizer on chips with a bf16 EUP (v6e/v7x)."""
    global _BF16_TANH
    if _BF16_TANH is None:
        try:
            kind = jax.devices()[0].device_kind.lower()
            _BF16_TANH = not any(
                t in kind for t in ("v2", "v3", "v4", "v5 lite", "v5lite", "v5e"))
        except Exception:
            _BF16_TANH = True
    return _BF16_TANH


# ----------------------------------------------------------------------------
# Kernel 1: fused Blur -> temporal Diff -> Ghost Suppression
#           + per-(batch, channel) partial min/max for the quantizer range.
#           One (b, c) clip per grid step; padded 2-D (H-sublane, W-lane)
#           scratch; every stencil tap is a shifted-slice read.
# ----------------------------------------------------------------------------
def _make_bds_kernel(T, H, W, Hp, Wp):
    g = _G1D                 # (5,) separable Gaussian weights
    F = T - 1                # number of diff frames
    HR = H + 4               # rows needed by a 5x5 vertical pass
    n = float(H * W)

    def kernel(x_ref, o_ref, mn_ref, mx_ref, buf):
        # ---------------- stage B: depthwise 5x5 Gaussian blur (zero pad) ----
        buf[...] = jnp.zeros((T, Hp, Wp), jnp.float32)
        buf[:, 2:2 + H, 2:2 + W] = x_ref[...].astype(jnp.float32)

        # horizontal pass (lane-offset reads), over all rows the vertical pass needs
        h = g[0] * buf[:, :HR, 0:W]
        for j in range(1, 5):
            h = h + g[j] * buf[:, :HR, j:j + W]
        # vertical pass (sublane-offset slices of the value) -> blurred interior
        bl = g[0] * h[:, 0:H, :]
        for i in range(1, 5):
            bl = bl + g[i] * h[:, i:i + H, :]                 # (T, H, W)

        # ---------------- stage D: temporal difference, drop first frame -----
        d = bl[1:] - bl[:-1]                                  # (F, H, W)
        a = jnp.abs(d)

        # ---------------- stage S part 1: adaptive threshold -----------------
        # 5x5 avg pool of |d| (zero pad, count_include_pad=True); buffer borders
        # are still zero from the blur stage, so only the interior is rewritten.
        buf[:F, 2:2 + H, 2:2 + W] = a
        bh = buf[:F, :HR, 0:W]
        for j in range(1, 5):
            bh = bh + buf[:F, :HR, j:j + W]
        bs = bh[:, 0:H, :]
        for i in range(1, 5):
            bs = bs + bh[:, i:i + H, :]
        local_mean = bs * (1.0 / 25.0)

        # per-(channel, frame) unbiased std over H*W — two-pass for accuracy
        s1 = jnp.sum(jnp.sum(a, axis=2, keepdims=True), axis=1, keepdims=True)
        mean = s1 * (1.0 / n)
        dev = a - mean
        var = jnp.sum(jnp.sum(dev * dev, axis=2, keepdims=True), axis=1,
                      keepdims=True) * (1.0 / (n - 1.0))
        std = jnp.sqrt(jnp.maximum(var, 0.0))                 # (F, 1, 1)

        thr = local_mean + ALPHA * std
        th = jnp.where(a > thr, d, 0.0)                       # signed, thresholded

        # ---------------- stage S part 2: 3x3 morphological closing ----------
        # dilation: -BIG padding (torch max_pool2d pad semantics)
        buf[...] = jnp.full((T, Hp, Wp), -BIG, jnp.float32)
        buf[:F, 2:2 + H, 2:2 + W] = th
        r = buf[:F, 1:1 + H + 2, 1:1 + W]
        for j in (2, 3):
            r = jnp.maximum(r, buf[:F, 1:1 + H + 2, j:j + W])
        dil = r[:, 0:H, :]
        for i in (1, 2):
            dil = jnp.maximum(dil, r[:, i:i + H, :])

        # erosion: +BIG padding
        buf[...] = jnp.full((T, Hp, Wp), BIG, jnp.float32)
        buf[:F, 2:2 + H, 2:2 + W] = dil
        r = buf[:F, 1:1 + H + 2, 1:1 + W]
        for j in (2, 3):
            r = jnp.minimum(r, buf[:F, 1:1 + H + 2, j:j + W])
        ero = r[:, 0:H, :]
        for i in (1, 2):
            ero = jnp.minimum(ero, r[:, i:i + H, :])          # (F, H, W) f32

        # ---------------- outputs --------------------------------------------
        # closed frames as bf16 (halves the HBM round-trip to the quantizer);
        # the min/max range is computed in f32 before the cast.
        o_ref[...] = ero.astype(o_ref.dtype)

        pm = jnp.min(jnp.min(ero, axis=2, keepdims=True), axis=1, keepdims=True)
        px = jnp.max(jnp.max(ero, axis=2, keepdims=True), axis=1, keepdims=True)
        mnv = pm[0]
        mxv = px[0]
        for t in range(1, F):
            mnv = jnp.minimum(mnv, pm[t])
            mxv = jnp.maximum(mxv, px[t])
        mn_ref[...] = mnv
        mx_ref[...] = mxv

    return kernel


def fused_blur_diff_suppress(x):
    """x: (B,C,T,H,W) -> (closed bf16 (B,C,T-1,H,W), mins (B,C,1,1), maxs (B,C,1,1))."""
    B, C, T, H, W = x.shape
    Hp = _round_up(H + 4, 8)
    Wp = _round_up(W + 4, 128)
    kernel = _make_bds_kernel(T, H, W, Hp, Wp)
    # TODO(synk): for very long clips, additionally chunk T (1-frame halo) or H
    # row-bands (2-row halo) on a third grid axis; the (B, C) split already keeps
    # the 224x224, T=8 working set well under the VMEM limit below.
    return pl.pallas_call(
        kernel,
        out_shape=(
            jax.ShapeDtypeStruct((B, C, T - 1, H, W), jnp.bfloat16),
            jax.ShapeDtypeStruct((B, C, 1, 1), jnp.float32),
            jax.ShapeDtypeStruct((B, C, 1, 1), jnp.float32),
        ),
        grid=(B, C),
        in_specs=[pl.BlockSpec((None, None, T, H, W),
                               lambda b, c: (b, c, 0, 0, 0))],
        out_specs=(
            pl.BlockSpec((None, None, T - 1, H, W), lambda b, c: (b, c, 0, 0, 0)),
            pl.BlockSpec((None, None, 1, 1), lambda b, c: (b, c, 0, 0)),
            pl.BlockSpec((None, None, 1, 1), lambda b, c: (b, c, 0, 0)),
        ),
        scratch_shapes=[pltpu.VMEM((T, Hp, Wp), jnp.float32)],
        compiler_params=pltpu.CompilerParams(
            dimension_semantics=("parallel", "parallel"),
            vmem_limit_bytes=48 * 1024 * 1024),
    )(x)


# ----------------------------------------------------------------------------
# Kernel 2: quantization (Q) — 15 shifted sigmoids rewritten as tanh (EUP),
#           bf16 tanh inputs on v6e/v7x, f32 accumulation, SMEM scalars,
#           lane-dense (T-1, H*W) blocks on a parallel (B, C) grid.
# ----------------------------------------------------------------------------
def _make_quant_kernel(use_bf16):
    def kernel(scal_ref, cb_ref, x_ref, o_ref):
        x = x_ref[...].astype(jnp.float32)               # (T-1, HW)
        h = (x - scal_ref[0]) * scal_ref[1]              # 0.5 * sig_scale * xn

        def level(i):
            z = h - cb_ref[i]                            # f32 argument
            if use_bf16:
                return jnp.tanh(z.astype(jnp.bfloat16)).astype(jnp.float32)
            return jnp.tanh(z)

        acc = level(0)
        for i in range(1, NUM_LEVELS):
            acc = acc + level(i)
        o_ref[...] = acc * scal_ref[2] + scal_ref[3]

    return kernel


def quantize(closed_flat, bias_sorted, mn, mx):
    """closed_flat: (B,C,T-1,HW) bf16; mn/mx: f32 scalars -> (B,C,T-1,HW) f32."""
    B, C, F, HW = closed_flat.shape
    rng = mx - mn
    # Matches the PyTorch reference exactly (two epsilon conventions):
    #   scale = max(rng / 15, 1e-4);  xn = (x - mn) * 15 / (rng + 1e-4)
    scale = jnp.maximum(rng / QMAX, 0.0001)
    # sigmoid(z) = 0.5*(1 + tanh(z/2)),  z = sig_scale*(xn - bias_i)
    coef = (0.5 * SIG_SCALE * QMAX) / (rng + 0.0001)          # h = (x - mn) * coef
    a_mul = 0.5 * scale
    b_add = 0.5 * NUM_LEVELS * scale + mn                     # y*scale + mn folded
    scal = jnp.stack([mn, coef, a_mul, b_add]).astype(jnp.float32)
    cbias = (0.5 * SIG_SCALE) * bias_sorted.astype(jnp.float32)

    blk = pl.BlockSpec((None, None, F, HW), lambda b, c: (b, c, 0, 0))
    return pl.pallas_call(
        _make_quant_kernel(_use_bf16_tanh()),
        out_shape=jax.ShapeDtypeStruct((B, C, F, HW), jnp.float32),
        grid=(B, C),
        in_specs=[
            pl.BlockSpec(memory_space=pltpu.MemorySpace.SMEM),   # [mn,coef,a,b]
            pl.BlockSpec(memory_space=pltpu.MemorySpace.SMEM),   # 0.5*s*bias (15,)
            blk,
        ],
        out_specs=blk,
        compiler_params=pltpu.CompilerParams(
            dimension_semantics=("parallel", "parallel")),
    )(scal, cbias, closed_flat)


# ----------------------------------------------------------------------------
# Full forward (abla = "BDSQ")
# ----------------------------------------------------------------------------
def resnet_forward(x, bias):
    B, C, T, H, W = x.shape

    # fused B -> D -> S (input cast happens inside the kernel, no extra HBM pass)
    closed, mins, maxs = fused_blur_diff_suppress(x)          # bf16 (B,C,T-1,H,W)
    mn = jnp.min(mins)
    mx = jnp.max(maxs)

    # self.bias.data.clamp(0, 2**bits - 1).sort(0)
    bias_sorted = jnp.sort(jnp.clip(bias.astype(jnp.float32), 0.0, QMAX))

    closed_flat = closed.reshape(B, C, T - 1, H * W)          # free trailing merge
    y = quantize(closed_flat, bias_sorted, mn, mx)
    # TODO(synk): self.blur_output / self.diff_output side buffers and the
    # in-place clamp of the frozen (already non-negative) Gaussian conv weights
    # are stateful side effects with no bearing on the returned values; omitted.
    return y.reshape(B, C, T - 1, H, W), bias_sorted


if __name__ == "__main__":
    key = jax.random.PRNGKey(0)
    B, C, T, H, W = 2, 3, 8, 16, 16          # 3 channels: GaussianSmoothing(3,...)
    x = jax.random.normal(key, (B, C, T, H, W), dtype=jnp.float32)

    # self.bias = linspace(0, 15, 16)[:-1] + 0.5  -> [0.5, 1.5, ..., 14.5]
    bias0 = jnp.asarray(
        np.linspace(0, 2 ** BITS - 1, 2 ** BITS, dtype=np.float32)[:-1] + 0.5)

    fwd = jax.jit(resnet_forward)
    y, bias = fwd(x, bias0)
    jax.block_until_ready(y)
    jax.block_until_ready(bias)

    assert y.shape == (B, C, T - 1, H, W)
    assert bias.shape == (NUM_LEVELS,)
    assert bool(jnp.all(jnp.isfinite(y)))
    print("KERNEL_OK")
</pallas_src>

<mosaic_0001>
module attributes {stable_mosaic.version = 11 : i64} {
  func.func @kernel(%arg0: i32, %arg1: i32, %arg2: memref<1x1x8x16x16xf32, #tpu.memory_space<vmem>>, %arg3: memref<1x1x7x16x16xbf16, #tpu.memory_space<vmem>>, %arg4: memref<1x1x1x1xf32, #tpu.memory_space<vmem>>, %arg5: memref<1x1x1x1xf32, #tpu.memory_space<vmem>>, %arg6: memref<8x24x128xf32, #tpu.memory_space<vmem>>) attributes {dimension_semantics = [#tpu.dimension_semantics<parallel>, #tpu.dimension_semantics<parallel>], iteration_bounds = array<i64: 2, 3>, scalar_prefetch = 0 : i64, scratch_operands = 1 : i64, tpu.core_type = #tpu.core_type<tc>, window_params = [{transform_indices = @transform_0, window_bounds = array<i64: 1, 1, 8, 16, 16>}, {transform_indices = @transform_1, window_bounds = array<i64: 1, 1, 7, 16, 16>}, {transform_indices = @transform_2, window_bounds = array<i64: 1, 1, 1, 1>}, {transform_indices = @transform_3, window_bounds = array<i64: 1, 1, 1, 1>}]} {
    %cst = arith.constant 0.000000e+00 : f32
    %0 = vector.broadcast %cst : f32 to vector<8x24x128xf32>
    %c0 = arith.constant 0 : index
    %c0_0 = arith.constant 0 : index
    %c0_1 = arith.constant 0 : index
    %1 = vector.load %arg6[%c0, %c0_0, %c0_1] : memref<8x24x128xf32, #tpu.memory_space<vmem>>, vector<8x24x128xf32>
    tpu.vector_store %arg6[%c0, %c0_0, %c0_1], %0 {strides = array<i32>} : memref<8x24x128xf32, #tpu.memory_space<vmem>>, vector<8x24x128xf32>,
    %c0_2 = arith.constant 0 : index
    %c0_3 = arith.constant 0 : index
    %c0_4 = arith.constant 0 : index
    %c0_5 = arith.constant 0 : index
    %c0_6 = arith.constant 0 : index
    %2 = vector.load %arg2[%c0_2, %c0_3, %c0_4, %c0_5, %c0_6] : memref<1x1x8x16x16xf32, #tpu.memory_space<vmem>>, vector<1x1x8x16x16xf32>
    %3 = vector.shape_cast %2 : vector<1x1x8x16x16xf32> to vector<8x16x16xf32>
    %c0_7 = arith.constant 0 : index
    %c2 = arith.constant 2 : index
    %c2_8 = arith.constant 2 : index
    %4 = vector.load %arg6[%c0_7, %c2, %c2_8] : memref<8x24x128xf32, #tpu.memory_space<vmem>>, vector<8x16x16xf32>
    tpu.vector_store %arg6[%c0_7, %c2, %c2_8], %3 {strides = array<i32>} : memref<8x24x128xf32, #tpu.memory_space<vmem>>, vector<8x16x16xf32>,
    %c0_9 = arith.constant 0 : index
    %c0_10 = arith.constant 0 : index
    %c0_11 = arith.constant 0 : index
    %5 = vector.load %arg6[%c0_9, %c0_10, %c0_11] : memref<8x24x128xf32, #tpu.memory_space<vmem>>, vector<8x20x16xf32>
    %cst_12 = arith.constant 0.17820324 : f32
    %6 = vector.broadcast %cst_12 : f32 to vector<8x20x16xf32>
    %7 = arith.mulf %6, %5 : vector<8x20x16xf32>
    %c0_13 = arith.constant 0 : index
    %c0_14 = arith.constant 0 : index
    %c1 = arith.constant 1 : index
    %8 = vector.load %arg6[%c0_13, %c0_14, %c1] : memref<8x24x128xf32, #tpu.memory_space<vmem>>, vector<8x20x16xf32>
    %cst_15 = arith.constant 0.210522264 : f32
    %9 = vector.broadcast %cst_15 : f32 to vector<8x20x16xf32>
    %10 = arith.mulf %9, %8 : vector<8x20x16xf32>
    %11 = arith.addf %7, %10 : vector<8x20x16xf32>
    %c0_16 = arith.constant 0 : index
    %c0_17 = arith.constant 0 : index
    %c2_18 = arith.constant 2 : index
    %12 = vector.load %arg6[%c0_16, %c0_17, %c2_18] : memref<8x24x128xf32, #tpu.memory_space<vmem>>, vector<8x20x16xf32>
    %cst_19 = arith.constant 0.222548932 : f32
    %13 = vector.broadcast %cst_19 : f32 to vector<8x20x16xf32>
    %14 = arith.mulf %13, %12 : vector<8x20x16xf32>
    %15 = arith.addf %11, %14 : vector<8x20x16xf32>
    %c0_20 = arith.constant 0 : index
    %c0_21 = arith.constant 0 : index
    %c3 = arith.constant 3 : index
    %16 = vector.load %arg6[%c0_20, %c0_21, %c3] : memref<8x24x128xf32, #tpu.memory_space<vmem>>, vector<8x20x16xf32>
    %cst_22 = arith.constant 0.210522264 : f32
    %17 = vector.broadcast %cst_22 : f32 to vector<8x20x16xf32>
    %18 = arith.mulf %17, %16 : vector<8x20x16xf32>
    %19 = arith.addf %15, %18 : vector<8x20x16xf32>
    %c0_23 = arith.constant 0 : index
    %c0_24 = arith.constant 0 : index
    %c4 = arith.constant 4 : index
    %20 = vector.load %arg6[%c0_23, %c0_24, %c4] : memref<8x24x128xf32, #tpu.memory_space<vmem>>, vector<8x20x16xf32>
    %cst_25 = arith.constant 0.17820324 : f32
    %21 = vector.broadcast %cst_25 : f32 to vector<8x20x16xf32>
    %22 = arith.mulf %21, %20 : vector<8x20x16xf32>
    %23 = arith.addf %19, %22 : vector<8x20x16xf32>
    %24 = vector.extract_strided_slice %23 {offsets = [0, 0, 0], sizes = [8, 16, 16], strides = [1, 1, 1]} : vector<8x20x16xf32> to vector<8x16x16xf32>
    %cst_26 = arith.constant 0.17820324 : f32
    %25 = vector.broadcast %cst_26 : f32 to vector<8x16x16xf32>
    %26 = arith.mulf %25, %24 : vector<8x16x16xf32>
    %27 = vector.extract_strided_slice %23 {offsets = [0, 1, 0], sizes = [8, 16, 16], strides = [1, 1, 1]} : vector<8x20x16xf32> to vector<8x16x16xf32>
    %cst_27 = arith.constant 0.210522264 : f32
    %28 = vector.broadcast %cst_27 : f32 to vector<8x16x16xf32>
    %29 = arith.mulf %28, %27 : vector<8x16x16xf32>
    %30 = arith.addf %26, %29 : vector<8x16x16xf32>
    %31 = vector.extract_strided_slice %23 {offsets = [0, 2, 0], sizes = [8, 16, 16], strides = [1, 1, 1]} : vector<8x20x16xf32> to vector<8x16x16xf32>
    %cst_28 = arith.constant 0.222548932 : f32
    %32 = vector.broadcast %cst_28 : f32 to vector<8x16x16xf32>
    %33 = arith.mulf %32, %31 : vector<8x16x16xf32>
    %34 = arith.addf %30, %33 : vector<8x16x16xf32>
    %35 = vector.extract_strided_slice %23 {offsets = [0, 3, 0], sizes = [8, 16, 16], strides = [1, 1, 1]} : vector<8x20x16xf32> to vector<8x16x16xf32>
    %cst_29 = arith.constant 0.210522264 : f32
    %36 = vector.broadcast %cst_29 : f32 to vector<8x16x16xf32>
    %37 = arith.mulf %36, %35 : vector<8x16x16xf32>
    %38 = arith.addf %34, %37 : vector<8x16x16xf32>
    %39 = vector.extract_strided_slice %23 {offsets = [0, 4, 0], sizes = [8, 16, 16], strides = [1, 1, 1]} : vector<8x20x16xf32> to vector<8x16x16xf32>
    %cst_30 = arith.constant 0.17820324 : f32
    %40 = vector.broadcast %cst_30 : f32 to vector<8x16x16xf32>
    %41 = arith.mulf %40, %39 : vector<8x16x16xf32>
    %42 = arith.addf %38, %41 : vector<8x16x16xf32>
    %43 = vector.extract_strided_slice %42 {offsets = [1, 0, 0], sizes = [7, 16, 16], strides = [1, 1, 1]} : vector<8x16x16xf32> to vector<7x16x16xf32>
    %44 = vector.extract_strided_slice %42 {offsets = [0, 0, 0], sizes = [7, 16, 16], strides = [1, 1, 1]} : vector<8x16x16xf32> to vector<7x16x16xf32>
    %45 = arith.subf %43, %44 : vector<7x16x16xf32>
    %46 = math.absf %45 : vector<7x16x16xf32>
    %c0_31 = arith.constant 0 : index
    %c2_32 = arith.constant 2 : index
    %c2_33 = arith.constant 2 : index
    %47 = vector.load %arg6[%c0_31, %c2_32, %c2_33] : memref<8x24x128xf32, #tpu.memory_space<vmem>>, vector<7x16x16xf32>
    tpu.vector_store %arg6[%c0_31, %c2_32, %c2_33], %46 {strides = array<i32>} : memref<8x24x128xf32, #tpu.memory_space<vmem>>, vector<7x16x16xf32>,
    %c0_34 = arith.constant 0 : index
    %c0_35 = arith.constant 0 : index
    %c0_36 = arith.constant 0 : index
    %48 = vector.load %arg6[%c0_34, %c0_35, %c0_36] : memref<8x24x128xf32, #tpu.memory_space<vmem>>, vector<7x20x16xf32>
    %c0_37 = arith.constant 0 : index
    %c0_38 = arith.constant 0 : index
    %c1_39 = arith.constant 1 : index
    %49 = vector.load %arg6[%c0_37, %c0_38, %c1_39] : memref<8x24x128xf32, #tpu.memory_space<vmem>>, vector<7x20x16xf32>
    %50 = arith.addf %48, %49 : vector<7x20x16xf32>
    %c0_40 = arith.constant 0 : index
    %c0_41 = arith.constant 0 : index
    %c2_42 = arith.constant 2 : index
    %51 = vector.load %arg6[%c0_40, %c0_41, %c2_42] : memref<8x24x128xf32, #tpu.memory_space<vmem>>, vector<7x20x16xf32>
    %52 = arith.addf %50, %51 : vector<7x20x16xf32>
    %c0_43 = arith.constant 0 : index
    %c0_44 = arith.constant 0 : index
    %c3_45 = arith.constant 3 : index
    %53 = vector.load %arg6[%c0_43, %c0_44, %c3_45] : memref<8x24x128xf32, #tpu.memory_space<vmem>>, vector<7x20x16xf32>
    %54 = arith.addf %52, %53 : vector<7x20x16xf32>
    %c0_46 = arith.constant 0 : index
    %c0_47 = arith.constant 0 : index
    %c4_48 = arith.constant 4 : index
    %55 = vector.load %arg6[%c0_46, %c0_47, %c4_48] : memref<8x24x128xf32, #tpu.memory_space<vmem>>, vector<7x20x16xf32>
    %56 = arith.addf %54, %55 : vector<7x20x16xf32>
    %57 = vector.extract_strided_slice %56 {offsets = [0, 0, 0], sizes = [7, 16, 16], strides = [1, 1, 1]} : vector<7x20x16xf32> to vector<7x16x16xf32>
    %58 = vector.extract_strided_slice %56 {offsets = [0, 1, 0], sizes = [7, 16, 16], strides = [1, 1, 1]} : vector<7x20x16xf32> to vector<7x16x16xf32>
    %59 = arith.addf %57, %58 : vector<7x16x16xf32>
    %60 = vector.extract_strided_slice %56 {offsets = [0, 2, 0], sizes = [7, 16, 16], strides = [1, 1, 1]} : vector<7x20x16xf32> to vector<7x16x16xf32>
    %61 = arith.addf %59, %60 : vector<7x16x16xf32>
    %62 = vector.extract_strided_slice %56 {offsets = [0, 3, 0], sizes = [7, 16, 16], strides = [1, 1, 1]} : vector<7x20x16xf32> to vector<7x16x16xf32>
    %63 = arith.addf %61, %62 : vector<7x16x16xf32>
    %64 = vector.extract_strided_slice %56 {offsets = [0, 4, 0], sizes = [7, 16, 16], strides = [1, 1, 1]} : vector<7x20x16xf32> to vector<7x16x16xf32>
    %65 = arith.addf %63, %64 : vector<7x16x16xf32>
    %cst_49 = arith.constant 4.000000e-02 : f32
    %66 = vector.broadcast %cst_49 : f32 to vector<7x16x16xf32>
    %67 = arith.mulf %65, %66 : vector<7x16x16xf32>
    %cst_50 = arith.constant dense<0.000000e+00> : vector<7x16xf32>
    %68 = vector.multi_reduction <add>, %46, %cst_50 [2] : vector<7x16x16xf32> to vector<7x16xf32>
    %69 = vector.shape_cast %68 : vector<7x16xf32> to vector<7x16x1xf32>
    %cst_51 = arith.constant dense<0.000000e+00> : vector<7x1xf32>
    %70 = vector.multi_reduction <add>, %69, %cst_51 [1] : vector<7x16x1xf32> to vector<7x1xf32>
    %71 = vector.shape_cast %70 : vector<7x1xf32> to vector<7x1x1xf32>
    %cst_52 = arith.constant 3.906250e-03 : f32
    %72 = vector.broadcast %cst_52 : f32 to vector<7x1x1xf32>
    %73 = arith.mulf %71, %72 : vector<7x1x1xf32>
    %74 = vector.broadcast %73 : vector<7x1x1xf32> to vector<7x16x16xf32>
    %75 = arith.subf %46, %74 : vector<7x16x16xf32>
    %76 = arith.mulf %75, %75 : vector<7x16x16xf32>
    %cst_53 = arith.constant dense<0.000000e+00> : vector<7x16xf32>
    %77 = vector.multi_reduction <add>, %76, %cst_53 [2] : vector<7x16x16xf32> to vector<7x16xf32>
    %78 = vector.shape_cast %77 : vector<7x16xf32> to vector<7x16x1xf32>
    %cst_54 = arith.constant dense<0.000000e+00> : vector<7x1xf32>
    %79 = vector.multi_reduction <add>, %78, %cst_54 [1] : vector<7x16x1xf32> to vector<7x1xf32>
    %80 = vector.shape_cast %79 : vector<7x1xf32> to vector<7x1x1xf32>
    %cst_55 = arith.constant 0.00392156886 : f32
    %81 = vector.broadcast %cst_55 : f32 to vector<7x1x1xf32>
    %82 = arith.mulf %80, %81 : vector<7x1x1xf32>
    %cst_56 = arith.constant 0.000000e+00 : f32
    %83 = vector.broadcast %cst_56 : f32 to vector<7x1x1xf32>
    %84 = arith.maximumf %82, %83 : vector<7x1x1xf32>
    %85 = math.sqrt %84 : vector<7x1x1xf32>
    %cst_57 = arith.constant 1.000000e-01 : f32
    %86 = vector.broadcast %cst_57 : f32 to vector<7x1x1xf32>
    %87 = arith.mulf %86, %85 : vector<7x1x1xf32>
    %88 = vector.broadcast %87 : vector<7x1x1xf32> to vector<7x16x16xf32>
    %89 = arith.addf %67, %88 : vector<7x16x16xf32>
    %90 = arith.cmpf ogt, %46, %89 : vector<7x16x16xf32>
    %cst_58 = arith.constant 0.000000e+00 : f32
    %91 = vector.broadcast %cst_58 : f32 to vector<7x16x16xf32>
    %92 = arith.select %90, %45, %91 : vector<7x16x16xi1>, vector<7x16x16xf32>
    %cst_59 = arith.constant -1.000000e+30 : f32
    %93 = vector.broadcast %cst_59 : f32 to vector<8x24x128xf32>
    %c0_60 = arith.constant 0 : index
    %c0_61 = arith.constant 0 : index
    %c0_62 = arith.constant 0 : index
    %94 = vector.load %arg6[%c0_60, %c0_61, %c0_62] : memref<8x24x128xf32, #tpu.memory_space<vmem>>, vector<8x24x128xf32>
    tpu.vector_store %arg6[%c0_60, %c0_61, %c0_62], %93 {strides = array<i32>} : memref<8x24x128xf32, #tpu.memory_space<vmem>>, vector<8x24x128xf32>,
    %c0_63 = arith.constant 0 : index
    %c2_64 = arith.constant 2 : index
    %c2_65 = arith.constant 2 : index
    %95 = vector.load %arg6[%c0_63, %c2_64, %c2_65] : memref<8x24x128xf32, #tpu.memory_space<vmem>>, vector<7x16x16xf32>
    tpu.vector_store %arg6[%c0_63, %c2_64, %c2_65], %92 {strides = array<i32>} : memref<8x24x128xf32, #tpu.memory_space<vmem>>, vector<7x16x16xf32>,
    %c0_66 = arith.constant 0 : index
    %c1_67 = arith.constant 1 : index
    %c1_68 = arith.constant 1 : index
    %96 = vector.load %arg6[%c0_66, %c1_67, %c1_68] : memref<8x24x128xf32, #tpu.memory_space<vmem>>, vector<7x18x16xf32>
    %c0_69 = arith.constant 0 : index
    %c1_70 = arith.constant 1 : index
    %c2_71 = arith.constant 2 : index
    %97 = vector.load %arg6[%c0_69, %c1_70, %c2_71] : memref<8x24x128xf32, #tpu.memory_space<vmem>>, vector<7x18x16xf32>
    %98 = arith.maximumf %96, %97 : vector<7x18x16xf32>
    %c0_72 = arith.constant 0 : index
    %c1_73 = arith.constant 1 : index
    %c3_74 = arith.constant 3 : index
    %99 = vector.load %arg6[%c0_72, %c1_73, %c3_74] : memref<8x24x128xf32, #tpu.memory_space<vmem>>, vector<7x18x16xf32>
    %100 = arith.maximumf %98, %99 : vector<7x18x16xf32>
    %101 = vector.extract_strided_slice %100 {offsets = [0, 0, 0], sizes = [7, 16, 16], strides = [1, 1, 1]} : vector<7x18x16xf32> to vector<7x16x16xf32>
    %102 = vector.extract_strided_slice %100 {offsets = [0, 1, 0], sizes = [7, 16, 16], strides = [1, 1, 1]} : vector<7x18x16xf32> to vector<7x16x16xf32>
    %103 = arith.maximumf %101, %102 : vector<7x16x16xf32>
    %104 = vector.extract_strided_slice %100 {offsets = [0, 2, 0], sizes = [7, 16, 16], strides = [1, 1, 1]} : vector<7x18x16xf32> to vector<7x16x16xf32>
    %105 = arith.maximumf %103, %104 : vector<7x16x16xf32>
    %cst_75 = arith.constant 1.000000e+30 : f32
    %106 = vector.broadcast %cst_75 : f32 to vector<8x24x128xf32>
    %c0_76 = arith.constant 0 : index
    %c0_77 = arith.constant 0 : index
    %c0_78 = arith.constant 0 : index
    %107 = vector.load %arg6[%c0_76, %c0_77, %c0_78] : memref<8x24x128xf32, #tpu.memory_space<vmem>>, vector<8x24x128xf32>
    tpu.vector_store %arg6[%c0_76, %c0_77, %c0_78], %106 {strides = array<i32>} : memref<8x24x128xf32, #tpu.memory_space<vmem>>, vector<8x24x128xf32>,
    %c0_79 = arith.constant 0 : index
    %c2_80 = arith.constant 2 : index
    %c2_81 = arith.constant 2 : index
    %108 = vector.load %arg6[%c0_79, %c2_80, %c2_81] : memref<8x24x128xf32, #tpu.memory_space<vmem>>, vector<7x16x16xf32>
    tpu.vector_store %arg6[%c0_79, %c2_80, %c2_81], %105 {strides = array<i32>} : memref<8x24x128xf32, #tpu.memory_space<vmem>>, vector<7x16x16xf32>,
    %c0_82 = arith.constant 0 : index
    %c1_83 = arith.constant 1 : index
    %c1_84 = arith.constant 1 : index
    %109 = vector.load %arg6[%c0_82, %c1_83, %c1_84] : memref<8x24x128xf32, #tpu.memory_space<vmem>>, vector<7x18x16xf32>
    %c0_85 = arith.constant 0 : index
    %c1_86 = arith.constant 1 : index
    %c2_87 = arith.constant 2 : index
    %110 = vector.load %arg6[%c0_85, %c1_86, %c2_87] : memref<8x24x128xf32, #tpu.memory_space<vmem>>, vector<7x18x16xf32>
    %111 = arith.minimumf %109, %110 : vector<7x18x16xf32>
    %c0_88 = arith.constant 0 : index
    %c1_89 = arith.constant 1 : index
    %c3_90 = arith.constant 3 : index
    %112 = vector.load %arg6[%c0_88, %c1_89, %c3_90] : memref<8x24x128xf32, #tpu.memory_space<vmem>>, vector<7x18x16xf32>
    %113 = arith.minimumf %111, %112 : vector<7x18x16xf32>
    %114 = vector.extract_strided_slice %113 {offsets = [0, 0, 0], sizes = [7, 16, 16], strides = [1, 1, 1]} : vector<7x18x16xf32> to vector<7x16x16xf32>
    %115 = vector.extract_strided_slice %113 {offsets = [0, 1, 0], sizes = [7, 16, 16], strides = [1, 1, 1]} : vector<7x18x16xf32> to vector<7x16x16xf32>
    %116 = arith.minimumf %114, %115 : vector<7x16x16xf32>
    %117 = vector.extract_strided_slice %113 {offsets = [0, 2, 0], sizes = [7, 16, 16], strides = [1, 1, 1]} : vector<7x18x16xf32> to vector<7x16x16xf32>
    %118 = arith.minimumf %116, %117 : vector<7x16x16xf32>
    %119 = arith.truncf %118 : vector<7x16x16xf32> to vector<7x16x16xbf16>
    %c0_91 = arith.constant 0 : index
    %c0_92 = arith.constant 0 : index
    %c0_93 = arith.constant 0 : index
    %c0_94 = arith.constant 0 : index
    %c0_95 = arith.constant 0 : index
    %120 = vector.load %arg3[%c0_91, %c0_92, %c0_93, %c0_94, %c0_95] : memref<1x1x7x16x16xbf16, #tpu.memory_space<vmem>>, vector<1x1x7x16x16xbf16>
    %121 = vector.shape_cast %120 : vector<1x1x7x16x16xbf16> to vector<7x16x16xbf16>
    %122 = vector.shape_cast %119 : vector<7x16x16xbf16> to vector<1x1x7x16x16xbf16>
    tpu.vector_store %arg3[%c0_91, %c0_92, %c0_93, %c0_94, %c0_95], %122 {strides = array<i32>} : memref<1x1x7x16x16xbf16, #tpu.memory_space<vmem>>, vector<1x1x7x16x16xbf16>,
    %cst_96 = arith.constant dense<0x7F800000> : vector<7x16xf32>
    %123 = vector.multi_reduction <minimumf>, %118, %cst_96 [2] : vector<7x16x16xf32> to vector<7x16xf32>
    %124 = vector.shape_cast %123 : vector<7x16xf32> to vector<7x16x1xf32>
    %cst_97 = arith.constant dense<0x7F800000> : vector<7x1xf32>
    %125 = vector.multi_reduction <minimumf>, %124, %cst_97 [1] : vector<7x16x1xf32> to vector<7x1xf32>
    %126 = vector.shape_cast %125 : vector<7x1xf32> to vector<7x1x1xf32>
    %cst_98 = arith.constant dense<0xFF800000> : vector<7x16xf32>
    %127 = vector.multi_reduction <maximumf>, %118, %cst_98 [2] : vector<7x16x16xf32> to vector<7x16xf32>
    %128 = vector.shape_cast %127 : vector<7x16xf32> to vector<7x16x1xf32>
    %cst_99 = arith.constant dense<0xFF800000> : vector<7x1xf32>
    %129 = vector.multi_reduction <maximumf>, %128, %cst_99 [1] : vector<7x16x1xf32> to vector<7x1xf32>
    %130 = vector.shape_cast %129 : vector<7x1xf32> to vector<7x1x1xf32>
    %131 = vector.extract_strided_slice %126 {offsets = [0, 0, 0], sizes = [1, 1, 1], strides = [1, 1, 1]} : vector<7x1x1xf32> to vector<1x1x1xf32>
    %132 = vector.shape_cast %131 : vector<1x1x1xf32> to vector<1x1xf32>
    %133 = vector.extract_strided_slice %130 {offsets = [0, 0, 0], sizes = [1, 1, 1], strides = [1, 1, 1]} : vector<7x1x1xf32> to vector<1x1x1xf32>
    %134 = vector.shape_cast %133 : vector<1x1x1xf32> to vector<1x1xf32>
    %135 = vector.extract_strided_slice %126 {offsets = [1, 0, 0], sizes = [1, 1, 1], strides = [1, 1, 1]} : vector<7x1x1xf32> to vector<1x1x1xf32>
    %136 = vector.shape_cast %135 : vector<1x1x1xf32> to vector<1x1xf32>
    %137 = arith.minimumf %132, %136 : vector<1x1xf32>
    %138 = vector.extract_strided_slice %130 {offsets = [1, 0, 0], sizes = [1, 1, 1], strides = [1, 1, 1]} : vector<7x1x1xf32> to vector<1x1x1xf32>
    %139 = vector.shape_cast %138 : vector<1x1x1xf32> to vector<1x1xf32>
    %140 = arith.maximumf %134, %139 : vector<1x1xf32>
    %141 = vector.extract_strided_slice %126 {offsets = [2, 0, 0], sizes = [1, 1, 1], strides = [1, 1, 1]} : vector<7x1x1xf32> to vector<1x1x1xf32>
    %142 = vector.shape_cast %141 : vector<1x1x1xf32> to vector<1x1xf32>
    %143 = arith.minimumf %137, %142 : vector<1x1xf32>
    %144 = vector.extract_strided_slice %130 {offsets = [2, 0, 0], sizes = [1, 1, 1], strides = [1, 1, 1]} : vector<7x1x1xf32> to vector<1x1x1xf32>
    %145 = vector.shape_cast %144 : vector<1x1x1xf32> to vector<1x1xf32>
    %146 = arith.maximumf %140, %145 : vector<1x1xf32>
    %147 = vector.extract_strided_slice %126 {offsets = [3, 0, 0], sizes = [1, 1, 1], strides = [1, 1, 1]} : vector<7x1x1xf32> to vector<1x1x1xf32>
    %148 = vector.shape_cast %147 : vector<1x1x1xf32> to vector<1x1xf32>
    %149 = arith.minimumf %143, %148 : vector<1x1xf32>
    %150 = vector.extract_strided_slice %130 {offsets = [3, 0, 0], sizes = [1, 1, 1], strides = [1, 1, 1]} : vector<7x1x1xf32> to vector<1x1x1xf32>
    %151 = vector.shape_cast %150 : vector<1x1x1xf32> to vector<1x1xf32>
    %152 = arith.maximumf %146, %151 : vector<1x1xf32>
    %153 = vector.extract_strided_slice %126 {offsets = [4, 0, 0], sizes = [1, 1, 1], strides = [1, 1, 1]} : vector<7x1x1xf32> to vector<1x1x1xf32>
    %154 = vector.shape_cast %153 : vector<1x1x1xf32> to vector<1x1xf32>
    %155 = arith.minimumf %149, %154 : vector<1x1xf32>
    %156 = vector.extract_strided_slice %130 {offsets = [4, 0, 0], sizes = [1, 1, 1], strides = [1, 1, 1]} : vector<7x1x1xf32> to vector<1x1x1xf32>
    %157 = vector.shape_cast %156 : vector<1x1x1xf32> to vector<1x1xf32>
    %158 = arith.maximumf %152, %157 : vector<1x1xf32>
    %159 = vector.extract_strided_slice %126 {offsets = [5, 0, 0], sizes = [1, 1, 1], strides = [1, 1, 1]} : vector<7x1x1xf32> to vector<1x1x1xf32>
    %160 = vector.shape_cast %159 : vector<1x1x1xf32> to vector<1x1xf32>
    %161 = arith.minimumf %155, %160 : vector<1x1xf32>
    %162 = vector.extract_strided_slice %130 {offsets = [5, 0, 0], sizes = [1, 1, 1], strides = [1, 1, 1]} : vector<7x1x1xf32> to vector<1x1x1xf32>
    %163 = vector.shape_cast %162 : vector<1x1x1xf32> to vector<1x1xf32>
    %164 = arith.maximumf %158, %163 : vector<1x1xf32>
    %165 = vector.extract_strided_slice %126 {offsets = [6, 0, 0], sizes = [1, 1, 1], strides = [1, 1, 1]} : vector<7x1x1xf32> to vector<1x1x1xf32>
    %166 = vector.shape_cast %165 : vector<1x1x1xf32> to vector<1x1xf32>
    %167 = arith.minimumf %161, %166 : vector<1x1xf32>
    %168 = vector.extract_strided_slice %130 {offsets = [6, 0, 0], sizes = [1, 1, 1], strides = [1, 1, 1]} : vector<7x1x1xf32> to vector<1x1x1xf32>
    %169 = vector.shape_cast %168 : vector<1x1x1xf32> to vector<1x1xf32>
    %170 = arith.maximumf %164, %169 : vector<1x1xf32>
    %c0_100 = arith.constant 0 : index
    %c0_101 = arith.constant 0 : index
    %c0_102 = arith.constant 0 : index
    %c0_103 = arith.constant 0 : index
    %171 = vector.load %arg4[%c0_100, %c0_101, %c0_102, %c0_103] : memref<1x1x1x1xf32, #tpu.memory_space<vmem>>, vector<1x1x1x1xf32>
    %172 = vector.shape_cast %171 : vector<1x1x1x1xf32> to vector<1x1xf32>
    %173 = vector.shape_cast %167 : vector<1x1xf32> to vector<1x1x1x1xf32>
    tpu.vector_store %arg4[%c0_100, %c0_101, %c0_102, %c0_103], %173 {strides = array<i32>} : memref<1x1x1x1xf32, #tpu.memory_space<vmem>>, vector<1x1x1x1xf32>,
    %c0_104 = arith.constant 0 : index
    %c0_105 = arith.constant 0 : index
    %c0_106 = arith.constant 0 : index
    %c0_107 = arith.constant 0 : index
    %174 = vector.load %arg5[%c0_104, %c0_105, %c0_106, %c0_107] : memref<1x1x1x1xf32, #tpu.memory_space<vmem>>, vector<1x1x1x1xf32>
    %175 = vector.shape_cast %174 : vector<1x1x1x1xf32> to vector<1x1xf32>
    %176 = vector.shape_cast %170 : vector<1x1xf32> to vector<1x1x1x1xf32>
    tpu.vector_store %arg5[%c0_104, %c0_105, %c0_106, %c0_107], %176 {strides = array<i32>} : memref<1x1x1x1xf32, #tpu.memory_space<vmem>>, vector<1x1x1x1xf32>,
    return
  }
  func.func @transform_0(%arg0: i32, %arg1: i32) -> (i32, i32, i32, i32, i32) {
    %c0_i32 = arith.constant 0 : i32
    %c0_i32_0 = arith.constant 0 : i32
    %c0_i32_1 = arith.constant 0 : i32
    %c0_i32_2 = arith.constant 0 : i32
    return %arg0, %arg1, %c0_i32, %c0_i32_0, %c0_i32_1 : i32, i32, i32, i32, i32
  }
  func.func @transform_1(%arg0: i32, %arg1: i32) -> (i32, i32, i32, i32, i32) {
    %c0_i32 = arith.constant 0 : i32
    %c0_i32_0 = arith.constant 0 : i32
    %c0_i32_1 = arith.constant 0 : i32
    %c0_i32_2 = arith.constant 0 : i32
    return %arg0, %arg1, %c0_i32, %c0_i32_0, %c0_i32_1 : i32, i32, i32, i32, i32
  }
  func.func @transform_2(%arg0: i32, %arg1: i32) -> (i32, i32, i32, i32) {
    %c0_i32 = arith.constant 0 : i32
    %c0_i32_0 = arith.constant 0 : i32
    %c0_i32_1 = arith.constant 0 : i32
    return %arg0, %arg1, %c0_i32, %c0_i32_0 : i32, i32, i32, i32
  }
  func.func @transform_3(%arg0: i32, %arg1: i32) -> (i32, i32, i32, i32) {
    %c0_i32 = arith.constant 0 : i32
    %c0_i32_0 = arith.constant 0 : i32
    %c0_i32_1 = arith.constant 0 : i32
    return %arg0, %arg1, %c0_i32, %c0_i32_0 : i32, i32, i32, i32
  }
}

module attributes {stable_mosaic.version = 11 : i64} {
  func.func @kernel(%arg0: i32, %arg1: i32, %arg2: memref<4xf32, #tpu.memory_space<smem>>, %arg3: memref<15xf32, #tpu.memory_space<smem>>, %arg4: memref<1x1x7x256xbf16, #tpu.memory_space<vmem>>, %arg5: memref<1x1x7x256xf32, #tpu.memory_space<vmem>>) attributes {dimension_semantics = [#tpu.dimension_semantics<parallel>, #tpu.dimension_semantics<parallel>], iteration_bounds = array<i64: 2, 3>, scalar_prefetch = 0 : i64, scratch_operands = 0 : i64, tpu.core_type = #tpu.core_type<tc>, window_params = [{transform_indices = @transform_0, window_bounds = array<i64: 4>}, {transform_indices = @transform_1, window_bounds = array<i64: 15>}, {transform_indices = @transform_2, window_bounds = array<i64: 1, 1, 7, 256>}, {transform_indices = @transform_3, window_bounds = array<i64: 1, 1, 7, 256>}]} {
    %c0 = arith.constant 0 : index
    %c0_0 = arith.constant 0 : index
    %c0_1 = arith.constant 0 : index
    %c0_2 = arith.constant 0 : index
    %0 = vector.load %arg4[%c0, %c0_0, %c0_1, %c0_2] : memref<1x1x7x256xbf16, #tpu.memory_space<vmem>>, vector<1x1x7x256xbf16>
    %1 = vector.shape_cast %0 : vector<1x1x7x256xbf16> to vector<7x256xbf16>
    %2 = arith.extf %1 : vector<7x256xbf16> to vector<7x256xf32>
    %c0_3 = arith.constant 0 : index
    %3 = memref.load %arg2[%c0_3] : memref<4xf32, #tpu.memory_space<smem>>
    %4 = vector.broadcast %3 : f32 to vector<7x256xf32>
    %5 = arith.subf %2, %4 : vector<7x256xf32>
    %c1 = arith.constant 1 : index
    %6 = memref.load %arg2[%c1] : memref<4xf32, #tpu.memory_space<smem>>
    %7 = vector.broadcast %6 : f32 to vector<7x256xf32>
    %8 = arith.mulf %5, %7 : vector<7x256xf32>
    %c0_4 = arith.constant 0 : index
    %9 = memref.load %arg3[%c0_4] : memref<15xf32, #tpu.memory_space<smem>>
    %10 = vector.broadcast %9 : f32 to vector<7x256xf32>
    %11 = arith.subf %8, %10 : vector<7x256xf32>
    %12 = arith.truncf %11 : vector<7x256xf32> to vector<7x256xbf16>
    %13 = math.tanh %12 : vector<7x256xbf16>
    %14 = arith.extf %13 : vector<7x256xbf16> to vector<7x256xf32>
    %c1_5 = arith.constant 1 : index
    %15 = memref.load %arg3[%c1_5] : memref<15xf32, #tpu.memory_space<smem>>
    %16 = vector.broadcast %15 : f32 to vector<7x256xf32>
    %17 = arith.subf %8, %16 : vector<7x256xf32>
    %18 = arith.truncf %17 : vector<7x256xf32> to vector<7x256xbf16>
    %19 = math.tanh %18 : vector<7x256xbf16>
    %20 = arith.extf %19 : vector<7x256xbf16> to vector<7x256xf32>
    %21 = arith.addf %14, %20 : vector<7x256xf32>
    %c2 = arith.constant 2 : index
    %22 = memref.load %arg3[%c2] : memref<15xf32, #tpu.memory_space<smem>>
    %23 = vector.broadcast %22 : f32 to vector<7x256xf32>
    %24 = arith.subf %8, %23 : vector<7x256xf32>
    %25 = arith.truncf %24 : vector<7x256xf32> to vector<7x256xbf16>
    %26 = math.tanh %25 : vector<7x256xbf16>
    %27 = arith.extf %26 : vector<7x256xbf16> to vector<7x256xf32>
    %28 = arith.addf %21, %27 : vector<7x256xf32>
    %c3 = arith.constant 3 : index
    %29 = memref.load %arg3[%c3] : memref<15xf32, #tpu.memory_space<smem>>
    %30 = vector.broadcast %29 : f32 to vector<7x256xf32>
    %31 = arith.subf %8, %30 : vector<7x256xf32>
    %32 = arith.truncf %31 : vector<7x256xf32> to vector<7x256xbf16>
    %33 = math.tanh %32 : vector<7x256xbf16>
    %34 = arith.extf %33 : vector<7x256xbf16> to vector<7x256xf32>
    %35 = arith.addf %28, %34 : vector<7x256xf32>
    %c4 = arith.constant 4 : index
    %36 = memref.load %arg3[%c4] : memref<15xf32, #tpu.memory_space<smem>>
    %37 = vector.broadcast %36 : f32 to vector<7x256xf32>
    %38 = arith.subf %8, %37 : vector<7x256xf32>
    %39 = arith.truncf %38 : vector<7x256xf32> to vector<7x256xbf16>
    %40 = math.tanh %39 : vector<7x256xbf16>
    %41 = arith.extf %40 : vector<7x256xbf16> to vector<7x256xf32>
    %42 = arith.addf %35, %41 : vector<7x256xf32>
    %c5 = arith.constant 5 : index
    %43 = memref.load %arg3[%c5] : memref<15xf32, #tpu.memory_space<smem>>
    %44 = vector.broadcast %43 : f32 to vector<7x256xf32>
    %45 = arith.subf %8, %44 : vector<7x256xf32>
    %46 = arith.truncf %45 : vector<7x256xf32> to vector<7x256xbf16>
    %47 = math.tanh %46 : vector<7x256xbf16>
    %48 = arith.extf %47 : vector<7x256xbf16> to vector<7x256xf32>
    %49 = arith.addf %42, %48 : vector<7x256xf32>
    %c6 = arith.constant 6 : index
    %50 = memref.load %arg3[%c6] : memref<15xf32, #tpu.memory_space<smem>>
    %51 = vector.broadcast %50 : f32 to vector<7x256xf32>
    %52 = arith.subf %8, %51 : vector<7x256xf32>
    %53 = arith.truncf %52 : vector<7x256xf32> to vector<7x256xbf16>
    %54 = math.tanh %53 : vector<7x256xbf16>
    %55 = arith.extf %54 : vector<7x256xbf16> to vector<7x256xf32>
    %56 = arith.addf %49, %55 : vector<7x256xf32>
    %c7 = arith.constant 7 : index
    %57 = memref.load %arg3[%c7] : memref<15xf32, #tpu.memory_space<smem>>
    %58 = vector.broadcast %57 : f32 to vector<7x256xf32>
    %59 = arith.subf %8, %58 : vector<7x256xf32>
    %60 = arith.truncf %59 : vector<7x256xf32> to vector<7x256xbf16>
    %61 = math.tanh %60 : vector<7x256xbf16>
    %62 = arith.extf %61 : vector<7x256xbf16> to vector<7x256xf32>
    %63 = arith.addf %56, %62 : vector<7x256xf32>
    %c8 = arith.constant 8 : index
    %64 = memref.load %arg3[%c8] : memref<15xf32, #tpu.memory_space<smem>>
    %65 = vector.broadcast %64 : f32 to vector<7x256xf32>
    %66 = arith.subf %8, %65 : vector<7x256xf32>
    %67 = arith.truncf %66 : vector<7x256xf32> to vector<7x256xbf16>
    %68 = math.tanh %67 : vector<7x256xbf16>
    %69 = arith.extf %68 : vector<7x256xbf16> to vector<7x256xf32>
    %70 = arith.addf %63, %69 : vector<7x256xf32>
    %c9 = arith.constant 9 : index
    %71 = memref.load %arg3[%c9] : memref<15xf32, #tpu.memory_space<smem>>
    %72 = vector.broadcast %71 : f32 to vector<7x256xf32>
    %73 = arith.subf %8, %72 : vector<7x256xf32>
    %74 = arith.truncf %73 : vector<7x256xf32> to vector<7x256xbf16>
    %75 = math.tanh %74 : vector<7x256xbf16>
    %76 = arith.extf %75 : vector<7x256xbf16> to vector<7x256xf32>
    %77 = arith.addf %70, %76 : vector<7x256xf32>
    %c10 = arith.constant 10 : index
    %78 = memref.load %arg3[%c10] : memref<15xf32, #tpu.memory_space<smem>>
    %79 = vector.broadcast %78 : f32 to vector<7x256xf32>
    %80 = arith.subf %8, %79 : vector<7x256xf32>
    %81 = arith.truncf %80 : vector<7x256xf32> to vector<7x256xbf16>
    %82 = math.tanh %81 : vector<7x256xbf16>
    %83 = arith.extf %82 : vector<7x256xbf16> to vector<7x256xf32>
    %84 = arith.addf %77, %83 : vector<7x256xf32>
    %c11 = arith.constant 11 : index
    %85 = memref.load %arg3[%c11] : memref<15xf32, #tpu.memory_space<smem>>
    %86 = vector.broadcast %85 : f32 to vector<7x256xf32>
    %87 = arith.subf %8, %86 : vector<7x256xf32>
    %88 = arith.truncf %87 : vector<7x256xf32> to vector<7x256xbf16>
    %89 = math.tanh %88 : vector<7x256xbf16>
    %90 = arith.extf %89 : vector<7x256xbf16> to vector<7x256xf32>
    %91 = arith.addf %84, %90 : vector<7x256xf32>
    %c12 = arith.constant 12 : index
    %92 = memref.load %arg3[%c12] : memref<15xf32, #tpu.memory_space<smem>>
    %93 = vector.broadcast %92 : f32 to vector<7x256xf32>
    %94 = arith.subf %8, %93 : vector<7x256xf32>
    %95 = arith.truncf %94 : vector<7x256xf32> to vector<7x256xbf16>
    %96 = math.tanh %95 : vector<7x256xbf16>
    %97 = arith.extf %96 : vector<7x256xbf16> to vector<7x256xf32>
    %98 = arith.addf %91, %97 : vector<7x256xf32>
    %c13 = arith.constant 13 : index
    %99 = memref.load %arg3[%c13] : memref<15xf32, #tpu.memory_space<smem>>
    %100 = vector.broadcast %99 : f32 to vector<7x256xf32>
    %101 = arith.subf %8, %100 : vector<7x256xf32>
    %102 = arith.truncf %101 : vector<7x256xf32> to vector<7x256xbf16>
    %103 = math.tanh %102 : vector<7x256xbf16>
    %104 = arith.extf %103 : vector<7x256xbf16> to vector<7x256xf32>
    %105 = arith.addf %98, %104 : vector<7x256xf32>
    %c14 = arith.constant 14 : index
    %106 = memref.load %arg3[%c14] : memref<15xf32, #tpu.memory_space<smem>>
    %107 = vector.broadcast %106 : f32 to vector<7x256xf32>
    %108 = arith.subf %8, %107 : vector<7x256xf32>
    %109 = arith.truncf %108 : vector<7x256xf32> to vector<7x256xbf16>
    %110 = math.tanh %109 : vector<7x256xbf16>
    %111 = arith.extf %110 : vector<7x256xbf16> to vector<7x256xf32>
    %112 = arith.addf %105, %111 : vector<7x256xf32>
    %c2_6 = arith.constant 2 : index
    %113 = memref.load %arg2[%c2_6] : memref<4xf32, #tpu.memory_space<smem>>
    %114 = vector.broadcast %113 : f32 to vector<7x256xf32>
    %115 = arith.mulf %112, %114 : vector<7x256xf32>
    %c3_7 = arith.constant 3 : index
    %116 = memref.load %arg2[%c3_7] : memref<4xf32, #tpu.memory_space<smem>>
    %117 = vector.broadcast %116 : f32 to vector<7x256xf32>
    %118 = arith.addf %115, %117 : vector<7x256xf32>
    %c0_8 = arith.constant 0 : index
    %c0_9 = arith.constant 0 : index
    %c0_10 = arith.constant 0 : index
    %c0_11 = arith.constant 0 : index
    %119 = vector.load %arg5[%c0_8, %c0_9, %c0_10, %c0_11] : memref<1x1x7x256xf32, #tpu.memory_space<vmem>>, vector<1x1x7x256xf32>
    %120 = vector.shape_cast %119 : vector<1x1x7x256xf32> to vector<7x256xf32>
    %121 = vector.shape_cast %118 : vector<7x256xf32> to vector<1x1x7x256xf32>
    tpu.vector_store %arg5[%c0_8, %c0_9, %c0_10, %c0_11], %121 {strides = array<i32>} : memref<1x1x7x256xf32, #tpu.memory_space<vmem>>, vector<1x1x7x256xf32>,
    return
  }
  func.func @transform_0(%arg0: i32, %arg1: i32) -> i32 {
    %c0_i32 = arith.constant 0 : i32
    %c0_i32_0 = arith.constant 0 : i32
    return %c0_i32 : i32
  }
  func.func @transform_1(%arg0: i32, %arg1: i32) -> i32 {
    %c0_i32 = arith.constant 0 : i32
    %c0_i32_0 = arith.constant 0 : i32
    return %c0_i32 : i32
  }
  func.func @transform_2(%arg0: i32, %arg1: i32) -> (i32, i32, i32, i32) {
    %c0_i32 = arith.constant 0 : i32
    %c0_i32_0 = arith.constant 0 : i32
    %c0_i32_1 = arith.constant 0 : i32
    return %arg0, %arg1, %c0_i32, %c0_i32_0 : i32, i32, i32, i32
  }
  func.func @transform_3(%arg0: i32, %arg1: i32) -> (i32, i32, i32, i32) {
    %c0_i32 = arith.constant 0 : i32
    %c0_i32_0 = arith.constant 0 : i32
    %c0_i32_1 = arith.constant 0 : i32
    return %arg0, %arg1, %c0_i32, %c0_i32_0 : i32, i32, i32, i32
  }
}

</mosaic_0001>

<llo_original>
// kernel: resnet_forward.3
$region0: #{resnet_forward.3}
  #allocation0 [shape = 'u32[]', space=smem, size = 0x4, offset = 0x4, fixed_abs, tag = 'smem constant byte address 0x4 - core index']
  #allocation1 [shape = 'u32[144,128]{1,0:T(1,128)}', space=vmem, size = 0x12000, scoped, tag = 'internal scratch']
  %s0 = inlined_call_operand.vmem [shape: f32[4], index: 0, kind: input, shape index: {}]
  %s1 = inlined_call_operand.vmem [shape: f32[15], index: 1, kind: input, shape index: {}]
  %s2 = inlined_call_operand.vmem [shape: bf16[2,3,7,256], index: 2, kind: input, shape index: {}]
  %s3 = inlined_call_operand.vmem [shape: f32[2,3,7,256], index: 3, kind: output, shape index: {}]
  %s4 = sld [smem:[#allocation0]]
  $region53: #{resnet_forward.3} parent=0
    _
  %s6 = ssub.s32 1, %s4
  %s7 = scalar_select 0, %s6, %s4
  $region1: #{resnet_forward.3} parent=0
    #allocation2 [shape = 'u8[512]{0}', space=smem, size = 0x200, scoped, tag = 'input window, operand 0, single buffered']
    #allocation3 [shape = 's32[2]{0}', space=sflag, size = 0x8, scoped, tag = 'scoped memory for resnet_forward.3']
    #allocation4 [shape = 'u8[512]{0}', space=smem, size = 0x200, scoped, tag = 'input window, operand 1, single buffered']
    #allocation5 [shape = 's32[1]{0}', space=sflag, size = 0x4, scoped, tag = 'scoped memory for resnet_forward.3']
    %8 = vsyncpa [#allocation3], 0
    %9 = vsyncpa [#allocation5], 0
    loop: start=0, step=1, limit=8
    $region2: #{resnet_forward.3} parent=1 // loop_pre_header
      _
    $region3: #{resnet_forward.3} parent=1 // loop_header
      %s11 = sphi 0, %s15
      %p12 = scmp.ge.s32.totalorder %s11, 8
      %s18 = sphi 0, %s30
      %s19 = sphi 0, %s26
      %s20 = sphi 0, %s18
      %s21 = sphi 0, %s19
      %s22 = sphi 0, %s20
      %s23 = sphi 0, %s21
      %s31 = sphi 0, %s31
      %s33 = sphi 0, %s31
      %s34 = sphi 0, %s33
      %s48 = sphi 0, %s34
      %s52 = sphi 0, %s52
      %s54 = sphi 0, %s52
      %s55 = sphi 0, %s54
      %s69 = sphi 0, %s55
      %s77 = sphi 0, %s79
      %s80 = sphi 0, %s77
      %s81 = sphi 0, %s80
      %s97 = sphi 0, %s81
      %s105 = sphi 0, %s107
      %s108 = sphi 0, %s105
      %s109 = sphi 0, %s108
      %s125 = sphi 0, %s109
    $region4: #{resnet_forward.3} parent=1 // loop_header_branch
      %14 = sbr.rel (%p12) target = $region8
    $region5: #{resnet_forward.3} parent=1 // loop_body
      %s16 = ssub.s32 %s11, 1
      %s17 = ssub.s32 %s11, 2
      %s24 = sadd.s32 1, %s19
      %p25 = scmp.ge.s32.totalorder %s24, 3
      %s26 = scalar_select %p25, 0, %s24
      %s27 = sadd.s32 1, %s18
      %s28 = scalar_select %p25, %s27, %s18
      %p29 = scmp.ge.s32.totalorder %s28, 2
      %s30 = scalar_select %p29, 0, %s28
      %s32 = sadd.s32 %s31, 1
      %p35 = scmp.eq.s32.totalorder %s11, 5
      %p36 = scmp.ne.s32.totalorder %s31, %s33
      %p37 = scmp.eq.s32.totalorder %s11, 0
      %p38 = por %p36, %p37
      %p39 = scmp.ne.s32.totalorder %s31, %s33
      %p40 = scmp.eq.s32.totalorder %s16, 5
      %p41 = por %p39, %p40
      %p42 = scmp.ne.s32.totalorder %s33, %s34
      %p43 = scmp.eq.s32.totalorder %s16, 0
      %p44 = por %p42, %p43
      %p45 = scmp.ne.s32.totalorder %s33, %s34
      %p46 = scmp.eq.s32.totalorder %s17, 5
      %p47 = por %p45, %p46
      %p49 = scmp.ne.s32.totalorder %s34, %s48
      %p50 = scmp.eq.s32.totalorder %s17, 0
      %p51 = por %p49, %p50
      %s53 = sadd.s32 %s52, 1
      %p56 = scmp.eq.s32.totalorder %s11, 5
      %p57 = scmp.ne.s32.totalorder %s52, %s54
      %p58 = scmp.eq.s32.totalorder %s11, 0
      %p59 = por %p57, %p58
      %p60 = scmp.ne.s32.totalorder %s52, %s54
      %p61 = scmp.eq.s32.totalorder %s16, 5
      %p62 = por %p60, %p61
      %p63 = scmp.ne.s32.totalorder %s54, %s55
      %p64 = scmp.eq.s32.totalorder %s16, 0
      %p65 = por %p63, %p64
      %p66 = scmp.ne.s32.totalorder %s54, %s55
      %p67 = scmp.eq.s32.totalorder %s17, 5
      %p68 = por %p66, %p67
      %p70 = scmp.ne.s32.totalorder %s55, %s69
      %p71 = scmp.eq.s32.totalorder %s17, 0
      %p72 = por %p70, %p71
      %s73 = ssub.s32 %s18, %s30
      %s74 = ssub.s32 %s19, %s26
      %s75 = sor.u32 %s73, %s74
      %p76 = scmp.eq.s32.totalorder %s75, 0
      %s78 = sadd.s32 %s77, 1
      %s79 = scalar_select %p76, %s77, %s78
      %p82 = pneg %p76
      %p83 = scmp.eq.s32.totalorder %s11, 5
      %p84 = por %p82, %p83
      %p85 = scmp.ne.s32.totalorder %s77, %s80
      %p86 = scmp.eq.s32.totalorder %s11, 0
      %p87 = por %p85, %p86
      %p88 = scmp.ne.s32.totalorder %s77, %s80
      %p89 = scmp.eq.s32.totalorder %s16, 5
      %p90 = por %p88, %p89
      %p91 = scmp.ne.s32.totalorder %s80, %s81
      %p92 = scmp.eq.s32.totalorder %s16, 0
      %p93 = por %p91, %p92
      %p94 = scmp.ne.s32.totalorder %s80, %s81
      %p95 = scmp.eq.s32.totalorder %s17, 5
      %p96 = por %p94, %p95
      %p98 = scmp.ne.s32.totalorder %s81, %s97
      %p99 = scmp.eq.s32.totalorder %s17, 0
      %p100 = por %p98, %p99
      %s101 = ssub.s32 %s18, %s30
      %s102 = ssub.s32 %s19, %s26
      %s103 = sor.u32 %s101, %s102
      %p104 = scmp.eq.s32.totalorder %s103, 0
      %s106 = sadd.s32 %s105, 1
      %s107 = scalar_select %p104, %s105, %s106
      %p110 = pneg %p104
      %p111 = scmp.eq.s32.totalorder %s11, 5
      %p112 = por %p110, %p111
      %p113 = scmp.ne.s32.totalorder %s105, %s108
      %p114 = scmp.eq.s32.totalorder %s11, 0
      %p115 = por %p113, %p114
      %p116 = scmp.ne.s32.totalorder %s105, %s108
      %p117 = scmp.eq.s32.totalorder %s16, 5
      %p118 = por %p116, %p117
      %p119 = scmp.ne.s32.totalorder %s108, %s109
      %p120 = scmp.eq.s32.totalorder %s16, 0
      %p121 = por %p119, %p120
      %p122 = scmp.ne.s32.totalorder %s108, %s109
      %p123 = scmp.eq.s32.totalorder %s17, 5
      %p124 = por %p122, %p123
      %p126 = scmp.ne.s32.totalorder %s109, %s125
      %p127 = scmp.eq.s32.totalorder %s17, 0
      %p128 = por %p126, %p127
      %p129 = scmp.le.s32.totalorder 1, %s11
      %p130 = scmp.lt.s32.totalorder %s11, 7
      %p131 = pnand %p129, %p130
      %p132 = pneg %p131
      // Predicated region
      $region9: #{resnet_forward.3} parent=5 // pred_check
        _
      $region10: #{resnet_forward.3} parent=5 // pred_check_branch
        %134 = sbr.rel (%p131) target = $region12
      $region11: #{resnet_forward.3} parent=5 // pred_region
        %s135 = ssub.s32 %s11, 1
        // Predicated region
        $region13: #{resnet_forward.3} parent=11 // pred_check
          %p136 = pneg %p44
        $region14: #{resnet_forward.3} parent=11 // pred_check_branch
          %138 = sbr.rel (%p136) target = $region16
        $region15: #{resnet_forward.3} parent=11 // pred_region
          %s140 = ssub.s32 16, 16
          %141 = vsyncadd [#allocation3], %s140
          %s143 = sshll.u32 %s0, 4
          %s144 = int_to_ptr.vmem [resolvable:$true] %s143
          %146 = dma.vmem_to_smem %s144, 16, [#allocation2], [#allocation3]
        $region16: #{resnet_forward.3} parent=11 // pred_fallthru
          _
        // Predicated region
        $region17: #{resnet_forward.3} parent=11 // pred_check
          %p147 = pneg %p65
        $region18: #{resnet_forward.3} parent=11 // pred_check_branch
          %149 = sbr.rel (%p147) target = $region20
        $region19: #{resnet_forward.3} parent=11 // pred_region
          %s151 = ssub.s32 16, 16
          %152 = vsyncadd [#allocation5], %s151
          %s154 = sshll.u32 %s1, 4
          %s155 = int_to_ptr.vmem [resolvable:$true] %s154
          %157 = dma.vmem_to_smem %s155, 16, [#allocation4], [#allocation5]
        $region20: #{resnet_forward.3} parent=11 // pred_fallthru
          _
      $region12: #{resnet_forward.3} parent=5 // pred_fallthru
        _
      %p158 = scmp.lt.s32.totalorder %s11, 6
      // Predicated region
      $region21: #{resnet_forward.3} parent=5 // pred_check
        %p159 = pneg %p158
      $region22: #{resnet_forward.3} parent=5 // pred_check_branch
        %161 = sbr.rel (%p159) target = $region24
      $region23: #{resnet_forward.3} parent=5 // pred_region
        // Predicated region
        $region25: #{resnet_forward.3} parent=23 // pred_check
          %p162 = pneg %p87
        $region26: #{resnet_forward.3} parent=23 // pred_check_branch
          %164 = sbr.rel (%p162) target = $region28
        $region27: #{resnet_forward.3} parent=23 // pred_region
          %p165 = scmp.lt.s32.totalorder %s18, 1
          %s166 = scalar_select %p165, %s18, 1
          %p167 = scmp.lt.s32.totalorder %s19, 2
          %s168 = scalar_select %p167, %s19, 2
          %s169 = smul.addr %s168, 2
          %s170 = smul.addr %s166, 6
          %s171 = sadd.s32 %s169, %s170
          %s172 = smul.addr %s171, 4
          %s173 = scalar_lea.vmem %s2, %s172
        $region28: #{resnet_forward.3} parent=23 // pred_fallthru
          _
      $region24: #{resnet_forward.3} parent=5 // pred_fallthru
        _
      %p174 = scmp.le.s32.totalorder 1, %s11
      %p175 = scmp.lt.s32.totalorder %s11, 7
      %p176 = pnand %p174, %p175
      %p177 = pneg %p176
      // Predicated region
      $region29: #{resnet_forward.3} parent=5 // pred_check
        _
      $region30: #{resnet_forward.3} parent=5 // pred_check_branch
        %179 = sbr.rel (%p176) target = $region32
      $region31: #{resnet_forward.3} parent=5 // pred_region
        %s180 = ssub.s32 %s11, 1
        // Predicated region
        $region33: #{resnet_forward.3} parent=31 // pred_check
          %p181 = pneg %p44
        $region34: #{resnet_forward.3} parent=31 // pred_check_branch
          %183 = sbr.rel (%p181) target = $region36
        $region35: #{resnet_forward.3} parent=31 // pred_region
          %184 = dma.done [#allocation3], 16
        $region36: #{resnet_forward.3} parent=31 // pred_fallthru
          _
        // Predicated region
        $region37: #{resnet_forward.3} parent=31 // pred_check
          %p185 = pneg %p65
        $region38: #{resnet_forward.3} parent=31 // pred_check_branch
          %187 = sbr.rel (%p185) target = $region40
        $region39: #{resnet_forward.3} parent=31 // pred_region
          %188 = dma.done [#allocation5], 16
        $region40: #{resnet_forward.3} parent=31 // pred_fallthru
          _
        %189 = sfence
        %p190 = pneg %p44
        %p191 = pneg %p41
        %p192 = pneg %p65
        %p193 = pneg %p62
        %p194 = scmp.lt.s32.totalorder %s20, 1
        %s195 = scalar_select %p194, %s20, 1
        %p196 = scmp.lt.s32.totalorder %s21, 2
        %s197 = scalar_select %p196, %s21, 2
        %s198 = smul.addr %s197, 2
        %s199 = smul.addr %s195, 6
        %s200 = sadd.s32 %s198, %s199
        %s201 = smul.addr %s200, 4
        %s202 = scalar_lea.vmem %s2, %s201
        %p203 = pneg %p93
        %p204 = pneg %p90
        %p205 = pneg %p121
        %p206 = pneg %p118
        %p207 = scmp.lt.s32.totalorder %s20, 1
        %s208 = scalar_select %p207, %s20, 1
        %p209 = scmp.lt.s32.totalorder %s21, 2
        %s210 = scalar_select %p209, %s21, 2
        %s211 = smul.addr %s210, 2
        %s212 = smul.addr %s208, 6
        %s213 = sadd.s32 %s211, %s212
        %s214 = smul.addr %s213, 8
        %s215 = scalar_lea.vmem %s3, %s214
        %p216 = scmp.lt.s32.totalorder %s20, 1
        %s217 = scalar_select %p216, %s20, 1
        %p218 = scmp.lt.s32.totalorder %s21, 2
        %s219 = scalar_select %p218, %s21, 2
        %s220 = smul.addr %s219, 2
        %s221 = smul.addr %s217, 6
        %s222 = sadd.s32 %s220, %s221
        %s223 = smul.addr %s222, 4
        %s224 = scalar_lea.vmem %s2, %s223
        %p225 = scmp.lt.s32.totalorder %s20, 1
        %s226 = scalar_select %p225, %s20, 1
        %p227 = scmp.lt.s32.totalorder %s21, 2
        %s228 = scalar_select %p227, %s21, 2
        %s229 = smul.addr %s228, 2
        %s230 = smul.addr %s226, 6
        %s231 = sadd.s32 %s229, %s230
        %s232 = smul.addr %s231, 8
        %s233 = scalar_lea.vmem %s3, %s232
        %v234 = vld [vmem:[%s224] sm:$0xff]
        %v235 = vunpack.c.l.bf16 %v234
        %v236 = vunpack.c.h.bf16 %v234
        %s237 = sld [smem:[#allocation2]]
        %v238 = vstv %s237
        %v239 = vsub.f32 %v235, %v238
        %v240 = vsub.f32 %v236, %v238
        %s241 = sld [smem:[#allocation2 + $0x1]]
        %v242 = vstv %s241
        %v243 = vmul.f32 %v239, %v242
        %v244 = vmul.f32 %v240, %v242
        %s245 = sld [smem:[#allocation4]]
        %v246 = vstv %s245
        %v247 = vsub.f32 %v243, %v246
        %v248 = vsub.f32 %v244, %v246
        %v249 = vpack.c.bf16 %v247, %v247
        %v250 = vpack.c.bf16 %v248, %v248
        %v251 = vtanh.bf16.pop %v249
        %v252 = vtanh.bf16.pop %v250
        %v253 = vunpack.c.l.bf16 %v251
        %v254 = vunpack.c.l.bf16 %v252
        %s255 = sld [smem:[#allocation4 + $0x1]]
        %v256 = vstv %s255
        %v257 = vsub.f32 %v243, %v256
        %v258 = vsub.f32 %v244, %v256
        %v259 = vpack.c.bf16 %v257, %v257
        %v260 = vpack.c.bf16 %v258, %v258
        %v261 = vtanh.bf16.pop %v259
        %v262 = vtanh.bf16.pop %v260
        %v263 = vunpack.c.l.bf16 %v261
        %v264 = vunpack.c.l.bf16 %v262
        %v265 = vadd.f32 %v253, %v263
        %v266 = vadd.f32 %v254, %v264
        %s267 = sld [smem:[#allocation4 + $0x2]]
        %v268 = vstv %s267
        %v269 = vsub.f32 %v243, %v268
        %v270 = vsub.f32 %v244, %v268
        %v271 = vpack.c.bf16 %v269, %v269
        %v272 = vpack.c.bf16 %v270, %v270
        %v273 = vtanh.bf16.pop %v271
        %v274 = vtanh.bf16.pop %v272
        %v275 = vunpack.c.l.bf16 %v273
        %v276 = vunpack.c.l.bf16 %v274
        %v277 = vadd.f32 %v265, %v275
        %v278 = vadd.f32 %v266, %v276
        %s279 = sld [smem:[#allocation4 + $0x3]]
        %v280 = vstv %s279
        %v281 = vsub.f32 %v243, %v280
        %v282 = vsub.f32 %v244, %v280
        %v283 = vpack.c.bf16 %v281, %v281
        %v284 = vpack.c.bf16 %v282, %v282
        %v285 = vtanh.bf16.pop %v283
        %v286 = vtanh.bf16.pop %v284
        %v287 = vunpack.c.l.bf16 %v285
        %v288 = vunpack.c.l.bf16 %v286
        %v289 = vadd.f32 %v277, %v287
        %v290 = vadd.f32 %v278, %v288
        %s291 = sld [smem:[#allocation4 + $0x4]]
        %v292 = vstv %s291
        %v293 = vsub.f32 %v243, %v292
        %v294 = vsub.f32 %v244, %v292
        %v295 = vpack.c.bf16 %v293, %v293
        %v296 = vpack.c.bf16 %v294, %v294
        %v297 = vtanh.bf16.pop %v295
        %v298 = vtanh.bf16.pop %v296
        %v299 = vunpack.c.l.bf16 %v297
        %v300 = vunpack.c.l.bf16 %v298
        %v301 = vadd.f32 %v289, %v299
        %v302 = vadd.f32 %v290, %v300
        %s303 = sld [smem:[#allocation4 + $0x5]]
        %v304 = vstv %s303
        %v305 = vsub.f32 %v243, %v304
        %v306 = vsub.f32 %v244, %v304
        %v307 = vpack.c.bf16 %v305, %v305
        %v308 = vpack.c.bf16 %v306, %v306
        %v309 = vtanh.bf16.pop %v307
        %v310 = vtanh.bf16.pop %v308
        %v311 = vunpack.c.l.bf16 %v309
        %v312 = vunpack.c.l.bf16 %v310
        %v313 = vadd.f32 %v301, %v311
        %v314 = vadd.f32 %v302, %v312
        %s315 = sld [smem:[#allocation4 + $0x6]]
        %v316 = vstv %s315
        %v317 = vsub.f32 %v243, %v316
        %v318 = vsub.f32 %v244, %v316
        %v319 = vpack.c.bf16 %v317, %v317
        %v320 = vpack.c.bf16 %v318, %v318
        %v321 = vtanh.bf16.pop %v319
        %v322 = vtanh.bf16.pop %v320
        %v323 = vunpack.c.l.bf16 %v321
        %v324 = vunpack.c.l.bf16 %v322
        %v325 = vadd.f32 %v313, %v323
        %v326 = vadd.f32 %v314, %v324
        %s327 = sld [smem:[#allocation4 + $0x7]]
        %v328 = vstv %s327
        %v329 = vsub.f32 %v243, %v328
        %v330 = vsub.f32 %v244, %v328
        %v331 = vpack.c.bf16 %v329, %v329
        %v332 = vpack.c.bf16 %v330, %v330
        %v333 = vtanh.bf16.pop %v331
        %v334 = vtanh.bf16.pop %v332
        %v335 = vunpack.c.l.bf16 %v333
        %v336 = vunpack.c.l.bf16 %v334
        %v337 = vadd.f32 %v325, %v335
        %v338 = vadd.f32 %v326, %v336
        %s339 = sld [smem:[#allocation4 + $0x8]]
        %v340 = vstv %s339
        %v341 = vsub.f32 %v243, %v340
        %v342 = vsub.f32 %v244, %v340
        %v343 = vpack.c.bf16 %v341, %v341
        %v344 = vpack.c.bf16 %v342, %v342
        %v345 = vtanh.bf16.pop %v343
        %v346 = vtanh.bf16.pop %v344
        %v347 = vunpack.c.l.bf16 %v345
        %v348 = vunpack.c.l.bf16 %v346
        %v349 = vadd.f32 %v337, %v347
        %v350 = vadd.f32 %v338, %v348
        %s351 = sld [smem:[#allocation4 + $0x9]]
        %v352 = vstv %s351
        %v353 = vsub.f32 %v243, %v352
        %v354 = vsub.f32 %v244, %v352
        %v355 = vpack.c.bf16 %v353, %v353
        %v356 = vpack.c.bf16 %v354, %v354
        %v357 = vtanh.bf16.pop %v355
        %v358 = vtanh.bf16.pop %v356
        %v359 = vunpack.c.l.bf16 %v357
        %v360 = vunpack.c.l.bf16 %v358
        %v361 = vadd.f32 %v349, %v359
        %v362 = vadd.f32 %v350, %v360
        %s363 = sld [smem:[#allocation4 + $0xa]]
        %v364 = vstv %s363
        %v365 = vsub.f32 %v243, %v364
        %v366 = vsub.f32 %v244, %v364
        %v367 = vpack.c.bf16 %v365, %v365
        %v368 = vpack.c.bf16 %v366, %v366
        %v369 = vtanh.bf16.pop %v367
        %v370 = vtanh.bf16.pop %v368
        %v371 = vunpack.c.l.bf16 %v369
        %v372 = vunpack.c.l.bf16 %v370
        %v373 = vadd.f32 %v361, %v371
        %v374 = vadd.f32 %v362, %v372
        %s375 = sld [smem:[#allocation4 + $0xb]]
        %v376 = vstv %s375
        %v377 = vsub.f32 %v243, %v376
        %v378 = vsub.f32 %v244, %v376
        %v379 = vpack.c.bf16 %v377, %v377
        %v380 = vpack.c.bf16 %v378, %v378
        %v381 = vtanh.bf16.pop %v379
        %v382 = vtanh.bf16.pop %v380
        %v383 = vunpack.c.l.bf16 %v381
        %v384 = vunpack.c.l.bf16 %v382
        %v385 = vadd.f32 %v373, %v383
        %v386 = vadd.f32 %v374, %v384
        %s387 = sld [smem:[#allocation4 + $0xc]]
        %v388 = vstv %s387
        %v389 = vsub.f32 %v243, %v388
        %v390 = vsub.f32 %v244, %v388
        %v391 = vpack.c.bf16 %v389, %v389
        %v392 = vpack.c.bf16 %v390, %v390
        %v393 = vtanh.bf16.pop %v391
        %v394 = vtanh.bf16.pop %v392
        %v395 = vunpack.c.l.bf16 %v393
        %v396 = vunpack.c.l.bf16 %v394
        %v397 = vadd.f32 %v385, %v395
        %v398 = vadd.f32 %v386, %v396
        %s399 = sld [smem:[#allocation4 + $0xd]]
        %v400 = vstv %s399
        %v401 = vsub.f32 %v243, %v400
        %v402 = vsub.f32 %v244, %v400
        %v403 = vpack.c.bf16 %v401, %v401
        %v404 = vpack.c.bf16 %v402, %v402
        %v405 = vtanh.bf16.pop %v403
        %v406 = vtanh.bf16.pop %v404
        %v407 = vunpack.c.l.bf16 %v405
        %v408 = vunpack.c.l.bf16 %v406
        %v409 = vadd.f32 %v397, %v407
        %v410 = vadd.f32 %v398, %v408
        %s411 = sld [smem:[#allocation4 + $0xe]]
        %v412 = vstv %s411
        %v413 = vsub.f32 %v243, %v412
        %v414 = vsub.f32 %v244, %v412
        %v415 = vpack.c.bf16 %v413, %v413
        %v416 = vpack.c.bf16 %v414, %v414
        %v417 = vtanh.bf16.pop %v415
        %v418 = vtanh.bf16.pop %v416
        %v419 = vunpack.c.l.bf16 %v417
        %v420 = vunpack.c.l.bf16 %v418
        %v421 = vadd.f32 %v409, %v419
        %v422 = vadd.f32 %v410, %v420
        %s423 = sld [smem:[#allocation2 + $0x2]]
        %v424 = vstv %s423
        %v425 = vmul.f32 %v421, %v424
        %v426 = vmul.f32 %v422, %v424
        %s427 = sld [smem:[#allocation2 + $0x3]]
        %v428 = vstv %s427
        %v429 = vadd.f32 %v425, %v428
        %v430 = vadd.f32 %v426, %v428
        %431 = vst [vmem:[%s233] sm:$0x7f] %v429
        %432 = vst [vmem:[%s233 + $0x8] sm:$0x7f] %v430
        %p433 = scmp.lt.s32.totalorder %s20, 1
        %s434 = scalar_select %p433, %s20, 1
        %p435 = scmp.lt.s32.totalorder %s21, 2
        %s436 = scalar_select %p435, %s21, 2
        %s437 = smul.addr %s436, 2
        %s438 = smul.addr %s434, 6
        %s439 = sadd.s32 %s437, %s438
        %s440 = smul.addr %s439, 8
        %s441 = scalar_lea.vmem %s3, %s440
        // Predicated region
        $region41: #{resnet_forward.3} parent=31 // pred_check
          %p442 = pneg %p118
        $region42: #{resnet_forward.3} parent=31 // pred_check_branch
          %444 = sbr.rel (%p442) target = $region44
        $region43: #{resnet_forward.3} parent=31 // pred_region
          _
        $region44: #{resnet_forward.3} parent=31 // pred_fallthru
          _
      $region32: #{resnet_forward.3} parent=5 // pred_fallthru
        _
      %p445 = scmp.le.s32.totalorder 2, %s11
      // Predicated region
      $region45: #{resnet_forward.3} parent=5 // pred_check
        %p446 = pneg %p445
      $region46: #{resnet_forward.3} parent=5 // pred_check_branch
        %448 = sbr.rel (%p446) target = $region48
      $region47: #{resnet_forward.3} parent=5 // pred_region
        %s449 = ssub.s32 %s11, 2
        // Predicated region
        $region49: #{resnet_forward.3} parent=47 // pred_check
          %p450 = pneg %p124
        $region50: #{resnet_forward.3} parent=47 // pred_check_branch
          %452 = sbr.rel (%p450) target = $region52
        $region51: #{resnet_forward.3} parent=47 // pred_region
          %p453 = scmp.lt.s32.totalorder %s22, 1
          %s454 = scalar_select %p453, %s22, 1
          %p455 = scmp.lt.s32.totalorder %s23, 2
          %s456 = scalar_select %p455, %s23, 2
          %s457 = smul.addr %s456, 2
          %s458 = smul.addr %s454, 6
          %s459 = sadd.s32 %s457, %s458
          %s460 = smul.addr %s459, 8
          %s461 = scalar_lea.vmem %s3, %s460
        $region52: #{resnet_forward.3} parent=47 // pred_fallthru
          _
      $region48: #{resnet_forward.3} parent=5 // pred_fallthru
        _
    $region6: #{resnet_forward.3} parent=1 // loop_footer
      %s15 = sadd.s32 1, %s11
    $region7: #{resnet_forward.3} parent=1 // loop_footer_branch
      %10 = sbr.rel target = $region3
    $region8: #{resnet_forward.3} parent=1 // loop_exit
      _
    %462 = vsyncpa [#allocation3], 1
    %s463 = scalar_lea.sflag [#allocation3], 1
    %464 = vsyncpa %s463, 1
    %465 = vsyncpa [#allocation5], 1

// kernel: resnet_forward.2
$region0: #{resnet_forward.2}
  #allocation0 [shape = 'u32[]', space=smem, size = 0x4, offset = 0x4, fixed_abs, tag = 'smem constant byte address 0x4 - core index']
  #allocation1 [shape = 'u32[144,128]{1,0:T(1,128)}', space=vmem, size = 0x12000, scoped, tag = 'internal scratch']
  #allocation2 [shape = 'f32[8,24,128]{2,1,0:T(8,128)}', space=vmem, size = 0x18000, scoped, tag = 'scratch operand']
  %s0 = inlined_call_operand.hbm [shape: f32[2,3,8,16,16], index: 0, kind: input, shape index: {}]
  %s1 = inlined_call_operand.vmem [shape: bf16[2,3,7,16,16], index: 1, kind: output, shape index: {0}]
  %s2 = inlined_call_operand.vmem [shape: f32[2,3,1,1], index: 2, kind: output, shape index: {1}]
  %s3 = inlined_call_operand.vmem [shape: f32[2,3,1,1], index: 3, kind: output, shape index: {2}]
  %4 = xla_tuple %s1, %s2, %s3
  %s5 = sld [smem:[#allocation0]]
  $region57: #{resnet_forward.2} parent=0
    _
  %s7 = ssub.s32 1, %s5
  %s8 = scalar_select 0, %s7, %s5
  $region1: #{resnet_forward.2} parent=0
    #allocation3 [shape = 'u8[131072]{0}', space=vmem, size = 0x20000, scoped, tag = 'input window, operand 0']
    #allocation4 [shape = 's32[2]{0}', space=sflag, size = 0x8, scoped, tag = 'scoped memory for resnet_forward.2']
    %9 = vsyncpa [#allocation4], 0
    %s10 = scalar_lea.sflag [#allocation4], 1
    %11 = vsyncpa %s10, 0
    loop: start=0, step=1, limit=8
    $region2: #{resnet_forward.2} parent=1 // loop_pre_header
      _
    $region3: #{resnet_forward.2} parent=1 // loop_header
      %s13 = sphi 0, %s17
      %p14 = scmp.ge.s32.totalorder %s13, 8
      %s20 = sphi 0, %s32
      %s21 = sphi 0, %s28
      %s22 = sphi 0, %s20
      %s23 = sphi 0, %s21
      %s24 = sphi 0, %s22
      %s25 = sphi 0, %s23
      %s37 = sphi 0, %s39
      %s40 = sphi 0, %s37
      %s41 = sphi 0, %s40
      %s57 = sphi 0, %s41
      %s65 = sphi 0, %s67
      %s68 = sphi 0, %s65
      %s69 = sphi 0, %s68
      %s85 = sphi 0, %s69
      %s93 = sphi 0, %s95
      %s96 = sphi 0, %s93
      %s97 = sphi 0, %s96
      %s113 = sphi 0, %s97
      %s121 = sphi 0, %s123
      %s124 = sphi 0, %s121
      %s125 = sphi 0, %s124
      %s141 = sphi 0, %s125
    $region4: #{resnet_forward.2} parent=1 // loop_header_branch
      %16 = sbr.rel (%p14) target = $region8
    $region5: #{resnet_forward.2} parent=1 // loop_body
      %s18 = ssub.s32 %s13, 1
      %s19 = ssub.s32 %s13, 2
      %s26 = sadd.s32 1, %s21
      %p27 = scmp.ge.s32.totalorder %s26, 3
      %s28 = scalar_select %p27, 0, %s26
      %s29 = sadd.s32 1, %s20
      %s30 = scalar_select %p27, %s29, %s20
      %p31 = scmp.ge.s32.totalorder %s30, 2
      %s32 = scalar_select %p31, 0, %s30
      %s33 = ssub.s32 %s20, %s32
      %s34 = ssub.s32 %s21, %s28
      %s35 = sor.u32 %s33, %s34
      %p36 = scmp.eq.s32.totalorder %s35, 0
      %s38 = sadd.s32 %s37, 1
      %s39 = scalar_select %p36, %s37, %s38
      %p42 = pneg %p36
      %p43 = scmp.eq.s32.totalorder %s13, 5
      %p44 = por %p42, %p43
      %p45 = scmp.ne.s32.totalorder %s37, %s40
      %p46 = scmp.eq.s32.totalorder %s13, 0
      %p47 = por %p45, %p46
      %p48 = scmp.ne.s32.totalorder %s37, %s40
      %p49 = scmp.eq.s32.totalorder %s18, 5
      %p50 = por %p48, %p49
      %p51 = scmp.ne.s32.totalorder %s40, %s41
      %p52 = scmp.eq.s32.totalorder %s18, 0
      %p53 = por %p51, %p52
      %p54 = scmp.ne.s32.totalorder %s40, %s41
      %p55 = scmp.eq.s32.totalorder %s19, 5
      %p56 = por %p54, %p55
      %p58 = scmp.ne.s32.totalorder %s41, %s57
      %p59 = scmp.eq.s32.totalorder %s19, 0
      %p60 = por %p58, %p59
      %s61 = ssub.s32 %s20, %s32
      %s62 = ssub.s32 %s21, %s28
      %s63 = sor.u32 %s61, %s62
      %p64 = scmp.eq.s32.totalorder %s63, 0
      %s66 = sadd.s32 %s65, 1
      %s67 = scalar_select %p64, %s65, %s66
      %p70 = pneg %p64
      %p71 = scmp.eq.s32.totalorder %s13, 5
      %p72 = por %p70, %p71
      %p73 = scmp.ne.s32.totalorder %s65, %s68
      %p74 = scmp.eq.s32.totalorder %s13, 0
      %p75 = por %p73, %p74
      %p76 = scmp.ne.s32.totalorder %s65, %s68
      %p77 = scmp.eq.s32.totalorder %s18, 5
      %p78 = por %p76, %p77
      %p79 = scmp.ne.s32.totalorder %s68, %s69
      %p80 = scmp.eq.s32.totalorder %s18, 0
      %p81 = por %p79, %p80
      %p82 = scmp.ne.s32.totalorder %s68, %s69
      %p83 = scmp.eq.s32.totalorder %s19, 5
      %p84 = por %p82, %p83
      %p86 = scmp.ne.s32.totalorder %s69, %s85
      %p87 = scmp.eq.s32.totalorder %s19, 0
      %p88 = por %p86, %p87
      %s89 = ssub.s32 %s20, %s32
      %s90 = ssub.s32 %s21, %s28
      %s91 = sor.u32 %s89, %s90
      %p92 = scmp.eq.s32.totalorder %s91, 0
      %s94 = sadd.s32 %s93, 1
      %s95 = scalar_select %p92, %s93, %s94
      %p98 = pneg %p92
      %p99 = scmp.eq.s32.totalorder %s13, 5
      %p100 = por %p98, %p99
      %p101 = scmp.ne.s32.totalorder %s93, %s96
      %p102 = scmp.eq.s32.totalorder %s13, 0
      %p103 = por %p101, %p102
      %p104 = scmp.ne.s32.totalorder %s93, %s96
      %p105 = scmp.eq.s32.totalorder %s18, 5
      %p106 = por %p104, %p105
      %p107 = scmp.ne.s32.totalorder %s96, %s97
      %p108 = scmp.eq.s32.totalorder %s18, 0
      %p109 = por %p107, %p108
      %p110 = scmp.ne.s32.totalorder %s96, %s97
      %p111 = scmp.eq.s32.totalorder %s19, 5
      %p112 = por %p110, %p111
      %p114 = scmp.ne.s32.totalorder %s97, %s113
      %p115 = scmp.eq.s32.totalorder %s19, 0
      %p116 = por %p114, %p115
      %s117 = ssub.s32 %s20, %s32
      %s118 = ssub.s32 %s21, %s28
      %s119 = sor.u32 %s117, %s118
      %p120 = scmp.eq.s32.totalorder %s119, 0
      %s122 = sadd.s32 %s121, 1
      %s123 = scalar_select %p120, %s121, %s122
      %p126 = pneg %p120
      %p127 = scmp.eq.s32.totalorder %s13, 5
      %p128 = por %p126, %p127
      %p129 = scmp.ne.s32.totalorder %s121, %s124
      %p130 = scmp.eq.s32.totalorder %s13, 0
      %p131 = por %p129, %p130
      %p132 = scmp.ne.s32.totalorder %s121, %s124
      %p133 = scmp.eq.s32.totalorder %s18, 5
      %p134 = por %p132, %p133
      %p135 = scmp.ne.s32.totalorder %s124, %s125
      %p136 = scmp.eq.s32.totalorder %s18, 0
      %p137 = por %p135, %p136
      %p138 = scmp.ne.s32.totalorder %s124, %s125
      %p139 = scmp.eq.s32.totalorder %s19, 5
      %p140 = por %p138, %p139
      %p142 = scmp.ne.s32.totalorder %s125, %s141
      %p143 = scmp.eq.s32.totalorder %s19, 0
      %p144 = por %p142, %p143
      %p145 = scmp.le.s32.totalorder 1, %s13
      %p146 = scmp.lt.s32.totalorder %s13, 7
      %p147 = pnand %p145, %p146
      %p148 = pneg %p147
      // Predicated region
      $region9: #{resnet_forward.2} parent=5 // pred_check
        _
      $region10: #{resnet_forward.2} parent=5 // pred_check_branch
        %150 = sbr.rel (%p147) target = $region12
      $region11: #{resnet_forward.2} parent=5 // pred_region
        %s151 = ssub.s32 %s13, 1
      $region12: #{resnet_forward.2} parent=5 // pred_fallthru
        _
      %p152 = scmp.lt.s32.totalorder %s13, 6
      // Predicated region
      $region13: #{resnet_forward.2} parent=5 // pred_check
        %p153 = pneg %p152
      $region14: #{resnet_forward.2} parent=5 // pred_check_branch
        %155 = sbr.rel (%p153) target = $region16
      $region15: #{resnet_forward.2} parent=5 // pred_region
        // Predicated region
        $region17: #{resnet_forward.2} parent=15 // pred_check
          %p156 = pneg %p47
        $region18: #{resnet_forward.2} parent=15 // pred_check_branch
          %158 = sbr.rel (%p156) target = $region20
        $region19: #{resnet_forward.2} parent=15 // pred_region
          %s159 = sand.u32 %s37, 1
          %s160 = scalar_lea.sflag [#allocation4], %s159
          %s161 = sand.u32 %s37, 1
          %s162 = smul.addr %s161, 128
          %s163 = scalar_lea.vmem [#allocation3], %s162
          %s165 = ssub.s32 2048, 2048
          %166 = vsyncadd %s160, %s165
          %s167 = smul.addr %s21, 16
          %s168 = smul.addr %s20, 48
          %s169 = sadd.s32 %s167, %s168
          %s170 = smul.addr %s169, 128
          %s171 = scalar_lea.hbm %s0, %s170
          %s172 = sshll.u32 %s163, 4
          %s173 = int_to_ptr.vmem [resolvable:$true] %s172
          %178 = dma.hbm_to_vmem [thread:$0]  %s171, 2048, %s173, %s160, 128, 128, 8
        $region20: #{resnet_forward.2} parent=15 // pred_fallthru
          _
      $region16: #{resnet_forward.2} parent=5 // pred_fallthru
        _
      %p179 = scmp.le.s32.totalorder 1, %s13
      %p180 = scmp.lt.s32.totalorder %s13, 7
      %p181 = pnand %p179, %p180
      %p182 = pneg %p181
      // Predicated region
      $region21: #{resnet_forward.2} parent=5 // pred_check
        _
      $region22: #{resnet_forward.2} parent=5 // pred_check_branch
        %184 = sbr.rel (%p181) target = $region24
      $region23: #{resnet_forward.2} parent=5 // pred_region
        %s185 = ssub.s32 %s13, 1
        %s186 = sand.u32 %s40, 1
        %s187 = scalar_lea.sflag [#allocation4], %s186
        %s188 = sand.u32 %s40, 1
        %s189 = smul.addr %s188, 128
        %s190 = scalar_lea.vmem [#allocation3], %s189
        // Predicated region
        $region25: #{resnet_forward.2} parent=23 // pred_check
          %p191 = pneg %p53
        $region26: #{resnet_forward.2} parent=23 // pred_check_branch
          %193 = sbr.rel (%p191) target = $region28
        $region27: #{resnet_forward.2} parent=23 // pred_region
          %194 = dma.done %s187, 2048
        $region28: #{resnet_forward.2} parent=23 // pred_fallthru
          _
        %s195 = sand.u32 %s40, 1
        %s196 = scalar_lea.sflag [#allocation4], %s195
        %s197 = sand.u32 %s40, 1
        %s198 = smul.addr %s197, 128
        %s199 = scalar_lea.vmem [#allocation3], %s198
        %p200 = pneg %p53
        %p201 = pneg %p50
        %p202 = pneg %p81
        %p203 = pneg %p78
        %p204 = scmp.lt.s32.totalorder %s22, 1
        %s205 = scalar_select %p204, %s22, 1
        %p206 = scmp.lt.s32.totalorder %s23, 2
        %s207 = scalar_select %p206, %s23, 2
        %s208 = smul.addr %s207, 14
        %s209 = smul.addr %s205, 42
        %s210 = sadd.s32 %s208, %s209
        %s211 = smul.addr %s210, 4
        %s212 = scalar_lea.vmem %s1, %s211
        %p213 = pneg %p109
        %p214 = pneg %p106
        %p215 = scmp.lt.s32.totalorder %s22, 1
        %s216 = scalar_select %p215, %s22, 1
        %p217 = scmp.lt.s32.totalorder %s23, 2
        %s218 = scalar_select %p217, %s23, 2
        %s219 = smul.addr %s216, 3
        %s220 = sadd.s32 %s218, %s219
        %s221 = scalar_lea.vmem %s2, %s220
        %p222 = pneg %p137
        %p223 = pneg %p134
        %p224 = scmp.lt.s32.totalorder %s22, 1
        %s225 = scalar_select %p224, %s22, 1
        %p226 = scmp.lt.s32.totalorder %s23, 2
        %s227 = scalar_select %p226, %s23, 2
        %s228 = smul.addr %s225, 3
        %s229 = sadd.s32 %s227, %s228
        %s230 = scalar_lea.vmem %s3, %s229
        %p231 = scmp.lt.s32.totalorder %s22, 1
        %s232 = scalar_select %p231, %s22, 1
        %p233 = scmp.lt.s32.totalorder %s23, 2
        %s234 = scalar_select %p233, %s23, 2
        %s235 = smul.addr %s234, 14
        %s236 = smul.addr %s232, 42
        %s237 = sadd.s32 %s235, %s236
        %s238 = smul.addr %s237, 4
        %s239 = scalar_lea.vmem %s1, %s238
        %p240 = scmp.lt.s32.totalorder %s22, 1
        %s241 = scalar_select %p240, %s22, 1
        %p242 = scmp.lt.s32.totalorder %s23, 2
        %s243 = scalar_select %p242, %s23, 2
        %s244 = smul.addr %s241, 3
        %s245 = sadd.s32 %s243, %s244
        %s246 = scalar_lea.vmem %s2, %s245
        %p247 = scmp.lt.s32.totalorder %s22, 1
        %s248 = scalar_select %p247, %s22, 1
        %p249 = scmp.lt.s32.totalorder %s23, 2
        %s250 = scalar_select %p249, %s23, 2
        %s251 = smul.addr %s248, 3
        %s252 = sadd.s32 %s250, %s251
        %s253 = scalar_lea.vmem %s3, %s252
        %254 = vst [vmem:[#allocation2] sm:$0xff] 0.0
        %255 = vst [vmem:[#allocation2 + $0x8] sm:$0xff] 0.0
        %256 = vst [vmem:[#allocation2 + $0x10] sm:$0xff] 0.0
        %257 = vst [vmem:[#allocation2 + $0x18] sm:$0xff] 0.0
        %258 = vst [vmem:[#allocation2 + $0x20] sm:$0xff] 0.0
        %259 = vst [vmem:[#allocation2 + $0x28] sm:$0xff] 0.0
        %260 = vst [vmem:[#allocation2 + $0x30] sm:$0xff] 0.0
        %261 = vst [vmem:[#allocation2 + $0x38] sm:$0xff] 0.0
        %262 = vst [vmem:[#allocation2 + $0x40] sm:$0xff] 0.0
        %263 = vst [vmem:[#allocation2 + $0x48] sm:$0xff] 0.0
        %264 = vst [vmem:[#allocation2 + $0x50] sm:$0xff] 0.0
        %265 = vst [vmem:[#allocation2 + $0x58] sm:$0xff] 0.0
        %266 = vst [vmem:[#allocation2 + $0x60] sm:$0xff] 0.0
        %267 = vst [vmem:[#allocation2 + $0x68] sm:$0xff] 0.0
        %268 = vst [vmem:[#allocation2 + $0x70] sm:$0xff] 0.0
        %269 = vst [vmem:[#allocation2 + $0x78] sm:$0xff] 0.0
        %270 = vst [vmem:[#allocation2 + $0x80] sm:$0xff] 0.0
        %271 = vst [vmem:[#allocation2 + $0x88] sm:$0xff] 0.0
        %272 = vst [vmem:[#allocation2 + $0x90] sm:$0xff] 0.0
        %273 = vst [vmem:[#allocation2 + $0x98] sm:$0xff] 0.0
        %274 = vst [vmem:[#allocation2 + $0xa0] sm:$0xff] 0.0
        %275 = vst [vmem:[#allocation2 + $0xa8] sm:$0xff] 0.0
        %276 = vst [vmem:[#allocation2 + $0xb0] sm:$0xff] 0.0
        %277 = vst [vmem:[#allocation2 + $0xb8] sm:$0xff] 0.0
        %v278 = vld [vmem:[%s190] sm:$0xff]
        %v279 = vld [vmem:[%s190 + $0x8] sm:$0xff]
        %v280 = vld [vmem:[%s190 + $0x10] sm:$0xff]
        %v281 = vld [vmem:[%s190 + $0x18] sm:$0xff]
        %v282 = vld [vmem:[%s190 + $0x20] sm:$0xff]
        %v283 = vld [vmem:[%s190 + $0x28] sm:$0xff]
        %v284 = vld [vmem:[%s190 + $0x30] sm:$0xff]
        %v285 = vld [vmem:[%s190 + $0x38] sm:$0xff]
        %v286 = vld [vmem:[%s190 + $0x40] sm:$0xff]
        %v287 = vld [vmem:[%s190 + $0x48] sm:$0xff]
        %v288 = vld [vmem:[%s190 + $0x50] sm:$0xff]
        %v289 = vld [vmem:[%s190 + $0x58] sm:$0xff]
        %v290 = vld [vmem:[%s190 + $0x60] sm:$0xff]
        %v291 = vld [vmem:[%s190 + $0x68] sm:$0xff]
        %v292 = vld [vmem:[%s190 + $0x70] sm:$0xff]
        %v293 = vld [vmem:[%s190 + $0x78] sm:$0xff]
        %310 = vrot.lane.b32.xlu0 %v278, 2
        %v311 = vpop.permute.xlu0 %310
        %312 = vrot.lane.b32.xlu0 %v279, 2
        %v313 = vpop.permute.xlu0 %312
        %314 = vrot.lane.b32.xlu0 %v280, 2
        %v315 = vpop.permute.xlu0 %314
        %316 = vrot.lane.b32.xlu0 %v281, 2
        %v317 = vpop.permute.xlu0 %316
        %318 = vrot.lane.b32.xlu0 %v282, 2
        %v319 = vpop.permute.xlu0 %318
        %320 = vrot.lane.b32.xlu0 %v283, 2
        %v321 = vpop.permute.xlu0 %320
        %322 = vrot.lane.b32.xlu0 %v284, 2
        %v323 = vpop.permute.xlu0 %322
        %324 = vrot.lane.b32.xlu0 %v285, 2
        %v325 = vpop.permute.xlu0 %324
        %326 = vrot.lane.b32.xlu0 %v286, 2
        %v327 = vpop.permute.xlu0 %326
        %328 = vrot.lane.b32.xlu0 %v287, 2
        %v329 = vpop.permute.xlu0 %328
        %330 = vrot.lane.b32.xlu0 %v288, 2
        %v331 = vpop.permute.xlu0 %330
        %332 = vrot.lane.b32.xlu0 %v289, 2
        %v333 = vpop.permute.xlu0 %332
        %334 = vrot.lane.b32.xlu0 %v290, 2
        %v335 = vpop.permute.xlu0 %334
        %336 = vrot.lane.b32.xlu0 %v291, 2
        %v337 = vpop.permute.xlu0 %336
        %338 = vrot.lane.b32.xlu0 %v292, 2
        %v339 = vpop.permute.xlu0 %338
        %340 = vrot.lane.b32.xlu0 %v293, 2
        %v341 = vpop.permute.xlu0 %340
        %vm358 = vcmask 146448
        %359 = vst.msk [vmem:[#allocation2 + $0x2] sm:$0xff] %vm358, %v311
        %360 = vst.msk [vmem:[#allocation2 + $0xa] sm:$0xff] %vm358, %v313
        %361 = vst.msk [vmem:[#allocation2 + $0x1a] sm:$0xff] %vm358, %v315
        %362 = vst.msk [vmem:[#allocation2 + $0x22] sm:$0xff] %vm358, %v317
        %363 = vst.msk [vmem:[#allocation2 + $0x32] sm:$0xff] %vm358, %v319
        %364 = vst.msk [vmem:[#allocation2 + $0x3a] sm:$0xff] %vm358, %v321
        %365 = vst.msk [vmem:[#allocation2 + $0x4a] sm:$0xff] %vm358, %v323
        %366 = vst.msk [vmem:[#allocation2 + $0x52] sm:$0xff] %vm358, %v325
        %367 = vst.msk [vmem:[#allocation2 + $0x62] sm:$0xff] %vm358, %v327
        %368 = vst.msk [vmem:[#allocation2 + $0x6a] sm:$0xff] %vm358, %v329
        %369 = vst.msk [vmem:[#allocation2 + $0x7a] sm:$0xff] %vm358, %v331
        %370 = vst.msk [vmem:[#allocation2 + $0x82] sm:$0xff] %vm358, %v333
        %371 = vst.msk [vmem:[#allocation2 + $0x92] sm:$0xff] %vm358, %v335
        %372 = vst.msk [vmem:[#allocation2 + $0x9a] sm:$0xff] %vm358, %v337
        %373 = vst.msk [vmem:[#allocation2 + $0xaa] sm:$0xff] %vm358, %v339
        %374 = vst.msk [vmem:[#allocation2 + $0xb2] sm:$0xff] %vm358, %v341
        %v375 = vld [vmem:[#allocation2] sm:$0xff]
        %v376 = vld [vmem:[#allocation2 + $0x8] sm:$0xff]
        %v377 = vld [vmem:[#allocation2 + $0x10] sm:$0xf]
        %v378 = vld [vmem:[#allocation2 + $0x18] sm:$0xff]
        %v379 = vld [vmem:[#allocation2 + $0x20] sm:$0xff]
        %v380 = vld [vmem:[#allocation2 + $0x28] sm:$0xf]
        %v381 = vld [vmem:[#allocation2 + $0x30] sm:$0xff]
        %v382 = vld [vmem:[#allocation2 + $0x38] sm:$0xff]
        %v383 = vld [vmem:[#allocation2 + $0x40] sm:$0xf]
        %v384 = vld [vmem:[#allocation2 + $0x48] sm:$0xff]
        %v385 = vld [vmem:[#allocation2 + $0x50] sm:$0xff]
        %v386 = vld [vmem:[#allocation2 + $0x58] sm:$0xf]
        %v387 = vld [vmem:[#allocation2 + $0x60] sm:$0xff]
        %v388 = vld [vmem:[#allocation2 + $0x68] sm:$0xff]
        %v389 = vld [vmem:[#allocation2 + $0x70] sm:$0xf]
        %v390 = vld [vmem:[#allocation2 + $0x78] sm:$0xff]
        %v391 = vld [vmem:[#allocation2 + $0x80] sm:$0xff]
        %v392 = vld [vmem:[#allocation2 + $0x88] sm:$0xf]
        %v393 = vld [vmem:[#allocation2 + $0x90] sm:$0xff]
        %v394 = vld [vmem:[#allocation2 + $0x98] sm:$0xff]
        %v395 = vld [vmem:[#allocation2 + $0xa0] sm:$0xf]
        %v396 = vld [vmem:[#allocation2 + $0xa8] sm:$0xff]
        %v397 = vld [vmem:[#allocation2 + $0xb0] sm:$0xff]
        %v398 = vld [vmem:[#allocation2 + $0xb8] sm:$0xf]
        %v399 = vmul.f32 %v375, 0.17820324
        %v400 = vmul.f32 %v376, 0.17820324
        %v401 = vmul.f32 %v377, 0.17820324
        %v402 = vmul.f32 %v378, 0.17820324
        %v403 = vmul.f32 %v379, 0.17820324
        %v404 = vmul.f32 %v380, 0.17820324
        %v405 = vmul.f32 %v381, 0.17820324
        %v406 = vmul.f32 %v382, 0.17820324
        %v407 = vmul.f32 %v383, 0.17820324
        %v408 = vmul.f32 %v384, 0.17820324
        %v409 = vmul.f32 %v385, 0.17820324
        %v410 = vmul.f32 %v386, 0.17820324
        %v411 = vmul.f32 %v387, 0.17820324
        %v412 = vmul.f32 %v388, 0.17820324
        %v413 = vmul.f32 %v389, 0.17820324
        %v414 = vmul.f32 %v390, 0.17820324
        %v415 = vmul.f32 %v391, 0.17820324
        %v416 = vmul.f32 %v392, 0.17820324
        %v417 = vmul.f32 %v393, 0.17820324
        %v418 = vmul.f32 %v394, 0.17820324
        %v419 = vmul.f32 %v395, 0.17820324
        %v420 = vmul.f32 %v396, 0.17820324
        %v421 = vmul.f32 %v397, 0.17820324
        %v422 = vmul.f32 %v398, 0.17820324
        %v423 = vmul.f32 %v375, 0.21052226
        %v424 = vmul.f32 %v376, 0.21052226
        %v425 = vmul.f32 %v377, 0.21052226
        %v426 = vmul.f32 %v378, 0.21052226
        %v427 = vmul.f32 %v379, 0.21052226
        %v428 = vmul.f32 %v380, 0.21052226
        %v429 = vmul.f32 %v381, 0.21052226
        %v430 = vmul.f32 %v382, 0.21052226
        %v431 = vmul.f32 %v383, 0.21052226
        %v432 = vmul.f32 %v384, 0.21052226
        %v433 = vmul.f32 %v385, 0.21052226
        %v434 = vmul.f32 %v386, 0.21052226
        %v435 = vmul.f32 %v387, 0.21052226
        %v436 = vmul.f32 %v388, 0.21052226
        %v437 = vmul.f32 %v389, 0.21052226
        %v438 = vmul.f32 %v390, 0.21052226
        %v439 = vmul.f32 %v391, 0.21052226
        %v440 = vmul.f32 %v392, 0.21052226
        %v441 = vmul.f32 %v393, 0.21052226
        %v442 = vmul.f32 %v394, 0.21052226
        %v443 = vmul.f32 %v395, 0.21052226
        %v444 = vmul.f32 %v396, 0.21052226
        %v445 = vmul.f32 %v397, 0.21052226
        %v446 = vmul.f32 %v398, 0.21052226
        %471 = vrot.lane.b32.xlu0 %v423, 127
        %v472 = vpop.permute.xlu0 %471
        %473 = vrot.lane.b32.xlu0 %v424, 127
        %v474 = vpop.permute.xlu0 %473
        %475 = vrot.lane.b32.xlu0 %v425, 127
        %v476 = vpop.permute.xlu0 %475
        %477 = vrot.lane.b32.xlu0 %v426, 127
        %v478 = vpop.permute.xlu0 %477
        %479 = vrot.lane.b32.xlu0 %v427, 127
        %v480 = vpop.permute.xlu0 %479
        %481 = vrot.lane.b32.xlu0 %v428, 127
        %v482 = vpop.permute.xlu0 %481
        %483 = vrot.lane.b32.xlu0 %v429, 127
        %v484 = vpop.permute.xlu0 %483
        %485 = vrot.lane.b32.xlu0 %v430, 127
        %v486 = vpop.permute.xlu0 %485
        %487 = vrot.lane.b32.xlu0 %v431, 127
        %v488 = vpop.permute.xlu0 %487
        %489 = vrot.lane.b32.xlu0 %v432, 127
        %v490 = vpop.permute.xlu0 %489
        %491 = vrot.lane.b32.xlu0 %v433, 127
        %v492 = vpop.permute.xlu0 %491
        %493 = vrot.lane.b32.xlu0 %v434, 127
        %v494 = vpop.permute.xlu0 %493
        %495 = vrot.lane.b32.xlu0 %v435, 127
        %v496 = vpop.permute.xlu0 %495
        %497 = vrot.lane.b32.xlu0 %v436, 127
        %v498 = vpop.permute.xlu0 %497
        %499 = vrot.lane.b32.xlu0 %v437, 127
        %v500 = vpop.permute.xlu0 %499
        %501 = vrot.lane.b32.xlu0 %v438, 127
        %v502 = vpop.permute.xlu0 %501
        %503 = vrot.lane.b32.xlu0 %v439, 127
        %v504 = vpop.permute.xlu0 %503
        %505 = vrot.lane.b32.xlu0 %v440, 127
        %v506 = vpop.permute.xlu0 %505
        %507 = vrot.lane.b32.xlu0 %v441, 127
        %v508 = vpop.permute.xlu0 %507
        %509 = vrot.lane.b32.xlu0 %v442, 127
        %v510 = vpop.permute.xlu0 %509
        %511 = vrot.lane.b32.xlu0 %v443, 127
        %v512 = vpop.permute.xlu0 %511
        %513 = vrot.lane.b32.xlu0 %v444, 127
        %v514 = vpop.permute.xlu0 %513
        %515 = vrot.lane.b32.xlu0 %v445, 127
        %v516 = vpop.permute.xlu0 %515
        %517 = vrot.lane.b32.xlu0 %v446, 127
        %v518 = vpop.permute.xlu0 %517
        %v543 = vadd.f32 %v399, %v472
        %v544 = vadd.f32 %v400, %v474
        %v545 = vadd.f32 %v401, %v476
        %v546 = vadd.f32 %v402, %v478
        %v547 = vadd.f32 %v403, %v480
        %v548 = vadd.f32 %v404, %v482
        %v549 = vadd.f32 %v405, %v484
        %v550 = vadd.f32 %v406, %v486
        %v551 = vadd.f32 %v407, %v488
        %v552 = vadd.f32 %v408, %v490
        %v553 = vadd.f32 %v409, %v492
        %v554 = vadd.f32 %v410, %v494
        %v555 = vadd.f32 %v411, %v496
        %v556 = vadd.f32 %v412, %v498
        %v557 = vadd.f32 %v413, %v500
        %v558 = vadd.f32 %v414, %v502
        %v559 = vadd.f32 %v415, %v504
        %v560 = vadd.f32 %v416, %v506
        %v561 = vadd.f32 %v417, %v508
        %v562 = vadd.f32 %v418, %v510
        %v563 = vadd.f32 %v419, %v512
        %v564 = vadd.f32 %v420, %v514
        %v565 = vadd.f32 %v421, %v516
        %v566 = vadd.f32 %v422, %v518
        %v567 = vmul.f32 %v375, 0.22254893
        %v568 = vmul.f32 %v376, 0.22254893
        %v569 = vmul.f32 %v377, 0.22254893
        %v570 = vmul.f32 %v378, 0.22254893
        %v571 = vmul.f32 %v379, 0.22254893
        %v572 = vmul.f32 %v380, 0.22254893
        %v573 = vmul.f32 %v381, 0.22254893
        %v574 = vmul.f32 %v382, 0.22254893
        %v575 = vmul.f32 %v383, 0.22254893
        %v576 = vmul.f32 %v384, 0.22254893
        %v577 = vmul.f32 %v385, 0.22254893
        %v578 = vmul.f32 %v386, 0.22254893
        %v579 = vmul.f32 %v387, 0.22254893
        %v580 = vmul.f32 %v388, 0.22254893
        %v581 = vmul.f32 %v389, 0.22254893
        %v582 = vmul.f32 %v390, 0.22254893
        %v583 = vmul.f32 %v391, 0.22254893
        %v584 = vmul.f32 %v392, 0.22254893
        %v585 = vmul.f32 %v393, 0.22254893
        %v586 = vmul.f32 %v394, 0.22254893
        %v587 = vmul.f32 %v395, 0.22254893
        %v588 = vmul.f32 %v396, 0.22254893
        %v589 = vmul.f32 %v397, 0.22254893
        %v590 = vmul.f32 %v398, 0.22254893
        %615 = vrot.lane.b32.xlu0 %v567, 126
        %v616 = vpop.permute.xlu0 %615
        %617 = vrot.lane.b32.xlu0 %v568, 126
        %v618 = vpop.permute.xlu0 %617
        %619 = vrot.lane.b32.xlu0 %v569, 126
        %v620 = vpop.permute.xlu0 %619
        %621 = vrot.lane.b32.xlu0 %v570, 126
        %v622 = vpop.permute.xlu0 %621
        %623 = vrot.lane.b32.xlu0 %v571, 126
        %v624 = vpop.permute.xlu0 %623
        %625 = vrot.lane.b32.xlu0 %v572, 126
        %v626 = vpop.permute.xlu0 %625
        %627 = vrot.lane.b32.xlu0 %v573, 126
        %v628 = vpop.permute.xlu0 %627
        %629 = vrot.lane.b32.xlu0 %v574, 126
        %v630 = vpop.permute.xlu0 %629
        %631 = vrot.lane.b32.xlu0 %v575, 126
        %v632 = vpop.permute.xlu0 %631
        %633 = vrot.lane.b32.xlu0 %v576, 126
        %v634 = vpop.permute.xlu0 %633
        %635 = vrot.lane.b32.xlu0 %v577, 126
        %v636 = vpop.permute.xlu0 %635
        %637 = vrot.lane.b32.xlu0 %v578, 126
        %v638 = vpop.permute.xlu0 %637
        %639 = vrot.lane.b32.xlu0 %v579, 126
        %v640 = vpop.permute.xlu0 %639
        %641 = vrot.lane.b32.xlu0 %v580, 126
        %v642 = vpop.permute.xlu0 %641
        %643 = vrot.lane.b32.xlu0 %v581, 126
        %v644 = vpop.permute.xlu0 %643
        %645 = vrot.lane.b32.xlu0 %v582, 126
        %v646 = vpop.permute.xlu0 %645
        %647 = vrot.lane.b32.xlu0 %v583, 126
        %v648 = vpop.permute.xlu0 %647
        %649 = vrot.lane.b32.xlu0 %v584, 126
        %v650 = vpop.permute.xlu0 %649
        %651 = vrot.lane.b32.xlu0 %v585, 126
        %v652 = vpop.permute.xlu0 %651
        %653 = vrot.lane.b32.xlu0 %v586, 126
        %v654 = vpop.permute.xlu0 %653
        %655 = vrot.lane.b32.xlu0 %v587, 126
        %v656 = vpop.permute.xlu0 %655
        %657 = vrot.lane.b32.xlu0 %v588, 126
        %v658 = vpop.permute.xlu0 %657
        %659 = vrot.lane.b32.xlu0 %v589, 126
        %v660 = vpop.permute.xlu0 %659
        %661 = vrot.lane.b32.xlu0 %v590, 126
        %v662 = vpop.permute.xlu0 %661
        %v687 = vadd.f32 %v543, %v616
        %v688 = vadd.f32 %v544, %v618
        %v689 = vadd.f32 %v545, %v620
        %v690 = vadd.f32 %v546, %v622
        %v691 = vadd.f32 %v547, %v624
        %v692 = vadd.f32 %v548, %v626
        %v693 = vadd.f32 %v549, %v628
        %v694 = vadd.f32 %v550, %v630
        %v695 = vadd.f32 %v551, %v632
        %v696 = vadd.f32 %v552, %v634
        %v697 = vadd.f32 %v553, %v636
        %v698 = vadd.f32 %v554, %v638
        %v699 = vadd.f32 %v555, %v640
        %v700 = vadd.f32 %v556, %v642
        %v701 = vadd.f32 %v557, %v644
        %v702 = vadd.f32 %v558, %v646
        %v703 = vadd.f32 %v559, %v648
        %v704 = vadd.f32 %v560, %v650
        %v705 = vadd.f32 %v561, %v652
        %v706 = vadd.f32 %v562, %v654
        %v707 = vadd.f32 %v563, %v656
        %v708 = vadd.f32 %v564, %v658
        %v709 = vadd.f32 %v565, %v660
        %v710 = vadd.f32 %v566, %v662
        %711 = vrot.lane.b32.xlu0 %v423, 125
        %v712 = vpop.permute.xlu0 %711
        %713 = vrot.lane.b32.xlu0 %v424, 125
        %v714 = vpop.permute.xlu0 %713
        %715 = vrot.lane.b32.xlu0 %v425, 125
        %v716 = vpop.permute.xlu0 %715
        %717 = vrot.lane.b32.xlu0 %v426, 125
        %v718 = vpop.permute.xlu0 %717
        %719 = vrot.lane.b32.xlu0 %v427, 125
        %v720 = vpop.permute.xlu0 %719
        %721 = vrot.lane.b32.xlu0 %v428, 125
        %v722 = vpop.permute.xlu0 %721
        %723 = vrot.lane.b32.xlu0 %v429, 125
        %v724 = vpop.permute.xlu0 %723
        %725 = vrot.lane.b32.xlu0 %v430, 125
        %v726 = vpop.permute.xlu0 %725
        %727 = vrot.lane.b32.xlu0 %v431, 125
        %v728 = vpop.permute.xlu0 %727
        %729 = vrot.lane.b32.xlu0 %v432, 125
        %v730 = vpop.permute.xlu0 %729
        %731 = vrot.lane.b32.xlu0 %v433, 125
        %v732 = vpop.permute.xlu0 %731
        %733 = vrot.lane.b32.xlu0 %v434, 125
        %v734 = vpop.permute.xlu0 %733
        %735 = vrot.lane.b32.xlu0 %v435, 125
        %v736 = vpop.permute.xlu0 %735
        %737 = vrot.lane.b32.xlu0 %v436, 125
        %v738 = vpop.permute.xlu0 %737
        %739 = vrot.lane.b32.xlu0 %v437, 125
        %v740 = vpop.permute.xlu0 %739
        %741 = vrot.lane.b32.xlu0 %v438, 125
        %v742 = vpop.permute.xlu0 %741
        %743 = vrot.lane.b32.xlu0 %v439, 125
        %v744 = vpop.permute.xlu0 %743
        %745 = vrot.lane.b32.xlu0 %v440, 125
        %v746 = vpop.permute.xlu0 %745
        %747 = vrot.lane.b32.xlu0 %v441, 125
        %v748 = vpop.permute.xlu0 %747
        %749 = vrot.lane.b32.xlu0 %v442, 125
        %v750 = vpop.permute.xlu0 %749
        %751 = vrot.lane.b32.xlu0 %v443, 125
        %v752 = vpop.permute.xlu0 %751
        %753 = vrot.lane.b32.xlu0 %v444, 125
        %v754 = vpop.permute.xlu0 %753
        %755 = vrot.lane.b32.xlu0 %v445, 125
        %v756 = vpop.permute.xlu0 %755
        %757 = vrot.lane.b32.xlu0 %v446, 125
        %v758 = vpop.permute.xlu0 %757
        %v783 = vadd.f32 %v687, %v712
        %v784 = vadd.f32 %v688, %v714
        %v785 = vadd.f32 %v689, %v716
        %v786 = vadd.f32 %v690, %v718
        %v787 = vadd.f32 %v691, %v720
        %v788 = vadd.f32 %v692, %v722
        %v789 = vadd.f32 %v693, %v724
        %v790 = vadd.f32 %v694, %v726
        %v791 = vadd.f32 %v695, %v728
        %v792 = vadd.f32 %v696, %v730
        %v793 = vadd.f32 %v697, %v732
        %v794 = vadd.f32 %v698, %v734
        %v795 = vadd.f32 %v699, %v736
        %v796 = vadd.f32 %v700, %v738
        %v797 = vadd.f32 %v701, %v740
        %v798 = vadd.f32 %v702, %v742
        %v799 = vadd.f32 %v703, %v744
        %v800 = vadd.f32 %v704, %v746
        %v801 = vadd.f32 %v705, %v748
        %v802 = vadd.f32 %v706, %v750
        %v803 = vadd.f32 %v707, %v752
        %v804 = vadd.f32 %v708, %v754
        %v805 = vadd.f32 %v709, %v756
        %v806 = vadd.f32 %v710, %v758
        %831 = vrot.lane.b32.xlu0 %v399, 124
        %v832 = vpop.permute.xlu0 %831
        %833 = vrot.lane.b32.xlu0 %v400, 124
        %v834 = vpop.permute.xlu0 %833
        %835 = vrot.lane.b32.xlu0 %v401, 124
        %v836 = vpop.permute.xlu0 %835
        %837 = vrot.lane.b32.xlu0 %v402, 124
        %v838 = vpop.permute.xlu0 %837
        %839 = vrot.lane.b32.xlu0 %v403, 124
        %v840 = vpop.permute.xlu0 %839
        %841 = vrot.lane.b32.xlu0 %v404, 124
        %v842 = vpop.permute.xlu0 %841
        %843 = vrot.lane.b32.xlu0 %v405, 124
        %v844 = vpop.permute.xlu0 %843
        %845 = vrot.lane.b32.xlu0 %v406, 124
        %v846 = vpop.permute.xlu0 %845
        %847 = vrot.lane.b32.xlu0 %v407, 124
        %v848 = vpop.permute.xlu0 %847
        %849 = vrot.lane.b32.xlu0 %v408, 124
        %v850 = vpop.permute.xlu0 %849
        %851 = vrot.lane.b32.xlu0 %v409, 124
        %v852 = vpop.permute.xlu0 %851
        %853 = vrot.lane.b32.xlu0 %v410, 124
        %v854 = vpop.permute.xlu0 %853
        %855 = vrot.lane.b32.xlu0 %v411, 124
        %v856 = vpop.permute.xlu0 %855
        %857 = vrot.lane.b32.xlu0 %v412, 124
        %v858 = vpop.permute.xlu0 %857
        %859 = vrot.lane.b32.xlu0 %v413, 124
        %v860 = vpop.permute.xlu0 %859
        %861 = vrot.lane.b32.xlu0 %v414, 124
        %v862 = vpop.permute.xlu0 %861
        %863 = vrot.lane.b32.xlu0 %v415, 124
        %v864 = vpop.permute.xlu0 %863
        %865 = vrot.lane.b32.xlu0 %v416, 124
        %v866 = vpop.permute.xlu0 %865
        %867 = vrot.lane.b32.xlu0 %v417, 124
        %v868 = vpop.permute.xlu0 %867
        %869 = vrot.lane.b32.xlu0 %v418, 124
        %v870 = vpop.permute.xlu0 %869
        %871 = vrot.lane.b32.xlu0 %v419, 124
        %v872 = vpop.permute.xlu0 %871
        %873 = vrot.lane.b32.xlu0 %v420, 124
        %v874 = vpop.permute.xlu0 %873
        %875 = vrot.lane.b32.xlu0 %v421, 124
        %v876 = vpop.permute.xlu0 %875
        %877 = vrot.lane.b32.xlu0 %v422, 124
        %v878 = vpop.permute.xlu0 %877
        %v903 = vadd.f32 %v783, %v832
        %v904 = vadd.f32 %v784, %v834
        %v905 = vadd.f32 %v785, %v836
        %v906 = vadd.f32 %v786, %v838
        %v907 = vadd.f32 %v787, %v840
        %v908 = vadd.f32 %v788, %v842
        %v909 = vadd.f32 %v789, %v844
        %v910 = vadd.f32 %v790, %v846
        %v911 = vadd.f32 %v791, %v848
        %v912 = vadd.f32 %v792, %v850
        %v913 = vadd.f32 %v793, %v852
        %v914 = vadd.f32 %v794, %v854
        %v915 = vadd.f32 %v795, %v856
        %v916 = vadd.f32 %v796, %v858
        %v917 = vadd.f32 %v797, %v860
        %v918 = vadd.f32 %v798, %v862
        %v919 = vadd.f32 %v799, %v864
        %v920 = vadd.f32 %v800, %v866
        %v921 = vadd.f32 %v801, %v868
        %v922 = vadd.f32 %v802, %v870
        %v923 = vadd.f32 %v803, %v872
        %v924 = vadd.f32 %v804, %v874
        %v925 = vadd.f32 %v805, %v876
        %v926 = vadd.f32 %v806, %v878
        %v927 = vmul.f32 %v903, 0.17820324
        %v928 = vmul.f32 %v904, 0.17820324
        %v929 = vmul.f32 %v906, 0.17820324
        %v930 = vmul.f32 %v907, 0.17820324
        %v931 = vmul.f32 %v909, 0.17820324
        %v932 = vmul.f32 %v910, 0.17820324
        %v933 = vmul.f32 %v912, 0.17820324
        %v934 = vmul.f32 %v913, 0.17820324
        %v935 = vmul.f32 %v915, 0.17820324
        %v936 = vmul.f32 %v916, 0.17820324
        %v937 = vmul.f32 %v918, 0.17820324
        %v938 = vmul.f32 %v919, 0.17820324
        %v939 = vmul.f32 %v921, 0.17820324
        %v940 = vmul.f32 %v922, 0.17820324
        %v941 = vmul.f32 %v924, 0.17820324
        %v942 = vmul.f32 %v925, 0.17820324
        %v943 = vmul.f32 %v903, 0.21052226
        %v944 = vmul.f32 %v904, 0.21052226
        %v945 = vmul.f32 %v905, 0.21052226
        %v946 = vmul.f32 %v906, 0.21052226
        %v947 = vmul.f32 %v907, 0.21052226
        %v948 = vmul.f32 %v908, 0.21052226
        %v949 = vmul.f32 %v909, 0.21052226
        %v950 = vmul.f32 %v910, 0.21052226
        %v951 = vmul.f32 %v911, 0.21052226
        %v952 = vmul.f32 %v912, 0.21052226
        %v953 = vmul.f32 %v913, 0.21052226
        %v954 = vmul.f32 %v914, 0.21052226
        %v955 = vmul.f32 %v915, 0.21052226
        %v956 = vmul.f32 %v916, 0.21052226
        %v957 = vmul.f32 %v917, 0.21052226
        %v958 = vmul.f32 %v918, 0.21052226
        %v959 = vmul.f32 %v919, 0.21052226
        %v960 = vmul.f32 %v920, 0.21052226
        %v961 = vmul.f32 %v921, 0.21052226
        %v962 = vmul.f32 %v922, 0.21052226
        %v963 = vmul.f32 %v923, 0.21052226
        %v964 = vmul.f32 %v924, 0.21052226
        %v965 = vmul.f32 %v925, 0.21052226
        %v966 = vmul.f32 %v926, 0.21052226
        %vm991 = vcmask 1046528
        %v992 = vrot.slane %v943, 1
        %v993 = vrot.slane %v944, 1
        %v994 = vsel %vm991, %v992, %v993
        %v995 = vrot.slane %v945, 1
        %v996 = vsel %vm991, %v993, %v995
        %v997 = vrot.slane %v946, 1
        %v998 = vrot.slane %v947, 1
        %v999 = vsel %vm991, %v997, %v998
        %v1000 = vrot.slane %v948, 1
        %v1001 = vsel %vm991, %v998, %v1000
        %v1002 = vrot.slane %v949, 1
        %v1003 = vrot.slane %v950, 1
        %v1004 = vsel %vm991, %v1002, %v1003
        %v1005 = vrot.slane %v951, 1
        %v1006 = vsel %vm991, %v1003, %v1005
        %v1007 = vrot.slane %v952, 1
        %v1008 = vrot.slane %v953, 1
        %v1009 = vsel %vm991, %v1007, %v1008
        %v1010 = vrot.slane %v954, 1
        %v1011 = vsel %vm991, %v1008, %v1010
        %v1012 = vrot.slane %v955, 1
        %v1013 = vrot.slane %v956, 1
        %v1014 = vsel %vm991, %v1012, %v1013
        %v1015 = vrot.slane %v957, 1
        %v1016 = vsel %vm991, %v1013, %v1015
        %v1017 = vrot.slane %v958, 1
        %v1018 = vrot.slane %v959, 1
        %v1019 = vsel %vm991, %v1017, %v1018
        %v1020 = vrot.slane %v960, 1
        %v1021 = vsel %vm991, %v1018, %v1020
        %v1022 = vrot.slane %v961, 1
        %v1023 = vrot.slane %v962, 1
        %v1024 = vsel %vm991, %v1022, %v1023
        %v1025 = vrot.slane %v963, 1
        %v1026 = vsel %vm991, %v1023, %v1025
        %v1027 = vrot.slane %v964, 1
        %v1028 = vrot.slane %v965, 1
        %v1029 = vsel %vm991, %v1027, %v1028
        %v1030 = vrot.slane %v966, 1
        %v1031 = vsel %vm991, %v1028, %v1030
        %v1048 = vadd.f32 %v927, %v994
        %v1049 = vadd.f32 %v928, %v996
        %v1050 = vadd.f32 %v929, %v999
        %v1051 = vadd.f32 %v930, %v1001
        %v1052 = vadd.f32 %v931, %v1004
        %v1053 = vadd.f32 %v932, %v1006
        %v1054 = vadd.f32 %v933, %v1009
        %v1055 = vadd.f32 %v934, %v1011
        %v1056 = vadd.f32 %v935, %v1014
        %v1057 = vadd.f32 %v936, %v1016
        %v1058 = vadd.f32 %v937, %v1019
        %v1059 = vadd.f32 %v938, %v1021
        %v1060 = vadd.f32 %v939, %v1024
        %v1061 = vadd.f32 %v940, %v1026
        %v1062 = vadd.f32 %v941, %v1029
        %v1063 = vadd.f32 %v942, %v1031
        %v1064 = vmul.f32 %v903, 0.22254893
        %v1065 = vmul.f32 %v904, 0.22254893
        %v1066 = vmul.f32 %v905, 0.22254893
        %v1067 = vmul.f32 %v906, 0.22254893
        %v1068 = vmul.f32 %v907, 0.22254893
        %v1069 = vmul.f32 %v908, 0.22254893
        %v1070 = vmul.f32 %v909, 0.22254893
        %v1071 = vmul.f32 %v910, 0.22254893
        %v1072 = vmul.f32 %v911, 0.22254893
        %v1073 = vmul.f32 %v912, 0.22254893
        %v1074 = vmul.f32 %v913, 0.22254893
        %v1075 = vmul.f32 %v914, 0.22254893
        %v1076 = vmul.f32 %v915, 0.22254893
        %v1077 = vmul.f32 %v916, 0.22254893
        %v1078 = vmul.f32 %v917, 0.22254893
        %v1079 = vmul.f32 %v918, 0.22254893
        %v1080 = vmul.f32 %v919, 0.22254893
        %v1081 = vmul.f32 %v920, 0.22254893
        %v1082 = vmul.f32 %v921, 0.22254893
        %v1083 = vmul.f32 %v922, 0.22254893
        %v1084 = vmul.f32 %v923, 0.22254893
        %v1085 = vmul.f32 %v924, 0.22254893
        %v1086 = vmul.f32 %v925, 0.22254893
        %v1087 = vmul.f32 %v926, 0.22254893
        %vm1112 = vcmask 1045504
        %v1113 = vrot.slane %v1064, 2
        %v1114 = vrot.slane %v1065, 2
        %v1115 = vsel %vm1112, %v1113, %v1114
        %v1116 = vrot.slane %v1066, 2
        %v1117 = vsel %vm1112, %v1114, %v1116
        %v1118 = vrot.slane %v1067, 2
        %v1119 = vrot.slane %v1068, 2
        %v1120 = vsel %vm1112, %v1118, %v1119
        %v1121 = vrot.slane %v1069, 2
        %v1122 = vsel %vm1112, %v1119, %v1121
        %v1123 = vrot.slane %v1070, 2
        %v1124 = vrot.slane %v1071, 2
        %v1125 = vsel %vm1112, %v1123, %v1124
        %v1126 = vrot.slane %v1072, 2
        %v1127 = vsel %vm1112, %v1124, %v1126
        %v1128 = vrot.slane %v1073, 2
        %v1129 = vrot.slane %v1074, 2
        %v1130 = vsel %vm1112, %v1128, %v1129
        %v1131 = vrot.slane %v1075, 2
        %v1132 = vsel %vm1112, %v1129, %v1131
        %v1133 = vrot.slane %v1076, 2
        %v1134 = vrot.slane %v1077, 2
        %v1135 = vsel %vm1112, %v1133, %v1134
        %v1136 = vrot.slane %v1078, 2
        %v1137 = vsel %vm1112, %v1134, %v1136
        %v1138 = vrot.slane %v1079, 2
        %v1139 = vrot.slane %v1080, 2
        %v1140 = vsel %vm1112, %v1138, %v1139
        %v1141 = vrot.slane %v1081, 2
        %v1142 = vsel %vm1112, %v1139, %v1141
        %v1143 = vrot.slane %v1082, 2
        %v1144 = vrot.slane %v1083, 2
        %v1145 = vsel %vm1112, %v1143, %v1144
        %v1146 = vrot.slane %v1084, 2
        %v1147 = vsel %vm1112, %v1144, %v1146
        %v1148 = vrot.slane %v1085, 2
        %v1149 = vrot.slane %v1086, 2
        %v1150 = vsel %vm1112, %v1148, %v1149
        %v1151 = vrot.slane %v1087, 2
        %v1152 = vsel %vm1112, %v1149, %v1151
        %v1169 = vadd.f32 %v1048, %v1115
        %v1170 = vadd.f32 %v1049, %v1117
        %v1171 = vadd.f32 %v1050, %v1120
        %v1172 = vadd.f32 %v1051, %v1122
        %v1173 = vadd.f32 %v1052, %v1125
        %v1174 = vadd.f32 %v1053, %v1127
        %v1175 = vadd.f32 %v1054, %v1130
        %v1176 = vadd.f32 %v1055, %v1132
        %v1177 = vadd.f32 %v1056, %v1135
        %v1178 = vadd.f32 %v1057, %v1137
        %v1179 = vadd.f32 %v1058, %v1140
        %v1180 = vadd.f32 %v1059, %v1142
        %v1181 = vadd.f32 %v1060, %v1145
        %v1182 = vadd.f32 %v1061, %v1147
        %v1183 = vadd.f32 %v1062, %v1150
        %v1184 = vadd.f32 %v1063, %v1152
        %vm1185 = vcmask 1044480
        %v1186 = vrot.slane %v943, 3
        %v1187 = vrot.slane %v944, 3
        %v1188 = vsel %vm1185, %v1186, %v1187
        %v1189 = vrot.slane %v945, 3
        %v1190 = vsel %vm1185, %v1187, %v1189
        %v1191 = vrot.slane %v946, 3
        %v1192 = vrot.slane %v947, 3
        %v1193 = vsel %vm1185, %v1191, %v1192
        %v1194 = vrot.slane %v948, 3
        %v1195 = vsel %vm1185, %v1192, %v1194
        %v1196 = vrot.slane %v949, 3
        %v1197 = vrot.slane %v950, 3
        %v1198 = vsel %vm1185, %v1196, %v1197
        %v1199 = vrot.slane %v951, 3
        %v1200 = vsel %vm1185, %v1197, %v1199
        %v1201 = vrot.slane %v952, 3
        %v1202 = vrot.slane %v953, 3
        %v1203 = vsel %vm1185, %v1201, %v1202
        %v1204 = vrot.slane %v954, 3
        %v1205 = vsel %vm1185, %v1202, %v1204
        %v1206 = vrot.slane %v955, 3
        %v1207 = vrot.slane %v956, 3
        %v1208 = vsel %vm1185, %v1206, %v1207
        %v1209 = vrot.slane %v957, 3
        %v1210 = vsel %vm1185, %v1207, %v1209
        %v1211 = vrot.slane %v958, 3
        %v1212 = vrot.slane %v959, 3
        %v1213 = vsel %vm1185, %v1211, %v1212
        %v1214 = vrot.slane %v960, 3
        %v1215 = vsel %vm1185, %v1212, %v1214
        %v1216 = vrot.slane %v961, 3
        %v1217 = vrot.slane %v962, 3
        %v1218 = vsel %vm1185, %v1216, %v1217
        %v1219 = vrot.slane %v963, 3
        %v1220 = vsel %vm1185, %v1217, %v1219
        %v1221 = vrot.slane %v964, 3
        %v1222 = vrot.slane %v965, 3
        %v1223 = vsel %vm1185, %v1221, %v1222
        %v1224 = vrot.slane %v966, 3
        %v1225 = vsel %vm1185, %v1222, %v1224
        %v1242 = vadd.f32 %v1169, %v1188
        %v1243 = vadd.f32 %v1170, %v1190
        %v1244 = vadd.f32 %v1171, %v1193
        %v1245 = vadd.f32 %v1172, %v1195
        %v1246 = vadd.f32 %v1173, %v1198
        %v1247 = vadd.f32 %v1174, %v1200
        %v1248 = vadd.f32 %v1175, %v1203
        %v1249 = vadd.f32 %v1176, %v1205
        %v1250 = vadd.f32 %v1177, %v1208
        %v1251 = vadd.f32 %v1178, %v1210
        %v1252 = vadd.f32 %v1179, %v1213
        %v1253 = vadd.f32 %v1180, %v1215
        %v1254 = vadd.f32 %v1181, %v1218
        %v1255 = vadd.f32 %v1182, %v1220
        %v1256 = vadd.f32 %v1183, %v1223
        %v1257 = vadd.f32 %v1184, %v1225
        %v1258 = vmul.f32 %v905, 0.17820324
        %v1259 = vmul.f32 %v908, 0.17820324
        %v1260 = vmul.f32 %v911, 0.17820324
        %v1261 = vmul.f32 %v914, 0.17820324
        %v1262 = vmul.f32 %v917, 0.17820324
        %v1263 = vmul.f32 %v920, 0.17820324
        %v1264 = vmul.f32 %v923, 0.17820324
        %v1265 = vmul.f32 %v926, 0.17820324
        %vm1290 = vcmask 1043456
        %v1291 = vrot.slane %v927, 4
        %v1292 = vrot.slane %v928, 4
        %v1293 = vsel %vm1290, %v1291, %v1292
        %v1294 = vrot.slane %v1258, 4
        %v1295 = vsel %vm1290, %v1292, %v1294
        %v1296 = vrot.slane %v929, 4
        %v1297 = vrot.slane %v930, 4
        %v1298 = vsel %vm1290, %v1296, %v1297
        %v1299 = vrot.slane %v1259, 4
        %v1300 = vsel %vm1290, %v1297, %v1299
        %v1301 = vrot.slane %v931, 4
        %v1302 = vrot.slane %v932, 4
        %v1303 = vsel %vm1290, %v1301, %v1302
        %v1304 = vrot.slane %v1260, 4
        %v1305 = vsel %vm1290, %v1302, %v1304
        %v1306 = vrot.slane %v933, 4
        %v1307 = vrot.slane %v934, 4
        %v1308 = vsel %vm1290, %v1306, %v1307
        %v1309 = vrot.slane %v1261, 4
        %v1310 = vsel %vm1290, %v1307, %v1309
        %v1311 = vrot.slane %v935, 4
        %v1312 = vrot.slane %v936, 4
        %v1313 = vsel %vm1290, %v1311, %v1312
        %v1314 = vrot.slane %v1262, 4
        %v1315 = vsel %vm1290, %v1312, %v1314
        %v1316 = vrot.slane %v937, 4
        %v1317 = vrot.slane %v938, 4
        %v1318 = vsel %vm1290, %v1316, %v1317
        %v1319 = vrot.slane %v1263, 4
        %v1320 = vsel %vm1290, %v1317, %v1319
        %v1321 = vrot.slane %v939, 4
        %v1322 = vrot.slane %v940, 4
        %v1323 = vsel %vm1290, %v1321, %v1322
        %v1324 = vrot.slane %v1264, 4
        %v1325 = vsel %vm1290, %v1322, %v1324
        %v1326 = vrot.slane %v941, 4
        %v1327 = vrot.slane %v942, 4
        %v1328 = vsel %vm1290, %v1326, %v1327
        %v1329 = vrot.slane %v1265, 4
        %v1330 = vsel %vm1290, %v1327, %v1329
        %v1347 = vadd.f32 %v1242, %v1293
        %v1348 = vadd.f32 %v1243, %v1295
        %v1349 = vadd.f32 %v1244, %v1298
        %v1350 = vadd.f32 %v1245, %v1300
        %v1351 = vadd.f32 %v1246, %v1303
        %v1352 = vadd.f32 %v1247, %v1305
        %v1353 = vadd.f32 %v1248, %v1308
        %v1354 = vadd.f32 %v1249, %v1310
        %v1355 = vadd.f32 %v1250, %v1313
        %v1356 = vadd.f32 %v1251, %v1315
        %v1357 = vadd.f32 %v1252, %v1318
        %v1358 = vadd.f32 %v1253, %v1320
        %v1359 = vadd.f32 %v1254, %v1323
        %v1360 = vadd.f32 %v1255, %v1325
        %v1361 = vadd.f32 %v1256, %v1328
        %v1362 = vadd.f32 %v1257, %v1330
        %v1363 = vsub.f32 %v1349, %v1347
        %v1364 = vsub.f32 %v1350, %v1348
        %v1365 = vsub.f32 %v1351, %v1349
        %v1366 = vsub.f32 %v1352, %v1350
        %v1367 = vsub.f32 %v1353, %v1351
        %v1368 = vsub.f32 %v1354, %v1352
        %v1369 = vsub.f32 %v1355, %v1353
        %v1370 = vsub.f32 %v1356, %v1354
        %v1371 = vsub.f32 %v1357, %v1355
        %v1372 = vsub.f32 %v1358, %v1356
        %v1373 = vsub.f32 %v1359, %v1357
        %v1374 = vsub.f32 %v1360, %v1358
        %v1375 = vsub.f32 %v1361, %v1359
        %v1376 = vsub.f32 %v1362, %v1360
        %v1377 = vand.u32 2147483647, %v1363
        %v1378 = vand.u32 2147483647, %v1364
        %v1379 = vand.u32 2147483647, %v1365
        %v1380 = vand.u32 2147483647, %v1366
        %v1381 = vand.u32 2147483647, %v1367
        %v1382 = vand.u32 2147483647, %v1368
        %v1383 = vand.u32 2147483647, %v1369
        %v1384 = vand.u32 2147483647, %v1370
        %v1385 = vand.u32 2147483647, %v1371
        %v1386 = vand.u32 2147483647, %v1372
        %v1387 = vand.u32 2147483647, %v1373
        %v1388 = vand.u32 2147483647, %v1374
        %v1389 = vand.u32 2147483647, %v1375
        %v1390 = vand.u32 2147483647, %v1376
        %1405 = vrot.lane.b32.xlu0 %v1377, 2
        %v1406 = vpop.permute.xlu0 %1405
        %1407 = vrot.lane.b32.xlu0 %v1378, 2
        %v1408 = vpop.permute.xlu0 %1407
        %1409 = vrot.lane.b32.xlu0 %v1379, 2
        %v1410 = vpop.permute.xlu0 %1409
        %1411 = vrot.lane.b32.xlu0 %v1380, 2
        %v1412 = vpop.permute.xlu0 %1411
        %1413 = vrot.lane.b32.xlu0 %v1381, 2
        %v1414 = vpop.permute.xlu0 %1413
        %1415 = vrot.lane.b32.xlu0 %v1382, 2
        %v1416 = vpop.permute.xlu0 %1415
        %1417 = vrot.lane.b32.xlu0 %v1383, 2
        %v1418 = vpop.permute.xlu0 %1417
        %1419 = vrot.lane.b32.xlu0 %v1384, 2
        %v1420 = vpop.permute.xlu0 %1419
        %1421 = vrot.lane.b32.xlu0 %v1385, 2
        %v1422 = vpop.permute.xlu0 %1421
        %1423 = vrot.lane.b32.xlu0 %v1386, 2
        %v1424 = vpop.permute.xlu0 %1423
        %1425 = vrot.lane.b32.xlu0 %v1387, 2
        %v1426 = vpop.permute.xlu0 %1425
        %1427 = vrot.lane.b32.xlu0 %v1388, 2
        %v1428 = vpop.permute.xlu0 %1427
        %1429 = vrot.lane.b32.xlu0 %v1389, 2
        %v1430 = vpop.permute.xlu0 %1429
        %1431 = vrot.lane.b32.xlu0 %v1390, 2
        %v1432 = vpop.permute.xlu0 %1431
        %1447 = vst.msk [vmem:[#allocation2 + $0x2] sm:$0xff] %vm358, %v1406
        %1448 = vst.msk [vmem:[#allocation2 + $0xa] sm:$0xff] %vm358, %v1408
        %1449 = vst.msk [vmem:[#allocation2 + $0x1a] sm:$0xff] %vm358, %v1410
        %1450 = vst.msk [vmem:[#allocation2 + $0x22] sm:$0xff] %vm358, %v1412
        %1451 = vst.msk [vmem:[#allocation2 + $0x32] sm:$0xff] %vm358, %v1414
        %1452 = vst.msk [vmem:[#allocation2 + $0x3a] sm:$0xff] %vm358, %v1416
        %1453 = vst.msk [vmem:[#allocation2 + $0x4a] sm:$0xff] %vm358, %v1418
        %1454 = vst.msk [vmem:[#allocation2 + $0x52] sm:$0xff] %vm358, %v1420
        %1455 = vst.msk [vmem:[#allocation2 + $0x62] sm:$0xff] %vm358, %v1422
        %1456 = vst.msk [vmem:[#allocation2 + $0x6a] sm:$0xff] %vm358, %v1424
        %1457 = vst.msk [vmem:[#allocation2 + $0x7a] sm:$0xff] %vm358, %v1426
        %1458 = vst.msk [vmem:[#allocation2 + $0x82] sm:$0xff] %vm358, %v1428
        %1459 = vst.msk [vmem:[#allocation2 + $0x92] sm:$0xff] %vm358, %v1430
        %1460 = vst.msk [vmem:[#allocation2 + $0x9a] sm:$0xff] %vm358, %v1432
        %v1461 = vld [vmem:[#allocation2] sm:$0xff]
        %v1462 = vld [vmem:[#allocation2 + $0x8] sm:$0xff]
        %v1463 = vld [vmem:[#allocation2 + $0x10] sm:$0xf]
        %v1464 = vld [vmem:[#allocation2 + $0x18] sm:$0xff]
        %v1465 = vld [vmem:[#allocation2 + $0x20] sm:$0xff]
        %v1466 = vld [vmem:[#allocation2 + $0x28] sm:$0xf]
        %v1467 = vld [vmem:[#allocation2 + $0x30] sm:$0xff]
        %v1468 = vld [vmem:[#allocation2 + $0x38] sm:$0xff]
        %v1469 = vld [vmem:[#allocation2 + $0x40] sm:$0xf]
        %v1470 = vld [vmem:[#allocation2 + $0x48] sm:$0xff]
        %v1471 = vld [vmem:[#allocation2 + $0x50] sm:$0xff]
        %v1472 = vld [vmem:[#allocation2 + $0x58] sm:$0xf]
        %v1473 = vld [vmem:[#allocation2 + $0x60] sm:$0xff]
        %v1474 = vld [vmem:[#allocation2 + $0x68] sm:$0xff]
        %v1475 = vld [vmem:[#allocation2 + $0x70] sm:$0xf]
        %v1476 = vld [vmem:[#allocation2 + $0x78] sm:$0xff]
        %v1477 = vld [vmem:[#allocation2 + $0x80] sm:$0xff]
        %v1478 = vld [vmem:[#allocation2 + $0x88] sm:$0xf]
        %v1479 = vld [vmem:[#allocation2 + $0x90] sm:$0xff]
        %v1480 = vld [vmem:[#allocation2 + $0x98] sm:$0xff]
        %v1481 = vld [vmem:[#allocation2 + $0xa0] sm:$0xf]
        %1503 = vrot.lane.b32.xlu0 %v1461, 127
        %v1504 = vpop.permute.xlu0 %1503
        %1505 = vrot.lane.b32.xlu0 %v1462, 127
        %v1506 = vpop.permute.xlu0 %1505
        %1507 = vrot.lane.b32.xlu0 %v1463, 127
        %v1508 = vpop.permute.xlu0 %1507
        %1509 = vrot.lane.b32.xlu0 %v1464, 127
        %v1510 = vpop.permute.xlu0 %1509
        %1511 = vrot.lane.b32.xlu0 %v1465, 127
        %v1512 = vpop.permute.xlu0 %1511
        %1513 = vrot.lane.b32.xlu0 %v1466, 127
        %v1514 = vpop.permute.xlu0 %1513
        %1515 = vrot.lane.b32.xlu0 %v1467, 127
        %v1516 = vpop.permute.xlu0 %1515
        %1517 = vrot.lane.b32.xlu0 %v1468, 127
        %v1518 = vpop.permute.xlu0 %1517
        %1519 = vrot.lane.b32.xlu0 %v1469, 127
        %v1520 = vpop.permute.xlu0 %1519
        %1521 = vrot.lane.b32.xlu0 %v1470, 127
        %v1522 = vpop.permute.xlu0 %1521
        %1523 = vrot.lane.b32.xlu0 %v1471, 127
        %v1524 = vpop.permute.xlu0 %1523
        %1525 = vrot.lane.b32.xlu0 %v1472, 127
        %v1526 = vpop.permute.xlu0 %1525
        %1527 = vrot.lane.b32.xlu0 %v1473, 127
        %v1528 = vpop.permute.xlu0 %1527
        %1529 = vrot.lane.b32.xlu0 %v1474, 127
        %v1530 = vpop.permute.xlu0 %1529
        %1531 = vrot.lane.b32.xlu0 %v1475, 127
        %v1532 = vpop.permute.xlu0 %1531
        %1533 = vrot.lane.b32.xlu0 %v1476, 127
        %v1534 = vpop.permute.xlu0 %1533
        %1535 = vrot.lane.b32.xlu0 %v1477, 127
        %v1536 = vpop.permute.xlu0 %1535
        %1537 = vrot.lane.b32.xlu0 %v1478, 127
        %v1538 = vpop.permute.xlu0 %1537
        %1539 = vrot.lane.b32.xlu0 %v1479, 127
        %v1540 = vpop.permute.xlu0 %1539
        %1541 = vrot.lane.b32.xlu0 %v1480, 127
        %v1542 = vpop.permute.xlu0 %1541
        %1543 = vrot.lane.b32.xlu0 %v1481, 127
        %v1544 = vpop.permute.xlu0 %1543
        %v1566 = vadd.f32 %v1461, %v1504
        %v1567 = vadd.f32 %v1462, %v1506
        %v1568 = vadd.f32 %v1463, %v1508
        %v1569 = vadd.f32 %v1464, %v1510
        %v1570 = vadd.f32 %v1465, %v1512
        %v1571 = vadd.f32 %v1466, %v1514
        %v1572 = vadd.f32 %v1467, %v1516
        %v1573 = vadd.f32 %v1468, %v1518
        %v1574 = vadd.f32 %v1469, %v1520
        %v1575 = vadd.f32 %v1470, %v1522
        %v1576 = vadd.f32 %v1471, %v1524
        %v1577 = vadd.f32 %v1472, %v1526
        %v1578 = vadd.f32 %v1473, %v1528
        %v1579 = vadd.f32 %v1474, %v1530
        %v1580 = vadd.f32 %v1475, %v1532
        %v1581 = vadd.f32 %v1476, %v1534
        %v1582 = vadd.f32 %v1477, %v1536
        %v1583 = vadd.f32 %v1478, %v1538
        %v1584 = vadd.f32 %v1479, %v1540
        %v1585 = vadd.f32 %v1480, %v1542
        %v1586 = vadd.f32 %v1481, %v1544
        %1587 = vrot.lane.b32.xlu0 %v1461, 126
        %v1588 = vpop.permute.xlu0 %1587
        %1589 = vrot.lane.b32.xlu0 %v1462, 126
        %v1590 = vpop.permute.xlu0 %1589
        %1591 = vrot.lane.b32.xlu0 %v1463, 126
        %v1592 = vpop.permute.xlu0 %1591
        %1593 = vrot.lane.b32.xlu0 %v1464, 126
        %v1594 = vpop.permute.xlu0 %1593
        %1595 = vrot.lane.b32.xlu0 %v1465, 126
        %v1596 = vpop.permute.xlu0 %1595
        %1597 = vrot.lane.b32.xlu0 %v1466, 126
        %v1598 = vpop.permute.xlu0 %1597
        %1599 = vrot.lane.b32.xlu0 %v1467, 126
        %v1600 = vpop.permute.xlu0 %1599
        %1601 = vrot.lane.b32.xlu0 %v1468, 126
        %v1602 = vpop.permute.xlu0 %1601
        %1603 = vrot.lane.b32.xlu0 %v1469, 126
        %v1604 = vpop.permute.xlu0 %1603
        %1605 = vrot.lane.b32.xlu0 %v1470, 126
        %v1606 = vpop.permute.xlu0 %1605
        %1607 = vrot.lane.b32.xlu0 %v1471, 126
        %v1608 = vpop.permute.xlu0 %1607
        %1609 = vrot.lane.b32.xlu0 %v1472, 126
        %v1610 = vpop.permute.xlu0 %1609
        %1611 = vrot.lane.b32.xlu0 %v1473, 126
        %v1612 = vpop.permute.xlu0 %1611
        %1613 = vrot.lane.b32.xlu0 %v1474, 126
        %v1614 = vpop.permute.xlu0 %1613
        %1615 = vrot.lane.b32.xlu0 %v1475, 126
        %v1616 = vpop.permute.xlu0 %1615
        %1617 = vrot.lane.b32.xlu0 %v1476, 126
        %v1618 = vpop.permute.xlu0 %1617
        %1619 = vrot.lane.b32.xlu0 %v1477, 126
        %v1620 = vpop.permute.xlu0 %1619
        %1621 = vrot.lane.b32.xlu0 %v1478, 126
        %v1622 = vpop.permute.xlu0 %1621
        %1623 = vrot.lane.b32.xlu0 %v1479, 126
        %v1624 = vpop.permute.xlu0 %1623
        %1625 = vrot.lane.b32.xlu0 %v1480, 126
        %v1626 = vpop.permute.xlu0 %1625
        %1627 = vrot.lane.b32.xlu0 %v1481, 126
        %v1628 = vpop.permute.xlu0 %1627
        %v1650 = vadd.f32 %v1566, %v1588
        %v1651 = vadd.f32 %v1567, %v1590
        %v1652 = vadd.f32 %v1568, %v1592
        %v1653 = vadd.f32 %v1569, %v1594
        %v1654 = vadd.f32 %v1570, %v1596
        %v1655 = vadd.f32 %v1571, %v1598
        %v1656 = vadd.f32 %v1572, %v1600
        %v1657 = vadd.f32 %v1573, %v1602
        %v1658 = vadd.f32 %v1574, %v1604
        %v1659 = vadd.f32 %v1575, %v1606
        %v1660 = vadd.f32 %v1576, %v1608
        %v1661 = vadd.f32 %v1577, %v1610
        %v1662 = vadd.f32 %v1578, %v1612
        %v1663 = vadd.f32 %v1579, %v1614
        %v1664 = vadd.f32 %v1580, %v1616
        %v1665 = vadd.f32 %v1581, %v1618
        %v1666 = vadd.f32 %v1582, %v1620
        %v1667 = vadd.f32 %v1583, %v1622
        %v1668 = vadd.f32 %v1584, %v1624
        %v1669 = vadd.f32 %v1585, %v1626
        %v1670 = vadd.f32 %v1586, %v1628
        %1671 = vrot.lane.b32.xlu0 %v1461, 125
        %v1672 = vpop.permute.xlu0 %1671
        %1673 = vrot.lane.b32.xlu0 %v1462, 125
        %v1674 = vpop.permute.xlu0 %1673
        %1675 = vrot.lane.b32.xlu0 %v1463, 125
        %v1676 = vpop.permute.xlu0 %1675
        %1677 = vrot.lane.b32.xlu0 %v1464, 125
        %v1678 = vpop.permute.xlu0 %1677
        %1679 = vrot.lane.b32.xlu0 %v1465, 125
        %v1680 = vpop.permute.xlu0 %1679
        %1681 = vrot.lane.b32.xlu0 %v1466, 125
        %v1682 = vpop.permute.xlu0 %1681
        %1683 = vrot.lane.b32.xlu0 %v1467, 125
        %v1684 = vpop.permute.xlu0 %1683
        %1685 = vrot.lane.b32.xlu0 %v1468, 125
        %v1686 = vpop.permute.xlu0 %1685
        %1687 = vrot.lane.b32.xlu0 %v1469, 125
        %v1688 = vpop.permute.xlu0 %1687
        %1689 = vrot.lane.b32.xlu0 %v1470, 125
        %v1690 = vpop.permute.xlu0 %1689
        %1691 = vrot.lane.b32.xlu0 %v1471, 125
        %v1692 = vpop.permute.xlu0 %1691
        %1693 = vrot.lane.b32.xlu0 %v1472, 125
        %v1694 = vpop.permute.xlu0 %1693
        %1695 = vrot.lane.b32.xlu0 %v1473, 125
        %v1696 = vpop.permute.xlu0 %1695
        %1697 = vrot.lane.b32.xlu0 %v1474, 125
        %v1698 = vpop.permute.xlu0 %1697
        %1699 = vrot.lane.b32.xlu0 %v1475, 125
        %v1700 = vpop.permute.xlu0 %1699
        %1701 = vrot.lane.b32.xlu0 %v1476, 125
        %v1702 = vpop.permute.xlu0 %1701
        %1703 = vrot.lane.b32.xlu0 %v1477, 125
        %v1704 = vpop.permute.xlu0 %1703
        %1705 = vrot.lane.b32.xlu0 %v1478, 125
        %v1706 = vpop.permute.xlu0 %1705
        %1707 = vrot.lane.b32.xlu0 %v1479, 125
        %v1708 = vpop.permute.xlu0 %1707
        %1709 = vrot.lane.b32.xlu0 %v1480, 125
        %v1710 = vpop.permute.xlu0 %1709
        %1711 = vrot.lane.b32.xlu0 %v1481, 125
        %v1712 = vpop.permute.xlu0 %1711
        %v1734 = vadd.f32 %v1650, %v1672
        %v1735 = vadd.f32 %v1651, %v1674
        %v1736 = vadd.f32 %v1652, %v1676
        %v1737 = vadd.f32 %v1653, %v1678
        %v1738 = vadd.f32 %v1654, %v1680
        %v1739 = vadd.f32 %v1655, %v1682
        %v1740 = vadd.f32 %v1656, %v1684
        %v1741 = vadd.f32 %v1657, %v1686
        %v1742 = vadd.f32 %v1658, %v1688
        %v1743 = vadd.f32 %v1659, %v1690
        %v1744 = vadd.f32 %v1660, %v1692
        %v1745 = vadd.f32 %v1661, %v1694
        %v1746 = vadd.f32 %v1662, %v1696
        %v1747 = vadd.f32 %v1663, %v1698
        %v1748 = vadd.f32 %v1664, %v1700
        %v1749 = vadd.f32 %v1665, %v1702
        %v1750 = vadd.f32 %v1666, %v1704
        %v1751 = vadd.f32 %v1667, %v1706
        %v1752 = vadd.f32 %v1668, %v1708
        %v1753 = vadd.f32 %v1669, %v1710
        %v1754 = vadd.f32 %v1670, %v1712
        %1755 = vrot.lane.b32.xlu0 %v1461, 124
        %v1756 = vpop.permute.xlu0 %1755
        %1757 = vrot.lane.b32.xlu0 %v1462, 124
        %v1758 = vpop.permute.xlu0 %1757
        %1759 = vrot.lane.b32.xlu0 %v1463, 124
        %v1760 = vpop.permute.xlu0 %1759
        %1761 = vrot.lane.b32.xlu0 %v1464, 124
        %v1762 = vpop.permute.xlu0 %1761
        %1763 = vrot.lane.b32.xlu0 %v1465, 124
        %v1764 = vpop.permute.xlu0 %1763
        %1765 = vrot.lane.b32.xlu0 %v1466, 124
        %v1766 = vpop.permute.xlu0 %1765
        %1767 = vrot.lane.b32.xlu0 %v1467, 124
        %v1768 = vpop.permute.xlu0 %1767
        %1769 = vrot.lane.b32.xlu0 %v1468, 124
        %v1770 = vpop.permute.xlu0 %1769
        %1771 = vrot.lane.b32.xlu0 %v1469, 124
        %v1772 = vpop.permute.xlu0 %1771
        %1773 = vrot.lane.b32.xlu0 %v1470, 124
        %v1774 = vpop.permute.xlu0 %1773
        %1775 = vrot.lane.b32.xlu0 %v1471, 124
        %v1776 = vpop.permute.xlu0 %1775
        %1777 = vrot.lane.b32.xlu0 %v1472, 124
        %v1778 = vpop.permute.xlu0 %1777
        %1779 = vrot.lane.b32.xlu0 %v1473, 124
        %v1780 = vpop.permute.xlu0 %1779
        %1781 = vrot.lane.b32.xlu0 %v1474, 124
        %v1782 = vpop.permute.xlu0 %1781
        %1783 = vrot.lane.b32.xlu0 %v1475, 124
        %v1784 = vpop.permute.xlu0 %1783
        %1785 = vrot.lane.b32.xlu0 %v1476, 124
        %v1786 = vpop.permute.xlu0 %1785
        %1787 = vrot.lane.b32.xlu0 %v1477, 124
        %v1788 = vpop.permute.xlu0 %1787
        %1789 = vrot.lane.b32.xlu0 %v1478, 124
        %v1790 = vpop.permute.xlu0 %1789
        %1791 = vrot.lane.b32.xlu0 %v1479, 124
        %v1792 = vpop.permute.xlu0 %1791
        %1793 = vrot.lane.b32.xlu0 %v1480, 124
        %v1794 = vpop.permute.xlu0 %1793
        %1795 = vrot.lane.b32.xlu0 %v1481, 124
        %v1796 = vpop.permute.xlu0 %1795
        %v1818 = vadd.f32 %v1734, %v1756
        %v1819 = vadd.f32 %v1735, %v1758
        %v1820 = vadd.f32 %v1736, %v1760
        %v1821 = vadd.f32 %v1737, %v1762
        %v1822 = vadd.f32 %v1738, %v1764
        %v1823 = vadd.f32 %v1739, %v1766
        %v1824 = vadd.f32 %v1740, %v1768
        %v1825 = vadd.f32 %v1741, %v1770
        %v1826 = vadd.f32 %v1742, %v1772
        %v1827 = vadd.f32 %v1743, %v1774
        %v1828 = vadd.f32 %v1744, %v1776
        %v1829 = vadd.f32 %v1745, %v1778
        %v1830 = vadd.f32 %v1746, %v1780
        %v1831 = vadd.f32 %v1747, %v1782
        %v1832 = vadd.f32 %v1748, %v1784
        %v1833 = vadd.f32 %v1749, %v1786
        %v1834 = vadd.f32 %v1750, %v1788
        %v1835 = vadd.f32 %v1751, %v1790
        %v1836 = vadd.f32 %v1752, %v1792
        %v1837 = vadd.f32 %v1753, %v1794
        %v1838 = vadd.f32 %v1754, %v1796
        %v1860 = vrot.slane %v1818, 1
        %v1861 = vrot.slane %v1819, 1
        %v1862 = vsel %vm991, %v1860, %v1861
        %v1863 = vrot.slane %v1820, 1
        %v1864 = vsel %vm991, %v1861, %v1863
        %v1865 = vrot.slane %v1821, 1
        %v1866 = vrot.slane %v1822, 1
        %v1867 = vsel %vm991, %v1865, %v1866
        %v1868 = vrot.slane %v1823, 1
        %v1869 = vsel %vm991, %v1866, %v1868
        %v1870 = vrot.slane %v1824, 1
        %v1871 = vrot.slane %v1825, 1
        %v1872 = vsel %vm991, %v1870, %v1871
        %v1873 = vrot.slane %v1826, 1
        %v1874 = vsel %vm991, %v1871, %v1873
        %v1875 = vrot.slane %v1827, 1
        %v1876 = vrot.slane %v1828, 1
        %v1877 = vsel %vm991, %v1875, %v1876
        %v1878 = vrot.slane %v1829, 1
        %v1879 = vsel %vm991, %v1876, %v1878
        %v1880 = vrot.slane %v1830, 1
        %v1881 = vrot.slane %v1831, 1
        %v1882 = vsel %vm991, %v1880, %v1881
        %v1883 = vrot.slane %v1832, 1
        %v1884 = vsel %vm991, %v1881, %v1883
        %v1885 = vrot.slane %v1833, 1
        %v1886 = vrot.slane %v1834, 1
        %v1887 = vsel %vm991, %v1885, %v1886
        %v1888 = vrot.slane %v1835, 1
        %v1889 = vsel %vm991, %v1886, %v1888
        %v1890 = vrot.slane %v1836, 1
        %v1891 = vrot.slane %v1837, 1
        %v1892 = vsel %vm991, %v1890, %v1891
        %v1893 = vrot.slane %v1838, 1
        %v1894 = vsel %vm991, %v1891, %v1893
        %v1909 = vadd.f32 %v1818, %v1862
        %v1910 = vadd.f32 %v1819, %v1864
        %v1911 = vadd.f32 %v1821, %v1867
        %v1912 = vadd.f32 %v1822, %v1869
        %v1913 = vadd.f32 %v1824, %v1872
        %v1914 = vadd.f32 %v1825, %v1874
        %v1915 = vadd.f32 %v1827, %v1877
        %v1916 = vadd.f32 %v1828, %v1879
        %v1917 = vadd.f32 %v1830, %v1882
        %v1918 = vadd.f32 %v1831, %v1884
        %v1919 = vadd.f32 %v1833, %v1887
        %v1920 = vadd.f32 %v1834, %v1889
        %v1921 = vadd.f32 %v1836, %v1892
        %v1922 = vadd.f32 %v1837, %v1894
        %v1923 = vrot.slane %v1818, 2
        %v1924 = vrot.slane %v1819, 2
        %v1925 = vsel %vm1112, %v1923, %v1924
        %v1926 = vrot.slane %v1820, 2
        %v1927 = vsel %vm1112, %v1924, %v1926
        %v1928 = vrot.slane %v1821, 2
        %v1929 = vrot.slane %v1822, 2
        %v1930 = vsel %vm1112, %v1928, %v1929
        %v1931 = vrot.slane %v1823, 2
        %v1932 = vsel %vm1112, %v1929, %v1931
        %v1933 = vrot.slane %v1824, 2
        %v1934 = vrot.slane %v1825, 2
        %v1935 = vsel %vm1112, %v1933, %v1934
        %v1936 = vrot.slane %v1826, 2
        %v1937 = vsel %vm1112, %v1934, %v1936
        %v1938 = vrot.slane %v1827, 2
        %v1939 = vrot.slane %v1828, 2
        %v1940 = vsel %vm1112, %v1938, %v1939
        %v1941 = vrot.slane %v1829, 2
        %v1942 = vsel %vm1112, %v1939, %v1941
        %v1943 = vrot.slane %v1830, 2
        %v1944 = vrot.slane %v1831, 2
        %v1945 = vsel %vm1112, %v1943, %v1944
        %v1946 = vrot.slane %v1832, 2
        %v1947 = vsel %vm1112, %v1944, %v1946
        %v1948 = vrot.slane %v1833, 2
        %v1949 = vrot.slane %v1834, 2
        %v1950 = vsel %vm1112, %v1948, %v1949
        %v1951 = vrot.slane %v1835, 2
        %v1952 = vsel %vm1112, %v1949, %v1951
        %v1953 = vrot.slane %v1836, 2
        %v1954 = vrot.slane %v1837, 2
        %v1955 = vsel %vm1112, %v1953, %v1954
        %v1956 = vrot.slane %v1838, 2
        %v1957 = vsel %vm1112, %v1954, %v1956
        %v1972 = vadd.f32 %v1909, %v1925
        %v1973 = vadd.f32 %v1910, %v1927
        %v1974 = vadd.f32 %v1911, %v1930
        %v1975 = vadd.f32 %v1912, %v1932
        %v1976 = vadd.f32 %v1913, %v1935
        %v1977 = vadd.f32 %v1914, %v1937
        %v1978 = vadd.f32 %v1915, %v1940
        %v1979 = vadd.f32 %v1916, %v1942
        %v1980 = vadd.f32 %v1917, %v1945
        %v1981 = vadd.f32 %v1918, %v1947
        %v1982 = vadd.f32 %v1919, %v1950
        %v1983 = vadd.f32 %v1920, %v1952
        %v1984 = vadd.f32 %v1921, %v1955
        %v1985 = vadd.f32 %v1922, %v1957
        %v1986 = vrot.slane %v1818, 3
        %v1987 = vrot.slane %v1819, 3
        %v1988 = vsel %vm1185, %v1986, %v1987
        %v1989 = vrot.slane %v1820, 3
        %v1990 = vsel %vm1185, %v1987, %v1989
        %v1991 = vrot.slane %v1821, 3
        %v1992 = vrot.slane %v1822, 3
        %v1993 = vsel %vm1185, %v1991, %v1992
        %v1994 = vrot.slane %v1823, 3
        %v1995 = vsel %vm1185, %v1992, %v1994
        %v1996 = vrot.slane %v1824, 3
        %v1997 = vrot.slane %v1825, 3
        %v1998 = vsel %vm1185, %v1996, %v1997
        %v1999 = vrot.slane %v1826, 3
        %v2000 = vsel %vm1185, %v1997, %v1999
        %v2001 = vrot.slane %v1827, 3
        %v2002 = vrot.slane %v1828, 3
        %v2003 = vsel %vm1185, %v2001, %v2002
        %v2004 = vrot.slane %v1829, 3
        %v2005 = vsel %vm1185, %v2002, %v2004
        %v2006 = vrot.slane %v1830, 3
        %v2007 = vrot.slane %v1831, 3
        %v2008 = vsel %vm1185, %v2006, %v2007
        %v2009 = vrot.slane %v1832, 3
        %v2010 = vsel %vm1185, %v2007, %v2009
        %v2011 = vrot.slane %v1833, 3
        %v2012 = vrot.slane %v1834, 3
        %v2013 = vsel %vm1185, %v2011, %v2012
        %v2014 = vrot.slane %v1835, 3
        %v2015 = vsel %vm1185, %v2012, %v2014
        %v2016 = vrot.slane %v1836, 3
        %v2017 = vrot.slane %v1837, 3
        %v2018 = vsel %vm1185, %v2016, %v2017
        %v2019 = vrot.slane %v1838, 3
        %v2020 = vsel %vm1185, %v2017, %v2019
        %v2035 = vadd.f32 %v1972, %v1988
        %v2036 = vadd.f32 %v1973, %v1990
        %v2037 = vadd.f32 %v1974, %v1993
        %v2038 = vadd.f32 %v1975, %v1995
        %v2039 = vadd.f32 %v1976, %v1998
        %v2040 = vadd.f32 %v1977, %v2000
        %v2041 = vadd.f32 %v1978, %v2003
        %v2042 = vadd.f32 %v1979, %v2005
        %v2043 = vadd.f32 %v1980, %v2008
        %v2044 = vadd.f32 %v1981, %v2010
        %v2045 = vadd.f32 %v1982, %v2013
        %v2046 = vadd.f32 %v1983, %v2015
        %v2047 = vadd.f32 %v1984, %v2018
        %v2048 = vadd.f32 %v1985, %v2020
        %v2049 = vrot.slane %v1818, 4
        %v2050 = vrot.slane %v1819, 4
        %v2051 = vsel %vm1290, %v2049, %v2050
        %v2052 = vrot.slane %v1820, 4
        %v2053 = vsel %vm1290, %v2050, %v2052
        %v2054 = vrot.slane %v1821, 4
        %v2055 = vrot.slane %v1822, 4
        %v2056 = vsel %vm1290, %v2054, %v2055
        %v2057 = vrot.slane %v1823, 4
        %v2058 = vsel %vm1290, %v2055, %v2057
        %v2059 = vrot.slane %v1824, 4
        %v2060 = vrot.slane %v1825, 4
        %v2061 = vsel %vm1290, %v2059, %v2060
        %v2062 = vrot.slane %v1826, 4
        %v2063 = vsel %vm1290, %v2060, %v2062
        %v2064 = vrot.slane %v1827, 4
        %v2065 = vrot.slane %v1828, 4
        %v2066 = vsel %vm1290, %v2064, %v2065
        %v2067 = vrot.slane %v1829, 4
        %v2068 = vsel %vm1290, %v2065, %v2067
        %v2069 = vrot.slane %v1830, 4
        %v2070 = vrot.slane %v1831, 4
        %v2071 = vsel %vm1290, %v2069, %v2070
        %v2072 = vrot.slane %v1832, 4
        %v2073 = vsel %vm1290, %v2070, %v2072
        %v2074 = vrot.slane %v1833, 4
        %v2075 = vrot.slane %v1834, 4
        %v2076 = vsel %vm1290, %v2074, %v2075
        %v2077 = vrot.slane %v1835, 4
        %v2078 = vsel %vm1290, %v2075, %v2077
        %v2079 = vrot.slane %v1836, 4
        %v2080 = vrot.slane %v1837, 4
        %v2081 = vsel %vm1290, %v2079, %v2080
        %v2082 = vrot.slane %v1838, 4
        %v2083 = vsel %vm1290, %v2080, %v2082
        %v2098 = vadd.f32 %v2035, %v2051
        %v2099 = vadd.f32 %v2036, %v2053
        %v2100 = vadd.f32 %v2037, %v2056
        %v2101 = vadd.f32 %v2038, %v2058
        %v2102 = vadd.f32 %v2039, %v2061
        %v2103 = vadd.f32 %v2040, %v2063
        %v2104 = vadd.f32 %v2041, %v2066
        %v2105 = vadd.f32 %v2042, %v2068
        %v2106 = vadd.f32 %v2043, %v2071
        %v2107 = vadd.f32 %v2044, %v2073
        %v2108 = vadd.f32 %v2045, %v2076
        %v2109 = vadd.f32 %v2046, %v2078
        %v2110 = vadd.f32 %v2047, %v2081
        %v2111 = vadd.f32 %v2048, %v2083
        %v2112 = vmul.f32 %v2098, 0.04
        %v2113 = vmul.f32 %v2099, 0.04
        %v2114 = vmul.f32 %v2100, 0.04
        %v2115 = vmul.f32 %v2101, 0.04
        %v2116 = vmul.f32 %v2102, 0.04
        %v2117 = vmul.f32 %v2103, 0.04
        %v2118 = vmul.f32 %v2104, 0.04
        %v2119 = vmul.f32 %v2105, 0.04
        %v2120 = vmul.f32 %v2106, 0.04
        %v2121 = vmul.f32 %v2107, 0.04
        %v2122 = vmul.f32 %v2108, 0.04
        %v2123 = vmul.f32 %v2109, 0.04
        %v2124 = vmul.f32 %v2110, 0.04
        %v2125 = vmul.f32 %v2111, 0.04
        %vm2126 = vcmask 130048
        %v2127 = vsel %vm2126, %v1377, 0.0
        %2128 = vadd.xlane.f32.xlu0 %v2127
        %v2129 = vpop.xlane.xlu0 %2128
        %v2130 = vsel %vm2126, %v1378, 0.0
        %2131 = vadd.xlane.f32.xlu0 %v2130
        %v2132 = vpop.xlane.xlu0 %2131
        %v2133 = vsel %vm2126, %v1379, 0.0
        %2134 = vadd.xlane.f32.xlu0 %v2133
        %v2135 = vpop.xlane.xlu0 %2134
        %v2136 = vsel %vm2126, %v1380, 0.0
        %2137 = vadd.xlane.f32.xlu0 %v2136
        %v2138 = vpop.xlane.xlu0 %2137
        %v2139 = vsel %vm2126, %v1381, 0.0
        %2140 = vadd.xlane.f32.xlu0 %v2139
        %v2141 = vpop.xlane.xlu0 %2140
        %v2142 = vsel %vm2126, %v1382, 0.0
        %2143 = vadd.xlane.f32.xlu0 %v2142
        %v2144 = vpop.xlane.xlu0 %2143
        %v2145 = vsel %vm2126, %v1383, 0.0
        %2146 = vadd.xlane.f32.xlu0 %v2145
        %v2147 = vpop.xlane.xlu0 %2146
        %v2148 = vsel %vm2126, %v1384, 0.0
        %2149 = vadd.xlane.f32.xlu0 %v2148
        %v2150 = vpop.xlane.xlu0 %2149
        %v2151 = vsel %vm2126, %v1385, 0.0
        %2152 = vadd.xlane.f32.xlu0 %v2151
        %v2153 = vpop.xlane.xlu0 %2152
        %v2154 = vsel %vm2126, %v1386, 0.0
        %2155 = vadd.xlane.f32.xlu0 %v2154
        %v2156 = vpop.xlane.xlu0 %2155
        %v2157 = vsel %vm2126, %v1387, 0.0
        %2158 = vadd.xlane.f32.xlu0 %v2157
        %v2159 = vpop.xlane.xlu0 %2158
        %v2160 = vsel %vm2126, %v1388, 0.0
        %2161 = vadd.xlane.f32.xlu0 %v2160
        %v2162 = vpop.xlane.xlu0 %2161
        %v2163 = vsel %vm2126, %v1389, 0.0
        %2164 = vadd.xlane.f32.xlu0 %v2163
        %v2165 = vpop.xlane.xlu0 %2164
        %v2166 = vsel %vm2126, %v1390, 0.0
        %2167 = vadd.xlane.f32.xlu0 %v2166
        %v2168 = vpop.xlane.xlu0 %2167
        %v2169 = vadd.f32 %v2129, %v2132
        %v2170 = vrot.slane %v2169, 4
        %v2171 = vadd.f32 %v2169, %v2170
        %v2172 = vrot.slane %v2171, 2
        %v2173 = vadd.f32 %v2171, %v2172
        %v2174 = vrot.slane %v2173, 1
        %v2175 = vadd.f32 %v2173, %v2174
        %v2176 = vadd.f32 %v2135, %v2138
        %v2177 = vrot.slane %v2176, 4
        %v2178 = vadd.f32 %v2176, %v2177
        %v2179 = vrot.slane %v2178, 2
        %v2180 = vadd.f32 %v2178, %v2179
        %v2181 = vrot.slane %v2180, 1
        %v2182 = vadd.f32 %v2180, %v2181
        %v2183 = vadd.f32 %v2141, %v2144
        %v2184 = vrot.slane %v2183, 4
        %v2185 = vadd.f32 %v2183, %v2184
        %v2186 = vrot.slane %v2185, 2
        %v2187 = vadd.f32 %v2185, %v2186
        %v2188 = vrot.slane %v2187, 1
        %v2189 = vadd.f32 %v2187, %v2188
        %v2190 = vadd.f32 %v2147, %v2150
        %v2191 = vrot.slane %v2190, 4
        %v2192 = vadd.f32 %v2190, %v2191
        %v2193 = vrot.slane %v2192, 2
        %v2194 = vadd.f32 %v2192, %v2193
        %v2195 = vrot.slane %v2194, 1
        %v2196 = vadd.f32 %v2194, %v2195
        %v2197 = vadd.f32 %v2153, %v2156
        %v2198 = vrot.slane %v2197, 4
        %v2199 = vadd.f32 %v2197, %v2198
        %v2200 = vrot.slane %v2199, 2
        %v2201 = vadd.f32 %v2199, %v2200
        %v2202 = vrot.slane %v2201, 1
        %v2203 = vadd.f32 %v2201, %v2202
        %v2204 = vadd.f32 %v2159, %v2162
        %v2205 = vrot.slane %v2204, 4
        %v2206 = vadd.f32 %v2204, %v2205
        %v2207 = vrot.slane %v2206, 2
        %v2208 = vadd.f32 %v2206, %v2207
        %v2209 = vrot.slane %v2208, 1
        %v2210 = vadd.f32 %v2208, %v2209
        %v2211 = vadd.f32 %v2165, %v2168
        %v2212 = vrot.slane %v2211, 4
        %v2213 = vadd.f32 %v2211, %v2212
        %v2214 = vrot.slane %v2213, 2
        %v2215 = vadd.f32 %v2213, %v2214
        %v2216 = vrot.slane %v2215, 1
        %v2217 = vadd.f32 %v2215, %v2216
        %v2218 = vmul.f32 %v2175, 0.00390625
        %v2219 = vmul.f32 %v2182, 0.00390625
        %v2220 = vmul.f32 %v2189, 0.00390625
        %v2221 = vmul.f32 %v2196, 0.00390625
        %v2222 = vmul.f32 %v2203, 0.00390625
        %v2223 = vmul.f32 %v2210, 0.00390625
        %v2224 = vmul.f32 %v2217, 0.00390625
        %v2225 = vsub.f32 %v1377, %v2218
        %v2226 = vsub.f32 %v1378, %v2218
        %v2227 = vsub.f32 %v1379, %v2219
        %v2228 = vsub.f32 %v1380, %v2219
        %v2229 = vsub.f32 %v1381, %v2220
        %v2230 = vsub.f32 %v1382, %v2220
        %v2231 = vsub.f32 %v1383, %v2221
        %v2232 = vsub.f32 %v1384, %v2221
        %v2233 = vsub.f32 %v1385, %v2222
        %v2234 = vsub.f32 %v1386, %v2222
        %v2235 = vsub.f32 %v1387, %v2223
        %v2236 = vsub.f32 %v1388, %v2223
        %v2237 = vsub.f32 %v1389, %v2224
        %v2238 = vsub.f32 %v1390, %v2224
        %v2239 = vmul.f32 %v2225, %v2225
        %v2240 = vmul.f32 %v2226, %v2226
        %v2241 = vmul.f32 %v2227, %v2227
        %v2242 = vmul.f32 %v2228, %v2228
        %v2243 = vmul.f32 %v2229, %v2229
        %v2244 = vmul.f32 %v2230, %v2230
        %v2245 = vmul.f32 %v2231, %v2231
        %v2246 = vmul.f32 %v2232, %v2232
        %v2247 = vmul.f32 %v2233, %v2233
        %v2248 = vmul.f32 %v2234, %v2234
        %v2249 = vmul.f32 %v2235, %v2235
        %v2250 = vmul.f32 %v2236, %v2236
        %v2251 = vmul.f32 %v2237, %v2237
        %v2252 = vmul.f32 %v2238, %v2238
        %v2253 = vsel %vm2126, %v2239, 0.0
        %2254 = vadd.xlane.f32.xlu0 %v2253
        %v2255 = vpop.xlane.xlu0 %2254
        %v2256 = vsel %vm2126, %v2240, 0.0
        %2257 = vadd.xlane.f32.xlu0 %v2256
        %v2258 = vpop.xlane.xlu0 %2257
        %v2259 = vsel %vm2126, %v2241, 0.0
        %2260 = vadd.xlane.f32.xlu0 %v2259
        %v2261 = vpop.xlane.xlu0 %2260
        %v2262 = vsel %vm2126, %v2242, 0.0
        %2263 = vadd.xlane.f32.xlu0 %v2262
        %v2264 = vpop.xlane.xlu0 %2263
        %v2265 = vsel %vm2126, %v2243, 0.0
        %2266 = vadd.xlane.f32.xlu0 %v2265
        %v2267 = vpop.xlane.xlu0 %2266
        %v2268 = vsel %vm2126, %v2244, 0.0
        %2269 = vadd.xlane.f32.xlu0 %v2268
        %v2270 = vpop.xlane.xlu0 %2269
        %v2271 = vsel %vm2126, %v2245, 0.0
        %2272 = vadd.xlane.f32.xlu0 %v2271
        %v2273 = vpop.xlane.xlu0 %2272
        %v2274 = vsel %vm2126, %v2246, 0.0
        %2275 = vadd.xlane.f32.xlu0 %v2274
        %v2276 = vpop.xlane.xlu0 %2275
        %v2277 = vsel %vm2126, %v2247, 0.0
        %2278 = vadd.xlane.f32.xlu0 %v2277
        %v2279 = vpop.xlane.xlu0 %2278
        %v2280 = vsel %vm2126, %v2248, 0.0
        %2281 = vadd.xlane.f32.xlu0 %v2280
        %v2282 = vpop.xlane.xlu0 %2281
        %v2283 = vsel %vm2126, %v2249, 0.0
        %2284 = vadd.xlane.f32.xlu0 %v2283
        %v2285 = vpop.xlane.xlu0 %2284
        %v2286 = vsel %vm2126, %v2250, 0.0
        %2287 = vadd.xlane.f32.xlu0 %v2286
        %v2288 = vpop.xlane.xlu0 %2287
        %v2289 = vsel %vm2126, %v2251, 0.0
        %2290 = vadd.xlane.f32.xlu0 %v2289
        %v2291 = vpop.xlane.xlu0 %2290
        %v2292 = vsel %vm2126, %v2252, 0.0
        %2293 = vadd.xlane.f32.xlu0 %v2292
        %v2294 = vpop.xlane.xlu0 %2293
        %v2295 = vadd.f32 %v2255, %v2258
        %v2296 = vrot.slane %v2295, 4
        %v2297 = vadd.f32 %v2295, %v2296
        %v2298 = vrot.slane %v2297, 2
        %v2299 = vadd.f32 %v2297, %v2298
        %v2300 = vrot.slane %v2299, 1
        %v2301 = vadd.f32 %v2299, %v2300
        %v2302 = vadd.f32 %v2261, %v2264
        %v2303 = vrot.slane %v2302, 4
        %v2304 = vadd.f32 %v2302, %v2303
        %v2305 = vrot.slane %v2304, 2
        %v2306 = vadd.f32 %v2304, %v2305
        %v2307 = vrot.slane %v2306, 1
        %v2308 = vadd.f32 %v2306, %v2307
        %v2309 = vadd.f32 %v2267, %v2270
        %v2310 = vrot.slane %v2309, 4
        %v2311 = vadd.f32 %v2309, %v2310
        %v2312 = vrot.slane %v2311, 2
        %v2313 = vadd.f32 %v2311, %v2312
        %v2314 = vrot.slane %v2313, 1
        %v2315 = vadd.f32 %v2313, %v2314
        %v2316 = vadd.f32 %v2273, %v2276
        %v2317 = vrot.slane %v2316, 4
        %v2318 = vadd.f32 %v2316, %v2317
        %v2319 = vrot.slane %v2318, 2
        %v2320 = vadd.f32 %v2318, %v2319
        %v2321 = vrot.slane %v2320, 1
        %v2322 = vadd.f32 %v2320, %v2321
        %v2323 = vadd.f32 %v2279, %v2282
        %v2324 = vrot.slane %v2323, 4
        %v2325 = vadd.f32 %v2323, %v2324
        %v2326 = vrot.slane %v2325, 2
        %v2327 = vadd.f32 %v2325, %v2326
        %v2328 = vrot.slane %v2327, 1
        %v2329 = vadd.f32 %v2327, %v2328
        %v2330 = vadd.f32 %v2285, %v2288
        %v2331 = vrot.slane %v2330, 4
        %v2332 = vadd.f32 %v2330, %v2331
        %v2333 = vrot.slane %v2332, 2
        %v2334 = vadd.f32 %v2332, %v2333
        %v2335 = vrot.slane %v2334, 1
        %v2336 = vadd.f32 %v2334, %v2335
        %v2337 = vadd.f32 %v2291, %v2294
        %v2338 = vrot.slane %v2337, 4
        %v2339 = vadd.f32 %v2337, %v2338
        %v2340 = vrot.slane %v2339, 2
        %v2341 = vadd.f32 %v2339, %v2340
        %v2342 = vrot.slane %v2341, 1
        %v2343 = vadd.f32 %v2341, %v2342
        %v2344 = vmul.f32 %v2301, 0.003921569
        %v2345 = vmul.f32 %v2308, 0.003921569
        %v2346 = vmul.f32 %v2315, 0.003921569
        %v2347 = vmul.f32 %v2322, 0.003921569
        %v2348 = vmul.f32 %v2329, 0.003921569
        %v2349 = vmul.f32 %v2336, 0.003921569
        %v2350 = vmul.f32 %v2343, 0.003921569
        %v2351 = vmax.f32 %v2344, 0.0
        %v2352 = vmax.f32 %v2345, 0.0
        %v2353 = vmax.f32 %v2346, 0.0
        %v2354 = vmax.f32 %v2347, 0.0
        %v2355 = vmax.f32 %v2348, 0.0
        %v2356 = vmax.f32 %v2349, 0.0
        %v2357 = vmax.f32 %v2350, 0.0
        %v2358 = vrsqrt.pop %v2351
        %v2359 = vmul.f32 %v2351, %v2358
        %vm2360 = vcmp.eq.f32.partialorder %v2351, inf
        %v2361 = vsel %vm2360, %v2351, %v2359
        %vm2362 = vcmp.eq.f32.partialorder %v2351, 0.0
        %v2363 = vand.u32 %v2351, 2147483648
        %v2364 = vsel %vm2362, %v2363, %v2361
        %v2365 = vrsqrt.pop %v2352
        %v2366 = vmul.f32 %v2352, %v2365
        %vm2367 = vcmp.eq.f32.partialorder %v2352, inf
        %v2368 = vsel %vm2367, %v2352, %v2366
        %vm2369 = vcmp.eq.f32.partialorder %v2352, 0.0
        %v2370 = vand.u32 %v2352, 2147483648
        %v2371 = vsel %vm2369, %v2370, %v2368
        %v2372 = vrsqrt.pop %v2353
        %v2373 = vmul.f32 %v2353, %v2372
        %vm2374 = vcmp.eq.f32.partialorder %v2353, inf
        %v2375 = vsel %vm2374, %v2353, %v2373
        %vm2376 = vcmp.eq.f32.partialorder %v2353, 0.0
        %v2377 = vand.u32 %v2353, 2147483648
        %v2378 = vsel %vm2376, %v2377, %v2375
        %v2379 = vrsqrt.pop %v2354
        %v2380 = vmul.f32 %v2354, %v2379
        %vm2381 = vcmp.eq.f32.partialorder %v2354, inf
        %v2382 = vsel %vm2381, %v2354, %v2380
        %vm2383 = vcmp.eq.f32.partialorder %v2354, 0.0
        %v2384 = vand.u32 %v2354, 2147483648
        %v2385 = vsel %vm2383, %v2384, %v2382
        %v2386 = vrsqrt.pop %v2355
        %v2387 = vmul.f32 %v2355, %v2386
        %vm2388 = vcmp.eq.f32.partialorder %v2355, inf
        %v2389 = vsel %vm2388, %v2355, %v2387
        %vm2390 = vcmp.eq.f32.partialorder %v2355, 0.0
        %v2391 = vand.u32 %v2355, 2147483648
        %v2392 = vsel %vm2390, %v2391, %v2389
        %v2393 = vrsqrt.pop %v2356
        %v2394 = vmul.f32 %v2356, %v2393
        %vm2395 = vcmp.eq.f32.partialorder %v2356, inf
        %v2396 = vsel %vm2395, %v2356, %v2394
        %vm2397 = vcmp.eq.f32.partialorder %v2356, 0.0
        %v2398 = vand.u32 %v2356, 2147483648
        %v2399 = vsel %vm2397, %v2398, %v2396
        %v2400 = vrsqrt.pop %v2357
        %v2401 = vmul.f32 %v2357, %v2400
        %vm2402 = vcmp.eq.f32.partialorder %v2357, inf
        %v2403 = vsel %vm2402, %v2357, %v2401
        %vm2404 = vcmp.eq.f32.partialorder %v2357, 0.0
        %v2405 = vand.u32 %v2357, 2147483648
        %v2406 = vsel %vm2404, %v2405, %v2403
        %v2407 = vmul.f32 %v2364, 0.1
        %v2408 = vmul.f32 %v2371, 0.1
        %v2409 = vmul.f32 %v2378, 0.1
        %v2410 = vmul.f32 %v2385, 0.1
        %v2411 = vmul.f32 %v2392, 0.1
        %v2412 = vmul.f32 %v2399, 0.1
        %v2413 = vmul.f32 %v2406, 0.1
        %v2414 = vadd.f32 %v2112, %v2407
        %v2415 = vadd.f32 %v2113, %v2407
        %v2416 = vadd.f32 %v2114, %v2408
        %v2417 = vadd.f32 %v2115, %v2408
        %v2418 = vadd.f32 %v2116, %v2409
        %v2419 = vadd.f32 %v2117, %v2409
        %v2420 = vadd.f32 %v2118, %v2410
        %v2421 = vadd.f32 %v2119, %v2410
        %v2422 = vadd.f32 %v2120, %v2411
        %v2423 = vadd.f32 %v2121, %v2411
        %v2424 = vadd.f32 %v2122, %v2412
        %v2425 = vadd.f32 %v2123, %v2412
        %v2426 = vadd.f32 %v2124, %v2413
        %v2427 = vadd.f32 %v2125, %v2413
        %vm2428 = vcmp.gt.f32.partialorder %v1377, %v2414
        %vm2429 = vcmp.gt.f32.partialorder %v1378, %v2415
        %vm2430 = vcmp.gt.f32.partialorder %v1379, %v2416
        %vm2431 = vcmp.gt.f32.partialorder %v1380, %v2417
        %vm2432 = vcmp.gt.f32.partialorder %v1381, %v2418
        %vm2433 = vcmp.gt.f32.partialorder %v1382, %v2419
        %vm2434 = vcmp.gt.f32.partialorder %v1383, %v2420
        %vm2435 = vcmp.gt.f32.partialorder %v1384, %v2421
        %vm2436 = vcmp.gt.f32.partialorder %v1385, %v2422
        %vm2437 = vcmp.gt.f32.partialorder %v1386, %v2423
        %vm2438 = vcmp.gt.f32.partialorder %v1387, %v2424
        %vm2439 = vcmp.gt.f32.partialorder %v1388, %v2425
        %vm2440 = vcmp.gt.f32.partialorder %v1389, %v2426
        %vm2441 = vcmp.gt.f32.partialorder %v1390, %v2427
        %v2442 = vsel %vm2428, %v1363, 0.0
        %v2443 = vsel %vm2429, %v1364, 0.0
        %v2444 = vsel %vm2430, %v1365, 0.0
        %v2445 = vsel %vm2431, %v1366, 0.0
        %v2446 = vsel %vm2432, %v1367, 0.0
        %v2447 = vsel %vm2433, %v1368, 0.0
        %v2448 = vsel %vm2434, %v1369, 0.0
        %v2449 = vsel %vm2435, %v1370, 0.0
        %v2450 = vsel %vm2436, %v1371, 0.0
        %v2451 = vsel %vm2437, %v1372, 0.0
        %v2452 = vsel %vm2438, %v1373, 0.0
        %v2453 = vsel %vm2439, %v1374, 0.0
        %v2454 = vsel %vm2440, %v1375, 0.0
        %v2455 = vsel %vm2441, %v1376, 0.0
        %2456 = vst [vmem:[#allocation2] sm:$0xff] -1e+30
        %2457 = vst [vmem:[#allocation2 + $0x8] sm:$0xff] -1e+30
        %2458 = vst [vmem:[#allocation2 + $0x10] sm:$0xff] -1e+30
        %2459 = vst [vmem:[#allocation2 + $0x18] sm:$0xff] -1e+30
        %2460 = vst [vmem:[#allocation2 + $0x20] sm:$0xff] -1e+30
        %2461 = vst [vmem:[#allocation2 + $0x28] sm:$0xff] -1e+30
        %2462 = vst [vmem:[#allocation2 + $0x30] sm:$0xff] -1e+30
        %2463 = vst [vmem:[#allocation2 + $0x38] sm:$0xff] -1e+30
        %2464 = vst [vmem:[#allocation2 + $0x40] sm:$0xff] -1e+30
        %2465 = vst [vmem:[#allocation2 + $0x48] sm:$0xff] -1e+30
        %2466 = vst [vmem:[#allocation2 + $0x50] sm:$0xff] -1e+30
        %2467 = vst [vmem:[#allocation2 + $0x58] sm:$0xff] -1e+30
        %2468 = vst [vmem:[#allocation2 + $0x60] sm:$0xff] -1e+30
        %2469 = vst [vmem:[#allocation2 + $0x68] sm:$0xff] -1e+30
        %2470 = vst [vmem:[#allocation2 + $0x70] sm:$0xff] -1e+30
        %2471 = vst [vmem:[#allocation2 + $0x78] sm:$0xff] -1e+30
        %2472 = vst [vmem:[#allocation2 + $0x80] sm:$0xff] -1e+30
        %2473 = vst [vmem:[#allocation2 + $0x88] sm:$0xff] -1e+30
        %2474 = vst [vmem:[#allocation2 + $0x90] sm:$0xff] -1e+30
        %2475 = vst [vmem:[#allocation2 + $0x98] sm:$0xff] -1e+30
        %2476 = vst [vmem:[#allocation2 + $0xa0] sm:$0xff] -1e+30
        %2477 = vst [vmem:[#allocation2 + $0xa8] sm:$0xff] -1e+30
        %2478 = vst [vmem:[#allocation2 + $0xb0] sm:$0xff] -1e+30
        %2479 = vst [vmem:[#allocation2 + $0xb8] sm:$0xff] -1e+30
        %2494 = vrot.lane.b32.xlu0 %v2442, 2
        %v2495 = vpop.permute.xlu0 %2494
        %2496 = vrot.lane.b32.xlu0 %v2443, 2
        %v2497 = vpop.permute.xlu0 %2496
        %2498 = vrot.lane.b32.xlu0 %v2444, 2
        %v2499 = vpop.permute.xlu0 %2498
        %2500 = vrot.lane.b32.xlu0 %v2445, 2
        %v2501 = vpop.permute.xlu0 %2500
        %2502 = vrot.lane.b32.xlu0 %v2446, 2
        %v2503 = vpop.permute.xlu0 %2502
        %2504 = vrot.lane.b32.xlu0 %v2447, 2
        %v2505 = vpop.permute.xlu0 %2504
        %2506 = vrot.lane.b32.xlu0 %v2448, 2
        %v2507 = vpop.permute.xlu0 %2506
        %2508 = vrot.lane.b32.xlu0 %v2449, 2
        %v2509 = vpop.permute.xlu0 %2508
        %2510 = vrot.lane.b32.xlu0 %v2450, 2
        %v2511 = vpop.permute.xlu0 %2510
        %2512 = vrot.lane.b32.xlu0 %v2451, 2
        %v2513 = vpop.permute.xlu0 %2512
        %2514 = vrot.lane.b32.xlu0 %v2452, 2
        %v2515 = vpop.permute.xlu0 %2514
        %2516 = vrot.lane.b32.xlu0 %v2453, 2
        %v2517 = vpop.permute.xlu0 %2516
        %2518 = vrot.lane.b32.xlu0 %v2454, 2
        %v2519 = vpop.permute.xlu0 %2518
        %2520 = vrot.lane.b32.xlu0 %v2455, 2
        %v2521 = vpop.permute.xlu0 %2520
        %2536 = vst.msk [vmem:[#allocation2 + $0x2] sm:$0xff] %vm358, %v2495
        %2537 = vst.msk [vmem:[#allocation2 + $0xa] sm:$0xff] %vm358, %v2497
        %2538 = vst.msk [vmem:[#allocation2 + $0x1a] sm:$0xff] %vm358, %v2499
        %2539 = vst.msk [vmem:[#allocation2 + $0x22] sm:$0xff] %vm358, %v2501
        %2540 = vst.msk [vmem:[#allocation2 + $0x32] sm:$0xff] %vm358, %v2503
        %2541 = vst.msk [vmem:[#allocation2 + $0x3a] sm:$0xff] %vm358, %v2505
        %2542 = vst.msk [vmem:[#allocation2 + $0x4a] sm:$0xff] %vm358, %v2507
        %2543 = vst.msk [vmem:[#allocation2 + $0x52] sm:$0xff] %vm358, %v2509
        %2544 = vst.msk [vmem:[#allocation2 + $0x62] sm:$0xff] %vm358, %v2511
        %2545 = vst.msk [vmem:[#allocation2 + $0x6a] sm:$0xff] %vm358, %v2513
        %2546 = vst.msk [vmem:[#allocation2 + $0x7a] sm:$0xff] %vm358, %v2515
        %2547 = vst.msk [vmem:[#allocation2 + $0x82] sm:$0xff] %vm358, %v2517
        %2548 = vst.msk [vmem:[#allocation2 + $0x92] sm:$0xff] %vm358, %v2519
        %2549 = vst.msk [vmem:[#allocation2 + $0x9a] sm:$0xff] %vm358, %v2521
        %v2550 = vld [vmem:[#allocation2 + $0x1] sm:$0xff]
        %v2551 = vld [vmem:[#allocation2 + $0x9] sm:$0xff]
        %v2552 = vld [vmem:[#allocation2 + $0x11] sm:$0x3]
        %v2553 = vld [vmem:[#allocation2 + $0x19] sm:$0xff]
        %v2554 = vld [vmem:[#allocation2 + $0x21] sm:$0xff]
        %v2555 = vld [vmem:[#allocation2 + $0x29] sm:$0x3]
        %v2556 = vld [vmem:[#allocation2 + $0x31] sm:$0xff]
        %v2557 = vld [vmem:[#allocation2 + $0x39] sm:$0xff]
        %v2558 = vld [vmem:[#allocation2 + $0x41] sm:$0x3]
        %v2559 = vld [vmem:[#allocation2 + $0x49] sm:$0xff]
        %v2560 = vld [vmem:[#allocation2 + $0x51] sm:$0xff]
        %v2561 = vld [vmem:[#allocation2 + $0x59] sm:$0x3]
        %v2562 = vld [vmem:[#allocation2 + $0x61] sm:$0xff]
        %v2563 = vld [vmem:[#allocation2 + $0x69] sm:$0xff]
        %v2564 = vld [vmem:[#allocation2 + $0x71] sm:$0x3]
        %v2565 = vld [vmem:[#allocation2 + $0x79] sm:$0xff]
        %v2566 = vld [vmem:[#allocation2 + $0x81] sm:$0xff]
        %v2567 = vld [vmem:[#allocation2 + $0x89] sm:$0x3]
        %v2568 = vld [vmem:[#allocation2 + $0x91] sm:$0xff]
        %v2569 = vld [vmem:[#allocation2 + $0x99] sm:$0xff]
        %v2570 = vld [vmem:[#allocation2 + $0xa1] sm:$0x3]
        %2592 = vrot.lane.b32.xlu0 %v2550, 127
        %v2593 = vpop.permute.xlu0 %2592
        %2594 = vrot.lane.b32.xlu0 %v2551, 127
        %v2595 = vpop.permute.xlu0 %2594
        %2596 = vrot.lane.b32.xlu0 %v2552, 127
        %v2597 = vpop.permute.xlu0 %2596
        %2598 = vrot.lane.b32.xlu0 %v2553, 127
        %v2599 = vpop.permute.xlu0 %2598
        %2600 = vrot.lane.b32.xlu0 %v2554, 127
        %v2601 = vpop.permute.xlu0 %2600
        %2602 = vrot.lane.b32.xlu0 %v2555, 127
        %v2603 = vpop.permute.xlu0 %2602
        %2604 = vrot.lane.b32.xlu0 %v2556, 127
        %v2605 = vpop.permute.xlu0 %2604
        %2606 = vrot.lane.b32.xlu0 %v2557, 127
        %v2607 = vpop.permute.xlu0 %2606
        %2608 = vrot.lane.b32.xlu0 %v2558, 127
        %v2609 = vpop.permute.xlu0 %2608
        %2610 = vrot.lane.b32.xlu0 %v2559, 127
        %v2611 = vpop.permute.xlu0 %2610
        %2612 = vrot.lane.b32.xlu0 %v2560, 127
        %v2613 = vpop.permute.xlu0 %2612
        %2614 = vrot.lane.b32.xlu0 %v2561, 127
        %v2615 = vpop.permute.xlu0 %2614
        %2616 = vrot.lane.b32.xlu0 %v2562, 127
        %v2617 = vpop.permute.xlu0 %2616
        %2618 = vrot.lane.b32.xlu0 %v2563, 127
        %v2619 = vpop.permute.xlu0 %2618
        %2620 = vrot.lane.b32.xlu0 %v2564, 127
        %v2621 = vpop.permute.xlu0 %2620
        %2622 = vrot.lane.b32.xlu0 %v2565, 127
        %v2623 = vpop.permute.xlu0 %2622
        %2624 = vrot.lane.b32.xlu0 %v2566, 127
        %v2625 = vpop.permute.xlu0 %2624
        %2626 = vrot.lane.b32.xlu0 %v2567, 127
        %v2627 = vpop.permute.xlu0 %2626
        %2628 = vrot.lane.b32.xlu0 %v2568, 127
        %v2629 = vpop.permute.xlu0 %2628
        %2630 = vrot.lane.b32.xlu0 %v2569, 127
        %v2631 = vpop.permute.xlu0 %2630
        %2632 = vrot.lane.b32.xlu0 %v2570, 127
        %v2633 = vpop.permute.xlu0 %2632
        %v2655 = vmax.f32 %v2550, %v2593
        %v2656 = vmax.f32 %v2551, %v2595
        %v2657 = vmax.f32 %v2552, %v2597
        %v2658 = vmax.f32 %v2553, %v2599
        %v2659 = vmax.f32 %v2554, %v2601
        %v2660 = vmax.f32 %v2555, %v2603
        %v2661 = vmax.f32 %v2556, %v2605
        %v2662 = vmax.f32 %v2557, %v2607
        %v2663 = vmax.f32 %v2558, %v2609
        %v2664 = vmax.f32 %v2559, %v2611
        %v2665 = vmax.f32 %v2560, %v2613
        %v2666 = vmax.f32 %v2561, %v2615
        %v2667 = vmax.f32 %v2562, %v2617
        %v2668 = vmax.f32 %v2563, %v2619
        %v2669 = vmax.f32 %v2564, %v2621
        %v2670 = vmax.f32 %v2565, %v2623
        %v2671 = vmax.f32 %v2566, %v2625
        %v2672 = vmax.f32 %v2567, %v2627
        %v2673 = vmax.f32 %v2568, %v2629
        %v2674 = vmax.f32 %v2569, %v2631
        %v2675 = vmax.f32 %v2570, %v2633
        %2676 = vrot.lane.b32.xlu0 %v2550, 126
        %v2677 = vpop.permute.xlu0 %2676
        %2678 = vrot.lane.b32.xlu0 %v2551, 126
        %v2679 = vpop.permute.xlu0 %2678
        %2680 = vrot.lane.b32.xlu0 %v2552, 126
        %v2681 = vpop.permute.xlu0 %2680
        %2682 = vrot.lane.b32.xlu0 %v2553, 126
        %v2683 = vpop.permute.xlu0 %2682
        %2684 = vrot.lane.b32.xlu0 %v2554, 126
        %v2685 = vpop.permute.xlu0 %2684
        %2686 = vrot.lane.b32.xlu0 %v2555, 126
        %v2687 = vpop.permute.xlu0 %2686
        %2688 = vrot.lane.b32.xlu0 %v2556, 126
        %v2689 = vpop.permute.xlu0 %2688
        %2690 = vrot.lane.b32.xlu0 %v2557, 126
        %v2691 = vpop.permute.xlu0 %2690
        %2692 = vrot.lane.b32.xlu0 %v2558, 126
        %v2693 = vpop.permute.xlu0 %2692
        %2694 = vrot.lane.b32.xlu0 %v2559, 126
        %v2695 = vpop.permute.xlu0 %2694
        %2696 = vrot.lane.b32.xlu0 %v2560, 126
        %v2697 = vpop.permute.xlu0 %2696
        %2698 = vrot.lane.b32.xlu0 %v2561, 126
        %v2699 = vpop.permute.xlu0 %2698
        %2700 = vrot.lane.b32.xlu0 %v2562, 126
        %v2701 = vpop.permute.xlu0 %2700
        %2702 = vrot.lane.b32.xlu0 %v2563, 126
        %v2703 = vpop.permute.xlu0 %2702
        %2704 = vrot.lane.b32.xlu0 %v2564, 126
        %v2705 = vpop.permute.xlu0 %2704
        %2706 = vrot.lane.b32.xlu0 %v2565, 126
        %v2707 = vpop.permute.xlu0 %2706
        %2708 = vrot.lane.b32.xlu0 %v2566, 126
        %v2709 = vpop.permute.xlu0 %2708
        %2710 = vrot.lane.b32.xlu0 %v2567, 126
        %v2711 = vpop.permute.xlu0 %2710
        %2712 = vrot.lane.b32.xlu0 %v2568, 126
        %v2713 = vpop.permute.xlu0 %2712
        %2714 = vrot.lane.b32.xlu0 %v2569, 126
        %v2715 = vpop.permute.xlu0 %2714
        %2716 = vrot.lane.b32.xlu0 %v2570, 126
        %v2717 = vpop.permute.xlu0 %2716
        %v2739 = vmax.f32 %v2655, %v2677
        %v2740 = vmax.f32 %v2656, %v2679
        %v2741 = vmax.f32 %v2657, %v2681
        %v2742 = vmax.f32 %v2658, %v2683
        %v2743 = vmax.f32 %v2659, %v2685
        %v2744 = vmax.f32 %v2660, %v2687
        %v2745 = vmax.f32 %v2661, %v2689
        %v2746 = vmax.f32 %v2662, %v2691
        %v2747 = vmax.f32 %v2663, %v2693
        %v2748 = vmax.f32 %v2664, %v2695
        %v2749 = vmax.f32 %v2665, %v2697
        %v2750 = vmax.f32 %v2666, %v2699
        %v2751 = vmax.f32 %v2667, %v2701
        %v2752 = vmax.f32 %v2668, %v2703
        %v2753 = vmax.f32 %v2669, %v2705
        %v2754 = vmax.f32 %v2670, %v2707
        %v2755 = vmax.f32 %v2671, %v2709
        %v2756 = vmax.f32 %v2672, %v2711
        %v2757 = vmax.f32 %v2673, %v2713
        %v2758 = vmax.f32 %v2674, %v2715
        %v2759 = vmax.f32 %v2675, %v2717
        %v2781 = vrot.slane %v2739, 1
        %v2782 = vrot.slane %v2740, 1
        %v2783 = vsel %vm991, %v2781, %v2782
        %v2784 = vrot.slane %v2741, 1
        %v2785 = vsel %vm991, %v2782, %v2784
        %v2786 = vrot.slane %v2742, 1
        %v2787 = vrot.slane %v2743, 1
        %v2788 = vsel %vm991, %v2786, %v2787
        %v2789 = vrot.slane %v2744, 1
        %v2790 = vsel %vm991, %v2787, %v2789
        %v2791 = vrot.slane %v2745, 1
        %v2792 = vrot.slane %v2746, 1
        %v2793 = vsel %vm991, %v2791, %v2792
        %v2794 = vrot.slane %v2747, 1
        %v2795 = vsel %vm991, %v2792, %v2794
        %v2796 = vrot.slane %v2748, 1
        %v2797 = vrot.slane %v2749, 1
        %v2798 = vsel %vm991, %v2796, %v2797
        %v2799 = vrot.slane %v2750, 1
        %v2800 = vsel %vm991, %v2797, %v2799
        %v2801 = vrot.slane %v2751, 1
        %v2802 = vrot.slane %v2752, 1
        %v2803 = vsel %vm991, %v2801, %v2802
        %v2804 = vrot.slane %v2753, 1
        %v2805 = vsel %vm991, %v2802, %v2804
        %v2806 = vrot.slane %v2754, 1
        %v2807 = vrot.slane %v2755, 1
        %v2808 = vsel %vm991, %v2806, %v2807
        %v2809 = vrot.slane %v2756, 1
        %v2810 = vsel %vm991, %v2807, %v2809
        %v2811 = vrot.slane %v2757, 1
        %v2812 = vrot.slane %v2758, 1
        %v2813 = vsel %vm991, %v2811, %v2812
        %v2814 = vrot.slane %v2759, 1
        %v2815 = vsel %vm991, %v2812, %v2814
        %v2830 = vmax.f32 %v2739, %v2783
        %v2831 = vmax.f32 %v2740, %v2785
        %v2832 = vmax.f32 %v2742, %v2788
        %v2833 = vmax.f32 %v2743, %v2790
        %v2834 = vmax.f32 %v2745, %v2793
        %v2835 = vmax.f32 %v2746, %v2795
        %v2836 = vmax.f32 %v2748, %v2798
        %v2837 = vmax.f32 %v2749, %v2800
        %v2838 = vmax.f32 %v2751, %v2803
        %v2839 = vmax.f32 %v2752, %v2805
        %v2840 = vmax.f32 %v2754, %v2808
        %v2841 = vmax.f32 %v2755, %v2810
        %v2842 = vmax.f32 %v2757, %v2813
        %v2843 = vmax.f32 %v2758, %v2815
        %v2844 = vrot.slane %v2739, 2
        %v2845 = vrot.slane %v2740, 2
        %v2846 = vsel %vm1112, %v2844, %v2845
        %v2847 = vrot.slane %v2741, 2
        %v2848 = vsel %vm1112, %v2845, %v2847
        %v2849 = vrot.slane %v2742, 2
        %v2850 = vrot.slane %v2743, 2
        %v2851 = vsel %vm1112, %v2849, %v2850
        %v2852 = vrot.slane %v2744, 2
        %v2853 = vsel %vm1112, %v2850, %v2852
        %v2854 = vrot.slane %v2745, 2
        %v2855 = vrot.slane %v2746, 2
        %v2856 = vsel %vm1112, %v2854, %v2855
        %v2857 = vrot.slane %v2747, 2
        %v2858 = vsel %vm1112, %v2855, %v2857
        %v2859 = vrot.slane %v2748, 2
        %v2860 = vrot.slane %v2749, 2
        %v2861 = vsel %vm1112, %v2859, %v2860
        %v2862 = vrot.slane %v2750, 2
        %v2863 = vsel %vm1112, %v2860, %v2862
        %v2864 = vrot.slane %v2751, 2
        %v2865 = vrot.slane %v2752, 2
        %v2866 = vsel %vm1112, %v2864, %v2865
        %v2867 = vrot.slane %v2753, 2
        %v2868 = vsel %vm1112, %v2865, %v2867
        %v2869 = vrot.slane %v2754, 2
        %v2870 = vrot.slane %v2755, 2
        %v2871 = vsel %vm1112, %v2869, %v2870
        %v2872 = vrot.slane %v2756, 2
        %v2873 = vsel %vm1112, %v2870, %v2872
        %v2874 = vrot.slane %v2757, 2
        %v2875 = vrot.slane %v2758, 2
        %v2876 = vsel %vm1112, %v2874, %v2875
        %v2877 = vrot.slane %v2759, 2
        %v2878 = vsel %vm1112, %v2875, %v2877
        %v2893 = vmax.f32 %v2830, %v2846
        %v2894 = vmax.f32 %v2831, %v2848
        %v2895 = vmax.f32 %v2832, %v2851
        %v2896 = vmax.f32 %v2833, %v2853
        %v2897 = vmax.f32 %v2834, %v2856
        %v2898 = vmax.f32 %v2835, %v2858
        %v2899 = vmax.f32 %v2836, %v2861
        %v2900 = vmax.f32 %v2837, %v2863
        %v2901 = vmax.f32 %v2838, %v2866
        %v2902 = vmax.f32 %v2839, %v2868
        %v2903 = vmax.f32 %v2840, %v2871
        %v2904 = vmax.f32 %v2841, %v2873
        %v2905 = vmax.f32 %v2842, %v2876
        %v2906 = vmax.f32 %v2843, %v2878
        %2907 = vst [vmem:[#allocation2] sm:$0xff] 1e+30
        %2908 = vst [vmem:[#allocation2 + $0x8] sm:$0xff] 1e+30
        %2909 = vst [vmem:[#allocation2 + $0x10] sm:$0xff] 1e+30
        %2910 = vst [vmem:[#allocation2 + $0x18] sm:$0xff] 1e+30
        %2911 = vst [vmem:[#allocation2 + $0x20] sm:$0xff] 1e+30
        %2912 = vst [vmem:[#allocation2 + $0x28] sm:$0xff] 1e+30
        %2913 = vst [vmem:[#allocation2 + $0x30] sm:$0xff] 1e+30
        %2914 = vst [vmem:[#allocation2 + $0x38] sm:$0xff] 1e+30
        %2915 = vst [vmem:[#allocation2 + $0x40] sm:$0xff] 1e+30
        %2916 = vst [vmem:[#allocation2 + $0x48] sm:$0xff] 1e+30
        %2917 = vst [vmem:[#allocation2 + $0x50] sm:$0xff] 1e+30
        %2918 = vst [vmem:[#allocation2 + $0x58] sm:$0xff] 1e+30
        %2919 = vst [vmem:[#allocation2 + $0x60] sm:$0xff] 1e+30
        %2920 = vst [vmem:[#allocation2 + $0x68] sm:$0xff] 1e+30
        %2921 = vst [vmem:[#allocation2 + $0x70] sm:$0xff] 1e+30
        %2922 = vst [vmem:[#allocation2 + $0x78] sm:$0xff] 1e+30
        %2923 = vst [vmem:[#allocation2 + $0x80] sm:$0xff] 1e+30
        %2924 = vst [vmem:[#allocation2 + $0x88] sm:$0xff] 1e+30
        %2925 = vst [vmem:[#allocation2 + $0x90] sm:$0xff] 1e+30
        %2926 = vst [vmem:[#allocation2 + $0x98] sm:$0xff] 1e+30
        %2927 = vst [vmem:[#allocation2 + $0xa0] sm:$0xff] 1e+30
        %2928 = vst [vmem:[#allocation2 + $0xa8] sm:$0xff] 1e+30
        %2929 = vst [vmem:[#allocation2 + $0xb0] sm:$0xff] 1e+30
        %2930 = vst [vmem:[#allocation2 + $0xb8] sm:$0xff] 1e+30
        %2945 = vrot.lane.b32.xlu0 %v2893, 1
        %v2946 = vpop.permute.xlu0 %2945
        %2947 = vrot.lane.b32.xlu0 %v2894, 1
        %v2948 = vpop.permute.xlu0 %2947
        %2949 = vrot.lane.b32.xlu0 %v2895, 1
        %v2950 = vpop.permute.xlu0 %2949
        %2951 = vrot.lane.b32.xlu0 %v2896, 1
        %v2952 = vpop.permute.xlu0 %2951
        %2953 = vrot.lane.b32.xlu0 %v2897, 1
        %v2954 = vpop.permute.xlu0 %2953
        %2955 = vrot.lane.b32.xlu0 %v2898, 1
        %v2956 = vpop.permute.xlu0 %2955
        %2957 = vrot.lane.b32.xlu0 %v2899, 1
        %v2958 = vpop.permute.xlu0 %2957
        %2959 = vrot.lane.b32.xlu0 %v2900, 1
        %v2960 = vpop.permute.xlu0 %2959
        %2961 = vrot.lane.b32.xlu0 %v2901, 1
        %v2962 = vpop.permute.xlu0 %2961
        %2963 = vrot.lane.b32.xlu0 %v2902, 1
        %v2964 = vpop.permute.xlu0 %2963
        %2965 = vrot.lane.b32.xlu0 %v2903, 1
        %v2966 = vpop.permute.xlu0 %2965
        %2967 = vrot.lane.b32.xlu0 %v2904, 1
        %v2968 = vpop.permute.xlu0 %2967
        %2969 = vrot.lane.b32.xlu0 %v2905, 1
        %v2970 = vpop.permute.xlu0 %2969
        %2971 = vrot.lane.b32.xlu0 %v2906, 1
        %v2972 = vpop.permute.xlu0 %2971
        %2987 = vst.msk [vmem:[#allocation2 + $0x2] sm:$0xff] %vm358, %v2946
        %2988 = vst.msk [vmem:[#allocation2 + $0xa] sm:$0xff] %vm358, %v2948
        %2989 = vst.msk [vmem:[#allocation2 + $0x1a] sm:$0xff] %vm358, %v2950
        %2990 = vst.msk [vmem:[#allocation2 + $0x22] sm:$0xff] %vm358, %v2952
        %2991 = vst.msk [vmem:[#allocation2 + $0x32] sm:$0xff] %vm358, %v2954
        %2992 = vst.msk [vmem:[#allocation2 + $0x3a] sm:$0xff] %vm358, %v2956
        %2993 = vst.msk [vmem:[#allocation2 + $0x4a] sm:$0xff] %vm358, %v2958
        %2994 = vst.msk [vmem:[#allocation2 + $0x52] sm:$0xff] %vm358, %v2960
        %2995 = vst.msk [vmem:[#allocation2 + $0x62] sm:$0xff] %vm358, %v2962
        %2996 = vst.msk [vmem:[#allocation2 + $0x6a] sm:$0xff] %vm358, %v2964
        %2997 = vst.msk [vmem:[#allocation2 + $0x7a] sm:$0xff] %vm358, %v2966
        %2998 = vst.msk [vmem:[#allocation2 + $0x82] sm:$0xff] %vm358, %v2968
        %2999 = vst.msk [vmem:[#allocation2 + $0x92] sm:$0xff] %vm358, %v2970
        %3000 = vst.msk [vmem:[#allocation2 + $0x9a] sm:$0xff] %vm358, %v2972
        %v3001 = vld [vmem:[#allocation2 + $0x1] sm:$0xff]
        %v3002 = vld [vmem:[#allocation2 + $0x9] sm:$0xff]
        %v3003 = vld [vmem:[#allocation2 + $0x11] sm:$0x3]
        %v3004 = vld [vmem:[#allocation2 + $0x19] sm:$0xff]
        %v3005 = vld [vmem:[#allocation2 + $0x21] sm:$0xff]
        %v3006 = vld [vmem:[#allocation2 + $0x29] sm:$0x3]
        %v3007 = vld [vmem:[#allocation2 + $0x31] sm:$0xff]
        %v3008 = vld [vmem:[#allocation2 + $0x39] sm:$0xff]
        %v3009 = vld [vmem:[#allocation2 + $0x41] sm:$0x3]
        %v3010 = vld [vmem:[#allocation2 + $0x49] sm:$0xff]
        %v3011 = vld [vmem:[#allocation2 + $0x51] sm:$0xff]
        %v3012 = vld [vmem:[#allocation2 + $0x59] sm:$0x3]
        %v3013 = vld [vmem:[#allocation2 + $0x61] sm:$0xff]
        %v3014 = vld [vmem:[#allocation2 + $0x69] sm:$0xff]
        %v3015 = vld [vmem:[#allocation2 + $0x71] sm:$0x3]
        %v3016 = vld [vmem:[#allocation2 + $0x79] sm:$0xff]
        %v3017 = vld [vmem:[#allocation2 + $0x81] sm:$0xff]
        %v3018 = vld [vmem:[#allocation2 + $0x89] sm:$0x3]
        %v3019 = vld [vmem:[#allocation2 + $0x91] sm:$0xff]
        %v3020 = vld [vmem:[#allocation2 + $0x99] sm:$0xff]
        %v3021 = vld [vmem:[#allocation2 + $0xa1] sm:$0x3]
        %3043 = vrot.lane.b32.xlu0 %v3001, 127
        %v3044 = vpop.permute.xlu0 %3043
        %3045 = vrot.lane.b32.xlu0 %v3002, 127
        %v3046 = vpop.permute.xlu0 %3045
        %3047 = vrot.lane.b32.xlu0 %v3003, 127
        %v3048 = vpop.permute.xlu0 %3047
        %3049 = vrot.lane.b32.xlu0 %v3004, 127
        %v3050 = vpop.permute.xlu0 %3049
        %3051 = vrot.lane.b32.xlu0 %v3005, 127
        %v3052 = vpop.permute.xlu0 %3051
        %3053 = vrot.lane.b32.xlu0 %v3006, 127
        %v3054 = vpop.permute.xlu0 %3053
        %3055 = vrot.lane.b32.xlu0 %v3007, 127
        %v3056 = vpop.permute.xlu0 %3055
        %3057 = vrot.lane.b32.xlu0 %v3008, 127
        %v3058 = vpop.permute.xlu0 %3057
        %3059 = vrot.lane.b32.xlu0 %v3009, 127
        %v3060 = vpop.permute.xlu0 %3059
        %3061 = vrot.lane.b32.xlu0 %v3010, 127
        %v3062 = vpop.permute.xlu0 %3061
        %3063 = vrot.lane.b32.xlu0 %v3011, 127
        %v3064 = vpop.permute.xlu0 %3063
        %3065 = vrot.lane.b32.xlu0 %v3012, 127
        %v3066 = vpop.permute.xlu0 %3065
        %3067 = vrot.lane.b32.xlu0 %v3013, 127
        %v3068 = vpop.permute.xlu0 %3067
        %3069 = vrot.lane.b32.xlu0 %v3014, 127
        %v3070 = vpop.permute.xlu0 %3069
        %3071 = vrot.lane.b32.xlu0 %v3015, 127
        %v3072 = vpop.permute.xlu0 %3071
        %3073 = vrot.lane.b32.xlu0 %v3016, 127
        %v3074 = vpop.permute.xlu0 %3073
        %3075 = vrot.lane.b32.xlu0 %v3017, 127
        %v3076 = vpop.permute.xlu0 %3075
        %3077 = vrot.lane.b32.xlu0 %v3018, 127
        %v3078 = vpop.permute.xlu0 %3077
        %3079 = vrot.lane.b32.xlu0 %v3019, 127
        %v3080 = vpop.permute.xlu0 %3079
        %3081 = vrot.lane.b32.xlu0 %v3020, 127
        %v3082 = vpop.permute.xlu0 %3081
        %3083 = vrot.lane.b32.xlu0 %v3021, 127
        %v3084 = vpop.permute.xlu0 %3083
        %v3106 = vmin.f32 %v3001, %v3044
        %v3107 = vmin.f32 %v3002, %v3046
        %v3108 = vmin.f32 %v3003, %v3048
        %v3109 = vmin.f32 %v3004, %v3050
        %v3110 = vmin.f32 %v3005, %v3052
        %v3111 = vmin.f32 %v3006, %v3054
        %v3112 = vmin.f32 %v3007, %v3056
        %v3113 = vmin.f32 %v3008, %v3058
        %v3114 = vmin.f32 %v3009, %v3060
        %v3115 = vmin.f32 %v3010, %v3062
        %v3116 = vmin.f32 %v3011, %v3064
        %v3117 = vmin.f32 %v3012, %v3066
        %v3118 = vmin.f32 %v3013, %v3068
        %v3119 = vmin.f32 %v3014, %v3070
        %v3120 = vmin.f32 %v3015, %v3072
        %v3121 = vmin.f32 %v3016, %v3074
        %v3122 = vmin.f32 %v3017, %v3076
        %v3123 = vmin.f32 %v3018, %v3078
        %v3124 = vmin.f32 %v3019, %v3080
        %v3125 = vmin.f32 %v3020, %v3082
        %v3126 = vmin.f32 %v3021, %v3084
        %3127 = vrot.lane.b32.xlu0 %v3001, 126
        %v3128 = vpop.permute.xlu0 %3127
        %3129 = vrot.lane.b32.xlu0 %v3002, 126
        %v3130 = vpop.permute.xlu0 %3129
        %3131 = vrot.lane.b32.xlu0 %v3003, 126
        %v3132 = vpop.permute.xlu0 %3131
        %3133 = vrot.lane.b32.xlu0 %v3004, 126
        %v3134 = vpop.permute.xlu0 %3133
        %3135 = vrot.lane.b32.xlu0 %v3005, 126
        %v3136 = vpop.permute.xlu0 %3135
        %3137 = vrot.lane.b32.xlu0 %v3006, 126
        %v3138 = vpop.permute.xlu0 %3137
        %3139 = vrot.lane.b32.xlu0 %v3007, 126
        %v3140 = vpop.permute.xlu0 %3139
        %3141 = vrot.lane.b32.xlu0 %v3008, 126
        %v3142 = vpop.permute.xlu0 %3141
        %3143 = vrot.lane.b32.xlu0 %v3009, 126
        %v3144 = vpop.permute.xlu0 %3143
        %3145 = vrot.lane.b32.xlu0 %v3010, 126
        %v3146 = vpop.permute.xlu0 %3145
        %3147 = vrot.lane.b32.xlu0 %v3011, 126
        %v3148 = vpop.permute.xlu0 %3147
        %3149 = vrot.lane.b32.xlu0 %v3012, 126
        %v3150 = vpop.permute.xlu0 %3149
        %3151 = vrot.lane.b32.xlu0 %v3013, 126
        %v3152 = vpop.permute.xlu0 %3151
        %3153 = vrot.lane.b32.xlu0 %v3014, 126
        %v3154 = vpop.permute.xlu0 %3153
        %3155 = vrot.lane.b32.xlu0 %v3015, 126
        %v3156 = vpop.permute.xlu0 %3155
        %3157 = vrot.lane.b32.xlu0 %v3016, 126
        %v3158 = vpop.permute.xlu0 %3157
        %3159 = vrot.lane.b32.xlu0 %v3017, 126
        %v3160 = vpop.permute.xlu0 %3159
        %3161 = vrot.lane.b32.xlu0 %v3018, 126
        %v3162 = vpop.permute.xlu0 %3161
        %3163 = vrot.lane.b32.xlu0 %v3019, 126
        %v3164 = vpop.permute.xlu0 %3163
        %3165 = vrot.lane.b32.xlu0 %v3020, 126
        %v3166 = vpop.permute.xlu0 %3165
        %3167 = vrot.lane.b32.xlu0 %v3021, 126
        %v3168 = vpop.permute.xlu0 %3167
        %v3190 = vmin.f32 %v3106, %v3128
        %v3191 = vmin.f32 %v3107, %v3130
        %v3192 = vmin.f32 %v3108, %v3132
        %v3193 = vmin.f32 %v3109, %v3134
        %v3194 = vmin.f32 %v3110, %v3136
        %v3195 = vmin.f32 %v3111, %v3138
        %v3196 = vmin.f32 %v3112, %v3140
        %v3197 = vmin.f32 %v3113, %v3142
        %v3198 = vmin.f32 %v3114, %v3144
        %v3199 = vmin.f32 %v3115, %v3146
        %v3200 = vmin.f32 %v3116, %v3148
        %v3201 = vmin.f32 %v3117, %v3150
        %v3202 = vmin.f32 %v3118, %v3152
        %v3203 = vmin.f32 %v3119, %v3154
        %v3204 = vmin.f32 %v3120, %v3156
        %v3205 = vmin.f32 %v3121, %v3158
        %v3206 = vmin.f32 %v3122, %v3160
        %v3207 = vmin.f32 %v3123, %v3162
        %v3208 = vmin.f32 %v3124, %v3164
        %v3209 = vmin.f32 %v3125, %v3166
        %v3210 = vmin.f32 %v3126, %v3168
        %v3232 = vrot.slane %v3190, 1
        %v3233 = vrot.slane %v3191, 1
        %v3234 = vsel %vm991, %v3232, %v3233
        %v3235 = vrot.slane %v3192, 1
        %v3236 = vsel %vm991, %v3233, %v3235
        %v3237 = vrot.slane %v3193, 1
        %v3238 = vrot.slane %v3194, 1
        %v3239 = vsel %vm991, %v3237, %v3238
        %v3240 = vrot.slane %v3195, 1
        %v3241 = vsel %vm991, %v3238, %v3240
        %v3242 = vrot.slane %v3196, 1
        %v3243 = vrot.slane %v3197, 1
        %v3244 = vsel %vm991, %v3242, %v3243
        %v3245 = vrot.slane %v3198, 1
        %v3246 = vsel %vm991, %v3243, %v3245
        %v3247 = vrot.slane %v3199, 1
        %v3248 = vrot.slane %v3200, 1
        %v3249 = vsel %vm991, %v3247, %v3248
        %v3250 = vrot.slane %v3201, 1
        %v3251 = vsel %vm991, %v3248, %v3250
        %v3252 = vrot.slane %v3202, 1
        %v3253 = vrot.slane %v3203, 1
        %v3254 = vsel %vm991, %v3252, %v3253
        %v3255 = vrot.slane %v3204, 1
        %v3256 = vsel %vm991, %v3253, %v3255
        %v3257 = vrot.slane %v3205, 1
        %v3258 = vrot.slane %v3206, 1
        %v3259 = vsel %vm991, %v3257, %v3258
        %v3260 = vrot.slane %v3207, 1
        %v3261 = vsel %vm991, %v3258, %v3260
        %v3262 = vrot.slane %v3208, 1
        %v3263 = vrot.slane %v3209, 1
        %v3264 = vsel %vm991, %v3262, %v3263
        %v3265 = vrot.slane %v3210, 1
        %v3266 = vsel %vm991, %v3263, %v3265
        %v3281 = vmin.f32 %v3190, %v3234
        %v3282 = vmin.f32 %v3191, %v3236
        %v3283 = vmin.f32 %v3193, %v3239
        %v3284 = vmin.f32 %v3194, %v3241
        %v3285 = vmin.f32 %v3196, %v3244
        %v3286 = vmin.f32 %v3197, %v3246
        %v3287 = vmin.f32 %v3199, %v3249
        %v3288 = vmin.f32 %v3200, %v3251
        %v3289 = vmin.f32 %v3202, %v3254
        %v3290 = vmin.f32 %v3203, %v3256
        %v3291 = vmin.f32 %v3205, %v3259
        %v3292 = vmin.f32 %v3206, %v3261
        %v3293 = vmin.f32 %v3208, %v3264
        %v3294 = vmin.f32 %v3209, %v3266
        %v3295 = vrot.slane %v3190, 2
        %v3296 = vrot.slane %v3191, 2
        %v3297 = vsel %vm1112, %v3295, %v3296
        %v3298 = vrot.slane %v3192, 2
        %v3299 = vsel %vm1112, %v3296, %v3298
        %v3300 = vrot.slane %v3193, 2
        %v3301 = vrot.slane %v3194, 2
        %v3302 = vsel %vm1112, %v3300, %v3301
        %v3303 = vrot.slane %v3195, 2
        %v3304 = vsel %vm1112, %v3301, %v3303
        %v3305 = vrot.slane %v3196, 2
        %v3306 = vrot.slane %v3197, 2
        %v3307 = vsel %vm1112, %v3305, %v3306
        %v3308 = vrot.slane %v3198, 2
        %v3309 = vsel %vm1112, %v3306, %v3308
        %v3310 = vrot.slane %v3199, 2
        %v3311 = vrot.slane %v3200, 2
        %v3312 = vsel %vm1112, %v3310, %v3311
        %v3313 = vrot.slane %v3201, 2
        %v3314 = vsel %vm1112, %v3311, %v3313
        %v3315 = vrot.slane %v3202, 2
        %v3316 = vrot.slane %v3203, 2
        %v3317 = vsel %vm1112, %v3315, %v3316
        %v3318 = vrot.slane %v3204, 2
        %v3319 = vsel %vm1112, %v3316, %v3318
        %v3320 = vrot.slane %v3205, 2
        %v3321 = vrot.slane %v3206, 2
        %v3322 = vsel %vm1112, %v3320, %v3321
        %v3323 = vrot.slane %v3207, 2
        %v3324 = vsel %vm1112, %v3321, %v3323
        %v3325 = vrot.slane %v3208, 2
        %v3326 = vrot.slane %v3209, 2
        %v3327 = vsel %vm1112, %v3325, %v3326
        %v3328 = vrot.slane %v3210, 2
        %v3329 = vsel %vm1112, %v3326, %v3328
        %v3344 = vmin.f32 %v3281, %v3297
        %v3345 = vmin.f32 %v3282, %v3299
        %v3346 = vmin.f32 %v3283, %v3302
        %v3347 = vmin.f32 %v3284, %v3304
        %v3348 = vmin.f32 %v3285, %v3307
        %v3349 = vmin.f32 %v3286, %v3309
        %v3350 = vmin.f32 %v3287, %v3312
        %v3351 = vmin.f32 %v3288, %v3314
        %v3352 = vmin.f32 %v3289, %v3317
        %v3353 = vmin.f32 %v3290, %v3319
        %v3354 = vmin.f32 %v3291, %v3322
        %v3355 = vmin.f32 %v3292, %v3324
        %v3356 = vmin.f32 %v3293, %v3327
        %v3357 = vmin.f32 %v3294, %v3329
        %v3358 = vpack.c.bf16 %v3345, %v3344
        %v3359 = vpack.c.bf16 %v3347, %v3346
        %v3360 = vpack.c.bf16 %v3349, %v3348
        %v3361 = vpack.c.bf16 %v3351, %v3350
        %v3362 = vpack.c.bf16 %v3353, %v3352
        %v3363 = vpack.c.bf16 %v3355, %v3354
        %v3364 = vpack.c.bf16 %v3357, %v3356
        %v3372 = vunpack.c.l.b16 %v3358
        %v3373 = vunpack.c.h.b16 %v3358
        %v3374 = vunpack.c.l.b16 %v3359
        %v3375 = vunpack.c.h.b16 %v3359
        %v3376 = vunpack.c.l.b16 %v3360
        %v3377 = vunpack.c.h.b16 %v3360
        %v3378 = vunpack.c.l.b16 %v3361
        %v3379 = vunpack.c.h.b16 %v3361
        %v3380 = vunpack.c.l.b16 %v3362
        %v3381 = vunpack.c.h.b16 %v3362
        %v3382 = vunpack.c.l.b16 %v3363
        %v3383 = vunpack.c.h.b16 %v3363
        %v3384 = vunpack.c.l.b16 %v3364
        %v3385 = vunpack.c.h.b16 %v3364
        %v3386 = vpack.c.b16 %v3372, %v3372
        %v3387 = vpack.c.b16 %v3373, %v3373
        %v3388 = vpack.c.b16 %v3374, %v3374
        %v3389 = vpack.c.b16 %v3375, %v3375
        %v3390 = vpack.c.b16 %v3376, %v3376
        %v3391 = vpack.c.b16 %v3377, %v3377
        %v3392 = vpack.c.b16 %v3378, %v3378
        %v3393 = vpack.c.b16 %v3379, %v3379
        %v3394 = vpack.c.b16 %v3380, %v3380
        %v3395 = vpack.c.b16 %v3381, %v3381
        %v3396 = vpack.c.b16 %v3382, %v3382
        %v3397 = vpack.c.b16 %v3383, %v3383
        %v3398 = vpack.c.b16 %v3384, %v3384
        %v3399 = vpack.c.b16 %v3385, %v3385
        %3400 = vrot.lane.b32.xlu0 %v3386, 127
        %v3401 = vpop.permute.xlu0 %3400
        %3402 = vrot.lane.b32.xlu0 %v3387, 127
        %v3403 = vpop.permute.xlu0 %3402
        %3404 = vrot.lane.b32.xlu0 %v3388, 127
        %v3405 = vpop.permute.xlu0 %3404
        %3406 = vrot.lane.b32.xlu0 %v3389, 127
        %v3407 = vpop.permute.xlu0 %3406
        %3408 = vrot.lane.b32.xlu0 %v3390, 127
        %v3409 = vpop.permute.xlu0 %3408
        %3410 = vrot.lane.b32.xlu0 %v3391, 127
        %v3411 = vpop.permute.xlu0 %3410
        %3412 = vrot.lane.b32.xlu0 %v3392, 127
        %v3413 = vpop.permute.xlu0 %3412
        %3414 = vrot.lane.b32.xlu0 %v3393, 127
        %v3415 = vpop.permute.xlu0 %3414
        %3416 = vrot.lane.b32.xlu0 %v3394, 127
        %v3417 = vpop.permute.xlu0 %3416
        %3418 = vrot.lane.b32.xlu0 %v3395, 127
        %v3419 = vpop.permute.xlu0 %3418
        %3420 = vrot.lane.b32.xlu0 %v3396, 127
        %v3421 = vpop.permute.xlu0 %3420
        %3422 = vrot.lane.b32.xlu0 %v3397, 127
        %v3423 = vpop.permute.xlu0 %3422
        %3424 = vrot.lane.b32.xlu0 %v3398, 127
        %v3425 = vpop.permute.xlu0 %3424
        %3426 = vrot.lane.b32.xlu0 %v3399, 127
        %v3427 = vpop.permute.xlu0 %3426
        %vm3442 = vcmask 125952
        %3443 = vst.msk [vmem:[%s239] sm:$0xf] %vm3442, %v3401
        %3444 = vst.msk [vmem:[%s239 + $0x4] sm:$0xf] %vm3442, %v3403
        %3445 = vst.msk [vmem:[%s239 + $0x8] sm:$0xf] %vm3442, %v3405
        %3446 = vst.msk [vmem:[%s239 + $0xc] sm:$0xf] %vm3442, %v3407
        %3447 = vst.msk [vmem:[%s239 + $0x10] sm:$0xf] %vm3442, %v3409
        %3448 = vst.msk [vmem:[%s239 + $0x14] sm:$0xf] %vm3442, %v3411
        %3449 = vst.msk [vmem:[%s239 + $0x18] sm:$0xf] %vm3442, %v3413
        %3450 = vst.msk [vmem:[%s239 + $0x1c] sm:$0xf] %vm3442, %v3415
        %3451 = vst.msk [vmem:[%s239 + $0x20] sm:$0xf] %vm3442, %v3417
        %3452 = vst.msk [vmem:[%s239 + $0x24] sm:$0xf] %vm3442, %v3419
        %3453 = vst.msk [vmem:[%s239 + $0x28] sm:$0xf] %vm3442, %v3421
        %3454 = vst.msk [vmem:[%s239 + $0x2c] sm:$0xf] %vm3442, %v3423
        %3455 = vst.msk [vmem:[%s239 + $0x30] sm:$0xf] %vm3442, %v3425
        %3456 = vst.msk [vmem:[%s239 + $0x34] sm:$0xf] %vm3442, %v3427
        %vm3457 = vcmask 138248
        %v3458 = vsel %vm3457, %v3344, inf
        %3459 = vmin.xlane.f32.xlu0 %v3458
        %v3460 = vpop.xlane.xlu0 %3459
        %v3461 = vsel %vm3457, %v3345, inf
        %3462 = vmin.xlane.f32.xlu0 %v3461
        %v3463 = vpop.xlane.xlu0 %3462
        %v3464 = vsel %vm3457, %v3346, inf
        %3465 = vmin.xlane.f32.xlu0 %v3464
        %v3466 = vpop.xlane.xlu0 %3465
        %v3467 = vsel %vm3457, %v3347, inf
        %3468 = vmin.xlane.f32.xlu0 %v3467
        %v3469 = vpop.xlane.xlu0 %3468
        %v3470 = vsel %vm3457, %v3348, inf
        %3471 = vmin.xlane.f32.xlu0 %v3470
        %v3472 = vpop.xlane.xlu0 %3471
        %v3473 = vsel %vm3457, %v3349, inf
        %3474 = vmin.xlane.f32.xlu0 %v3473
        %v3475 = vpop.xlane.xlu0 %3474
        %v3476 = vsel %vm3457, %v3350, inf
        %3477 = vmin.xlane.f32.xlu0 %v3476
        %v3478 = vpop.xlane.xlu0 %3477
        %v3479 = vsel %vm3457, %v3351, inf
        %3480 = vmin.xlane.f32.xlu0 %v3479
        %v3481 = vpop.xlane.xlu0 %3480
        %v3482 = vsel %vm3457, %v3352, inf
        %3483 = vmin.xlane.f32.xlu0 %v3482
        %v3484 = vpop.xlane.xlu0 %3483
        %v3485 = vsel %vm3457, %v3353, inf
        %3486 = vmin.xlane.f32.xlu0 %v3485
        %v3487 = vpop.xlane.xlu0 %3486
        %v3488 = vsel %vm3457, %v3354, inf
        %3489 = vmin.xlane.f32.xlu0 %v3488
        %v3490 = vpop.xlane.xlu0 %3489
        %v3491 = vsel %vm3457, %v3355, inf
        %3492 = vmin.xlane.f32.xlu0 %v3491
        %v3493 = vpop.xlane.xlu0 %3492
        %v3494 = vsel %vm3457, %v3356, inf
        %3495 = vmin.xlane.f32.xlu0 %v3494
        %v3496 = vpop.xlane.xlu0 %3495
        %v3497 = vsel %vm3457, %v3357, inf
        %3498 = vmin.xlane.f32.xlu0 %v3497
        %v3499 = vpop.xlane.xlu0 %3498
        %v3500 = vmin.f32 %v3460, %v3463
        %v3501 = vrot.slane %v3500, 4
        %v3502 = vmin.f32 %v3500, %v3501
        %v3503 = vrot.slane %v3502, 2
        %v3504 = vmin.f32 %v3502, %v3503
        %v3505 = vrot.slane %v3504, 1
        %v3506 = vmin.f32 %v3504, %v3505
        %v3507 = vmin.f32 %v3466, %v3469
        %v3508 = vrot.slane %v3507, 4
        %v3509 = vmin.f32 %v3507, %v3508
        %v3510 = vrot.slane %v3509, 2
        %v3511 = vmin.f32 %v3509, %v3510
        %v3512 = vrot.slane %v3511, 1
        %v3513 = vmin.f32 %v3511, %v3512
        %v3514 = vmin.f32 %v3472, %v3475
        %v3515 = vrot.slane %v3514, 4
        %v3516 = vmin.f32 %v3514, %v3515
        %v3517 = vrot.slane %v3516, 2
        %v3518 = vmin.f32 %v3516, %v3517
        %v3519 = vrot.slane %v3518, 1
        %v3520 = vmin.f32 %v3518, %v3519
        %v3521 = vmin.f32 %v3478, %v3481
        %v3522 = vrot.slane %v3521, 4
        %v3523 = vmin.f32 %v3521, %v3522
        %v3524 = vrot.slane %v3523, 2
        %v3525 = vmin.f32 %v3523, %v3524
        %v3526 = vrot.slane %v3525, 1
        %v3527 = vmin.f32 %v3525, %v3526
        %v3528 = vmin.f32 %v3484, %v3487
        %v3529 = vrot.slane %v3528, 4
        %v3530 = vmin.f32 %v3528, %v3529
        %v3531 = vrot.slane %v3530, 2
        %v3532 = vmin.f32 %v3530, %v3531
        %v3533 = vrot.slane %v3532, 1
        %v3534 = vmin.f32 %v3532, %v3533
        %v3535 = vmin.f32 %v3490, %v3493
        %v3536 = vrot.slane %v3535, 4
        %v3537 = vmin.f32 %v3535, %v3536
        %v3538 = vrot.slane %v3537, 2
        %v3539 = vmin.f32 %v3537, %v3538
        %v3540 = vrot.slane %v3539, 1
        %v3541 = vmin.f32 %v3539, %v3540
        %v3542 = vmin.f32 %v3496, %v3499
        %v3543 = vrot.slane %v3542, 4
        %v3544 = vmin.f32 %v3542, %v3543
        %v3545 = vrot.slane %v3544, 2
        %v3546 = vmin.f32 %v3544, %v3545
        %v3547 = vrot.slane %v3546, 1
        %v3548 = vmin.f32 %v3546, %v3547
        %v3549 = vsel %vm3457, %v3344, -inf
        %3550 = vmax.xlane.f32.xlu0 %v3549
        %v3551 = vpop.xlane.xlu0 %3550
        %v3552 = vsel %vm3457, %v3345, -inf
        %3553 = vmax.xlane.f32.xlu0 %v3552
        %v3554 = vpop.xlane.xlu0 %3553
        %v3555 = vsel %vm3457, %v3346, -inf
        %3556 = vmax.xlane.f32.xlu0 %v3555
        %v3557 = vpop.xlane.xlu0 %3556
        %v3558 = vsel %vm3457, %v3347, -inf
        %3559 = vmax.xlane.f32.xlu0 %v3558
        %v3560 = vpop.xlane.xlu0 %3559
        %v3561 = vsel %vm3457, %v3348, -inf
        %3562 = vmax.xlane.f32.xlu0 %v3561
        %v3563 = vpop.xlane.xlu0 %3562
        %v3564 = vsel %vm3457, %v3349, -inf
        %3565 = vmax.xlane.f32.xlu0 %v3564
        %v3566 = vpop.xlane.xlu0 %3565
        %v3567 = vsel %vm3457, %v3350, -inf
        %3568 = vmax.xlane.f32.xlu0 %v3567
        %v3569 = vpop.xlane.xlu0 %3568
        %v3570 = vsel %vm3457, %v3351, -inf
        %3571 = vmax.xlane.f32.xlu0 %v3570
        %v3572 = vpop.xlane.xlu0 %3571
        %v3573 = vsel %vm3457, %v3352, -inf
        %3574 = vmax.xlane.f32.xlu0 %v3573
        %v3575 = vpop.xlane.xlu0 %3574
        %v3576 = vsel %vm3457, %v3353, -inf
        %3577 = vmax.xlane.f32.xlu0 %v3576
        %v3578 = vpop.xlane.xlu0 %3577
        %v3579 = vsel %vm3457, %v3354, -inf
        %3580 = vmax.xlane.f32.xlu0 %v3579
        %v3581 = vpop.xlane.xlu0 %3580
        %v3582 = vsel %vm3457, %v3355, -inf
        %3583 = vmax.xlane.f32.xlu0 %v3582
        %v3584 = vpop.xlane.xlu0 %3583
        %v3585 = vsel %vm3457, %v3356, -inf
        %3586 = vmax.xlane.f32.xlu0 %v3585
        %v3587 = vpop.xlane.xlu0 %3586
        %v3588 = vsel %vm3457, %v3357, -inf
        %3589 = vmax.xlane.f32.xlu0 %v3588
        %v3590 = vpop.xlane.xlu0 %3589
        %v3591 = vmax.f32 %v3551, %v3554
        %v3592 = vrot.slane %v3591, 4
        %v3593 = vmax.f32 %v3591, %v3592
        %v3594 = vrot.slane %v3593, 2
        %v3595 = vmax.f32 %v3593, %v3594
        %v3596 = vrot.slane %v3595, 1
        %v3597 = vmax.f32 %v3595, %v3596
        %v3598 = vmax.f32 %v3557, %v3560
        %v3599 = vrot.slane %v3598, 4
        %v3600 = vmax.f32 %v3598, %v3599
        %v3601 = vrot.slane %v3600, 2
        %v3602 = vmax.f32 %v3600, %v3601
        %v3603 = vrot.slane %v3602, 1
        %v3604 = vmax.f32 %v3602, %v3603
        %v3605 = vmax.f32 %v3563, %v3566
        %v3606 = vrot.slane %v3605, 4
        %v3607 = vmax.f32 %v3605, %v3606
        %v3608 = vrot.slane %v3607, 2
        %v3609 = vmax.f32 %v3607, %v3608
        %v3610 = vrot.slane %v3609, 1
        %v3611 = vmax.f32 %v3609, %v3610
        %v3612 = vmax.f32 %v3569, %v3572
        %v3613 = vrot.slane %v3612, 4
        %v3614 = vmax.f32 %v3612, %v3613
        %v3615 = vrot.slane %v3614, 2
        %v3616 = vmax.f32 %v3614, %v3615
        %v3617 = vrot.slane %v3616, 1
        %v3618 = vmax.f32 %v3616, %v3617
        %v3619 = vmax.f32 %v3575, %v3578
        %v3620 = vrot.slane %v3619, 4
        %v3621 = vmax.f32 %v3619, %v3620
        %v3622 = vrot.slane %v3621, 2
        %v3623 = vmax.f32 %v3621, %v3622
        %v3624 = vrot.slane %v3623, 1
        %v3625 = vmax.f32 %v3623, %v3624
        %v3626 = vmax.f32 %v3581, %v3584
        %v3627 = vrot.slane %v3626, 4
        %v3628 = vmax.f32 %v3626, %v3627
        %v3629 = vrot.slane %v3628, 2
        %v3630 = vmax.f32 %v3628, %v3629
        %v3631 = vrot.slane %v3630, 1
        %v3632 = vmax.f32 %v3630, %v3631
        %v3633 = vmax.f32 %v3587, %v3590
        %v3634 = vrot.slane %v3633, 4
        %v3635 = vmax.f32 %v3633, %v3634
        %v3636 = vrot.slane %v3635, 2
        %v3637 = vmax.f32 %v3635, %v3636
        %v3638 = vrot.slane %v3637, 1
        %v3639 = vmax.f32 %v3637, %v3638
        %v3640 = vmin.f32 %v3506, %v3513
        %v3641 = vmax.f32 %v3597, %v3604
        %v3642 = vmin.f32 %v3640, %v3520
        %v3643 = vmax.f32 %v3641, %v3611
        %v3644 = vmin.f32 %v3642, %v3527
        %v3645 = vmax.f32 %v3643, %v3618
        %v3646 = vmin.f32 %v3644, %v3534
        %v3647 = vmax.f32 %v3645, %v3625
        %v3648 = vmin.f32 %v3646, %v3541
        %v3649 = vmax.f32 %v3647, %v3632
        %v3650 = vmin.f32 %v3648, %v3548
        %v3651 = vmax.f32 %v3649, %v3639
        %vm3652 = vcmask 0
        %3653 = vst.msk [vmem:[%s246] sm:$0x1] %vm3652, %v3650
        %3654 = vst.msk [vmem:[%s253] sm:$0x1] %vm3652, %v3651
        %p3655 = scmp.lt.s32.totalorder %s22, 1
        %s3656 = scalar_select %p3655, %s22, 1
        %p3657 = scmp.lt.s32.totalorder %s23, 2
        %s3658 = scalar_select %p3657, %s23, 2
        %s3659 = smul.addr %s3658, 14
        %s3660 = smul.addr %s3656, 42
        %s3661 = sadd.s32 %s3659, %s3660
        %s3662 = smul.addr %s3661, 4
        %s3663 = scalar_lea.vmem %s1, %s3662
        %p3664 = scmp.lt.s32.totalorder %s22, 1
        %s3665 = scalar_select %p3664, %s22, 1
        %p3666 = scmp.lt.s32.totalorder %s23, 2
        %s3667 = scalar_select %p3666, %s23, 2
        %s3668 = smul.addr %s3665, 3
        %s3669 = sadd.s32 %s3667, %s3668
        %s3670 = scalar_lea.vmem %s2, %s3669
        %p3671 = scmp.lt.s32.totalorder %s22, 1
        %s3672 = scalar_select %p3671, %s22, 1
        %p3673 = scmp.lt.s32.totalorder %s23, 2
        %s3674 = scalar_select %p3673, %s23, 2
        %s3675 = smul.addr %s3672, 3
        %s3676 = sadd.s32 %s3674, %s3675
        %s3677 = scalar_lea.vmem %s3, %s3676
        // Predicated region
        $region29: #{resnet_forward.2} parent=23 // pred_check
          %p3678 = pneg %p78
        $region30: #{resnet_forward.2} parent=23 // pred_check_branch
          %3680 = sbr.rel (%p3678) target = $region32
        $region31: #{resnet_forward.2} parent=23 // pred_region
          _
        $region32: #{resnet_forward.2} parent=23 // pred_fallthru
          _
        // Predicated region
        $region33: #{resnet_forward.2} parent=23 // pred_check
          %p3681 = pneg %p106
        $region34: #{resnet_forward.2} parent=23 // pred_check_branch
          %3683 = sbr.rel (%p3681) target = $region36
        $region35: #{resnet_forward.2} parent=23 // pred_region
          _
        $region36: #{resnet_forward.2} parent=23 // pred_fallthru
          _
        // Predicated region
        $region37: #{resnet_forward.2} parent=23 // pred_check
          %p3684 = pneg %p134
        $region38: #{resnet_forward.2} parent=23 // pred_check_branch
          %3686 = sbr.rel (%p3684) target = $region40
        $region39: #{resnet_forward.2} parent=23 // pred_region
          _
        $region40: #{resnet_forward.2} parent=23 // pred_fallthru
          _
      $region24: #{resnet_forward.2} parent=5 // pred_fallthru
        _
      %p3687 = scmp.le.s32.totalorder 2, %s13
      // Predicated region
      $region41: #{resnet_forward.2} parent=5 // pred_check
        %p3688 = pneg %p3687
      $region42: #{resnet_forward.2} parent=5 // pred_check_branch
        %3690 = sbr.rel (%p3688) target = $region44
      $region43: #{resnet_forward.2} parent=5 // pred_region
        %s3691 = ssub.s32 %s13, 2
        // Predicated region
        $region45: #{resnet_forward.2} parent=43 // pred_check
          %p3692 = pneg %p84
        $region46: #{resnet_forward.2} parent=43 // pred_check_branch
          %3694 = sbr.rel (%p3692) target = $region48
        $region47: #{resnet_forward.2} parent=43 // pred_region
          %p3695 = scmp.lt.s32.totalorder %s24, 1
          %s3696 = scalar_select %p3695, %s24, 1
          %p3697 = scmp.lt.s32.totalorder %s25, 2
          %s3698 = scalar_select %p3697, %s25, 2
          %s3699 = smul.addr %s3698, 14
          %s3700 = smul.addr %s3696, 42
          %s3701 = sadd.s32 %s3699, %s3700
          %s3702 = smul.addr %s3701, 4
          %s3703 = scalar_lea.vmem %s1, %s3702
        $region48: #{resnet_forward.2} parent=43 // pred_fallthru
          _
        // Predicated region
        $region49: #{resnet_forward.2} parent=43 // pred_check
          %p3704 = pneg %p112
        $region50: #{resnet_forward.2} parent=43 // pred_check_branch
          %3706 = sbr.rel (%p3704) target = $region52
        $region51: #{resnet_forward.2} parent=43 // pred_region
          %p3707 = scmp.lt.s32.totalorder %s24, 1
          %s3708 = scalar_select %p3707, %s24, 1
          %p3709 = scmp.lt.s32.totalorder %s25, 2
          %s3710 = scalar_select %p3709, %s25, 2
          %s3711 = smul.addr %s3708, 3
          %s3712 = sadd.s32 %s3710, %s3711
          %s3713 = scalar_lea.vmem %s2, %s3712
        $region52: #{resnet_forward.2} parent=43 // pred_fallthru
          _
        // Predicated region
        $region53: #{resnet_forward.2} parent=43 // pred_check
          %p3714 = pneg %p140
        $region54: #{resnet_forward.2} parent=43 // pred_check_branch
          %3716 = sbr.rel (%p3714) target = $region56
        $region55: #{resnet_forward.2} parent=43 // pred_region
          %p3717 = scmp.lt.s32.totalorder %s24, 1
          %s3718 = scalar_select %p3717, %s24, 1
          %p3719 = scmp.lt.s32.totalorder %s25, 2
          %s3720 = scalar_select %p3719, %s25, 2
          %s3721 = smul.addr %s3718, 3
          %s3722 = sadd.s32 %s3720, %s3721
          %s3723 = scalar_lea.vmem %s3, %s3722
        $region56: #{resnet_forward.2} parent=43 // pred_fallthru
          _
      $region44: #{resnet_forward.2} parent=5 // pred_fallthru
        _
    $region6: #{resnet_forward.2} parent=1 // loop_footer
      %s17 = sadd.s32 1, %s13
    $region7: #{resnet_forward.2} parent=1 // loop_footer_branch
      %12 = sbr.rel target = $region3
    $region8: #{resnet_forward.2} parent=1 // loop_exit
      _
    %3724 = vsyncpa [#allocation4], 1
    %s3725 = scalar_lea.sflag [#allocation4], 1
    %3726 = vsyncpa %s3725, 1

</llo_original>
